<compile_context>
chip_gen: v7x
topology: tpu7x:2x2x1
jax: 0.10.0
libtpu: 0.0.40
codegen_flags: <defaults>
</compile_context>

<pallas_src>
import jax
import jax.numpy as jnp
from jax.experimental import pallas as pl
from jax.experimental.pallas import tpu as pltpu

COMPUTE_DTYPE = jnp.bfloat16   # MXU input dtype; all accumulation is f32.


def _pick_tile_m(m, target=512):
    """Largest multiple-of-8 divisor of m that is <= target (else m itself)."""
    if m <= target:
        return m
    t = target - (target % 8)
    while t >= 8:
        if m % t == 0:
            return t
        t -= 8
    return m


# ----------------------------------------------------------------------------
# Kernel 1: fused  conv(im2col matmul) + ReLU + MaxPool(2x2)
#   out[i, :] = relu(max_q(a_q[i, :] @ w))       (relu and max commute)
# ----------------------------------------------------------------------------
def _conv_relu_pool_kernel(a0_ref, a1_ref, a2_ref, a3_ref, w_ref, o_ref):
    w = w_ref[...]
    # Four back-to-back matmuls share the same resident RHS on the MXU.
    d0 = jnp.dot(a0_ref[...], w, preferred_element_type=jnp.float32)
    d1 = jnp.dot(a1_ref[...], w, preferred_element_type=jnp.float32)
    d2 = jnp.dot(a2_ref[...], w, preferred_element_type=jnp.float32)
    d3 = jnp.dot(a3_ref[...], w, preferred_element_type=jnp.float32)
    m = jnp.maximum(jnp.maximum(d0, d1), jnp.maximum(d2, d3))
    o_ref[...] = jnp.maximum(m, 0.0).astype(o_ref.dtype)


def conv_relu_pool_matmul(a_quads, w_mat, out_dtype):
    """a_quads: 4 patch matrices (M, K); w_mat: (K, Cout) -> (M, Cout)."""
    M, K = a_quads[0].shape
    K2, N = w_mat.shape
    assert K == K2
    tm = _pick_tile_m(M)
    grid = (M // tm,)
    bytes_in = 4 * M * K * jnp.dtype(a_quads[0].dtype).itemsize
    bytes_w = K * N * jnp.dtype(w_mat.dtype).itemsize
    bytes_out = M * N * jnp.dtype(out_dtype).itemsize
    return pl.pallas_call(
        _conv_relu_pool_kernel,
        out_shape=jax.ShapeDtypeStruct((M, N), out_dtype),
        grid=grid,
        in_specs=[pl.BlockSpec((tm, K), lambda i: (i, 0)) for _ in range(4)]
                + [pl.BlockSpec((K, N), lambda i: (0, 0))],   # resident weight
        out_specs=pl.BlockSpec((tm, N), lambda i: (i, 0)),
        compiler_params=pltpu.CompilerParams(
            dimension_semantics=("parallel",)),
        cost_estimate=pl.CostEstimate(
            flops=2 * 4 * M * K * N,
            transcendentals=0,
            bytes_accessed=bytes_in + bytes_w + bytes_out),
    )(*a_quads, w_mat)


# ----------------------------------------------------------------------------
# Kernel 2: fused fc1 -> ReLU -> fc2 -> ReLU -> fc3
# ----------------------------------------------------------------------------
def _mlp_kernel(x_ref, w1_ref, w2_ref, w3_ref, o_ref):
    h = jnp.dot(x_ref[...], w1_ref[...], preferred_element_type=jnp.float32)
    h = jnp.maximum(h, 0.0).astype(w2_ref.dtype)
    h = jnp.dot(h, w2_ref[...], preferred_element_type=jnp.float32)
    h = jnp.maximum(h, 0.0).astype(w3_ref.dtype)
    o_ref[...] = jnp.dot(h, w3_ref[...],
                         preferred_element_type=jnp.float32).astype(o_ref.dtype)


def fused_mlp(x, w1, w2, w3):
    M, K1 = x.shape
    _, N1 = w1.shape
    _, N2 = w2.shape
    _, N3 = w3.shape
    tm = _pick_tile_m(M)
    grid = (M // tm,)
    itm = jnp.dtype(x.dtype).itemsize
    flops = 2 * M * (K1 * N1 + N1 * N2 + N2 * N3)
    bytes_accessed = (M * K1 + K1 * N1 + N1 * N2 + N2 * N3) * itm + M * N3 * 4
    return pl.pallas_call(
        _mlp_kernel,
        out_shape=jax.ShapeDtypeStruct((M, N3), jnp.float32),
        grid=grid,
        in_specs=[pl.BlockSpec((tm, K1), lambda i: (i, 0)),
                  pl.BlockSpec((K1, N1), lambda i: (0, 0)),
                  pl.BlockSpec((N1, N2), lambda i: (0, 0)),
                  pl.BlockSpec((N2, N3), lambda i: (0, 0))],
        out_specs=pl.BlockSpec((tm, N3), lambda i: (i, 0)),
        compiler_params=pltpu.CompilerParams(
            dimension_semantics=("parallel",)),
        cost_estimate=pl.CostEstimate(flops=flops, transcendentals=0,
                                      bytes_accessed=bytes_accessed),
    )(x, w1, w2, w3)


# ----------------------------------------------------------------------------
# Conv-as-matmul glue (pure reordering, NHWC)
# ----------------------------------------------------------------------------
def _im2col_pool_quadrants(x_nhwc, k):
    """x: (B, H, W, C) -> four patch matrices (B*OH2*OW2, k*k*C), one per 2x2
    pool-window quadrant. Rows ordered (b, oh2, ow2); columns ordered
    (kh, kw, c), matching prepare_params."""
    B, H, W, C = x_nhwc.shape
    OH, OW = H - k + 1, W - k + 1
    OH2, OW2 = OH // 2, OW // 2
    # TODO(synk): fuse patch extraction into the conv kernel (manual DMA of
    # contiguous input row-bands into VMEM, shifted views in-kernel) to remove
    # this ~k*k HBM read amplification.
    patches = jnp.concatenate(
        [x_nhwc[:, di:di + OH, dj:dj + OW, :]
         for di in range(k) for dj in range(k)], axis=-1)    # (B, OH, OW, k*k*C)

    def quad(qi, qj):
        q = patches[:, qi::2, qj::2, :]                      # (B, OH2, OW2, k*k*C)
        return q.reshape(B * OH2 * OW2, k * k * C)

    return (quad(0, 0), quad(0, 1), quad(1, 0), quad(1, 1)), (B, OH2, OW2)


def conv_relu_pool(x_nhwc, w_mat, k, out_dtype=COMPUTE_DTYPE):
    """relu(maxpool2x2(conv_valid(x)))  ->  (B, OH/2, OW/2, Cout) NHWC."""
    quads, (B, OH2, OW2) = _im2col_pool_quadrants(x_nhwc, k)
    y = conv_relu_pool_matmul(quads, w_mat, out_dtype)       # (B*OH2*OW2, Cout)
    return y.reshape(B, OH2, OW2, w_mat.shape[1])


# ----------------------------------------------------------------------------
# Model
# ----------------------------------------------------------------------------
def init_params(key):
    k1, k2, k3, k4, k5 = jax.random.split(key, 5)
    scale = 0.05
    return {
        "conv1": scale * jax.random.normal(k1, (32, 3, 5, 5), jnp.float32),
        "conv2": scale * jax.random.normal(k2, (32, 32, 5, 5), jnp.float32),
        "fc1": scale * jax.random.normal(k3, (128, 32 * 4 * 4), jnp.float32),
        "fc2": scale * jax.random.normal(k4, (32, 128), jnp.float32),
        "fc3": scale * jax.random.normal(k5, (10, 32), jnp.float32),
    }


def prepare_params(params, dtype=COMPUTE_DTYPE):
    """One-time weight prep: (K, N) layout, fc1 columns permuted to the NHWC
    flatten order (preserving torch.flatten semantics), cast to MXU dtype."""
    def conv_w(w):                              # (Cout, Cin, k, k)
        Cout, Cin, k, _ = w.shape
        # row index = (kh*k + kw)*Cin + cin, matching _im2col_pool_quadrants
        return w.transpose(2, 3, 1, 0).reshape(k * k * Cin, Cout).astype(dtype)

    w1 = params["fc1"].reshape(128, 32, 4, 4)                # (out, c, h, w)
    w1 = w1.transpose(2, 3, 1, 0).reshape(4 * 4 * 32, 128)   # rows in (h, w, c)
    return {
        "conv1": conv_w(params["conv1"]),                # (75, 32)
        "conv2": conv_w(params["conv2"]),                # (800, 32)
        "fc1": w1.astype(dtype),                         # (512, 128)
        "fc2": params["fc2"].T.astype(dtype),            # (128, 32)
        "fc3": params["fc3"].T.astype(dtype),            # (32, 10)
    }


def forward(prep, x_nchw):
    # Cast to the MXU input dtype first (halves the transpose traffic), then
    # go NHWC once and stay NHWC (no per-layer transposes).
    x = jnp.transpose(x_nchw.astype(COMPUTE_DTYPE), (0, 2, 3, 1))  # (B,28,28,3)
    x = conv_relu_pool(x, prep["conv1"], k=5)            # (B, 12, 12, 32) bf16
    x = conv_relu_pool(x, prep["conv2"], k=5)            # (B, 4, 4, 32)   bf16
    x = x.reshape(x.shape[0], -1)                        # (B, 512) NHWC flatten
    return fused_mlp(x, prep["fc1"], prep["fc2"], prep["fc3"])   # (B, 10) f32


def reference_forward(params, x):
    """Plain-JAX f32 reference mirroring the PyTorch forward."""
    dn = ("NCHW", "OIHW", "NCHW")
    y = jax.lax.conv_general_dilated(x, params["conv1"], (1, 1), "VALID",
                                     dimension_numbers=dn)
    y = jnp.maximum(y, 0.0)
    y = jax.lax.reduce_window(y, -jnp.inf, jax.lax.max, (1, 1, 2, 2),
                              (1, 1, 2, 2), "VALID")
    y = jax.lax.conv_general_dilated(y, params["conv2"], (1, 1), "VALID",
                                     dimension_numbers=dn)
    y = jnp.maximum(y, 0.0)
    y = jax.lax.reduce_window(y, -jnp.inf, jax.lax.max, (1, 1, 2, 2),
                              (1, 1, 2, 2), "VALID")
    y = y.reshape(y.shape[0], -1)
    y = jnp.maximum(y @ params["fc1"].T, 0.0)
    y = jnp.maximum(y @ params["fc2"].T, 0.0)
    return y @ params["fc3"].T


if __name__ == "__main__":
    key = jax.random.PRNGKey(0)
    pkey, xkey = jax.random.split(key)
    params = init_params(pkey)
    prep = prepare_params(params)
    x = jax.random.normal(xkey, (2, 3, 28, 28), jnp.float32)

    out = jax.block_until_ready(jax.jit(forward)(prep, x))
    assert out.shape == (2, 10), out.shape

    ref = jax.block_until_ready(reference_forward(params, x))
    max_err = float(jnp.max(jnp.abs(out - ref)))
    # bf16 MXU inputs with f32 accumulation -> loosened tolerance vs f32 ref.
    assert jnp.allclose(out, ref, rtol=2e-2, atol=2e-2), max_err

    print("KERNEL_OK")
</pallas_src>

<mosaic_0001>
module attributes {stable_mosaic.version = 11 : i64} {
  func.func @_conv_relu_pool_kernel(%arg0: i32, %arg1: memref<288x75xbf16, #tpu.memory_space<vmem>>, %arg2: memref<288x75xbf16, #tpu.memory_space<vmem>>, %arg3: memref<288x75xbf16, #tpu.memory_space<vmem>>, %arg4: memref<288x75xbf16, #tpu.memory_space<vmem>>, %arg5: memref<75x32xbf16, #tpu.memory_space<vmem>>, %arg6: memref<288x32xbf16, #tpu.memory_space<vmem>>) attributes {dimension_semantics = [#tpu.dimension_semantics<parallel>], iteration_bounds = array<i64: 1>, scalar_prefetch = 0 : i64, scratch_operands = 0 : i64, tpu.core_type = #tpu.core_type<tc>, window_params = [{transform_indices = @transform_0, window_bounds = array<i64: 288, 75>}, {transform_indices = @transform_1, window_bounds = array<i64: 288, 75>}, {transform_indices = @transform_2, window_bounds = array<i64: 288, 75>}, {transform_indices = @transform_3, window_bounds = array<i64: 288, 75>}, {pipeline_mode = #tpu.pipeline_mode<synchronous>, transform_indices = @transform_4, window_bounds = array<i64: 75, 32>}, {transform_indices = @transform_5, window_bounds = array<i64: 288, 32>}]} {
    %c0 = arith.constant 0 : index
    %c0_0 = arith.constant 0 : index
    %0 = vector.load %arg5[%c0, %c0_0] : memref<75x32xbf16, #tpu.memory_space<vmem>>, vector<75x32xbf16>
    %c0_1 = arith.constant 0 : index
    %c0_2 = arith.constant 0 : index
    %1 = vector.load %arg1[%c0_1, %c0_2] : memref<288x75xbf16, #tpu.memory_space<vmem>>, vector<288x75xbf16>
    %cst = arith.constant dense<0.000000e+00> : vector<288x32xf32>
    %2 = tpu.matmul %1, %0, %cst {dimension_numbers = #tpu.dot_dimension_numbers<[1], [0], [0], [1], [0, 0, 1, 1], [], []>} : vector<288x75xbf16>, vector<75x32xbf16>, vector<288x32xf32> -> vector<288x32xf32>
    %c0_3 = arith.constant 0 : index
    %c0_4 = arith.constant 0 : index
    %3 = vector.load %arg2[%c0_3, %c0_4] : memref<288x75xbf16, #tpu.memory_space<vmem>>, vector<288x75xbf16>
    %cst_5 = arith.constant dense<0.000000e+00> : vector<288x32xf32>
    %4 = tpu.matmul %3, %0, %cst_5 {dimension_numbers = #tpu.dot_dimension_numbers<[1], [0], [0], [1], [0, 0, 1, 1], [], []>} : vector<288x75xbf16>, vector<75x32xbf16>, vector<288x32xf32> -> vector<288x32xf32>
    %c0_6 = arith.constant 0 : index
    %c0_7 = arith.constant 0 : index
    %5 = vector.load %arg3[%c0_6, %c0_7] : memref<288x75xbf16, #tpu.memory_space<vmem>>, vector<288x75xbf16>
    %cst_8 = arith.constant dense<0.000000e+00> : vector<288x32xf32>
    %6 = tpu.matmul %5, %0, %cst_8 {dimension_numbers = #tpu.dot_dimension_numbers<[1], [0], [0], [1], [0, 0, 1, 1], [], []>} : vector<288x75xbf16>, vector<75x32xbf16>, vector<288x32xf32> -> vector<288x32xf32>
    %c0_9 = arith.constant 0 : index
    %c0_10 = arith.constant 0 : index
    %7 = vector.load %arg4[%c0_9, %c0_10] : memref<288x75xbf16, #tpu.memory_space<vmem>>, vector<288x75xbf16>
    %cst_11 = arith.constant dense<0.000000e+00> : vector<288x32xf32>
    %8 = tpu.matmul %7, %0, %cst_11 {dimension_numbers = #tpu.dot_dimension_numbers<[1], [0], [0], [1], [0, 0, 1, 1], [], []>} : vector<288x75xbf16>, vector<75x32xbf16>, vector<288x32xf32> -> vector<288x32xf32>
    %9 = arith.maximumf %2, %4 : vector<288x32xf32>
    %10 = arith.maximumf %6, %8 : vector<288x32xf32>
    %11 = arith.maximumf %9, %10 : vector<288x32xf32>
    %cst_12 = arith.constant 0.000000e+00 : f32
    %12 = vector.broadcast %cst_12 : f32 to vector<288x32xf32>
    %13 = arith.maximumf %11, %12 : vector<288x32xf32>
    %14 = arith.truncf %13 : vector<288x32xf32> to vector<288x32xbf16>
    %c0_13 = arith.constant 0 : index
    %c0_14 = arith.constant 0 : index
    %15 = vector.load %arg6[%c0_13, %c0_14] : memref<288x32xbf16, #tpu.memory_space<vmem>>, vector<288x32xbf16>
    tpu.vector_store %arg6[%c0_13, %c0_14], %14 {strides = array<i32>} : memref<288x32xbf16, #tpu.memory_space<vmem>>, vector<288x32xbf16>,
    return
  }
  func.func @transform_0(%arg0: i32) -> (i32, i32) {
    %c0_i32 = arith.constant 0 : i32
    %c0_i32_0 = arith.constant 0 : i32
    return %arg0, %c0_i32 : i32, i32
  }
  func.func @transform_1(%arg0: i32) -> (i32, i32) {
    %c0_i32 = arith.constant 0 : i32
    %c0_i32_0 = arith.constant 0 : i32
    return %arg0, %c0_i32 : i32, i32
  }
  func.func @transform_2(%arg0: i32) -> (i32, i32) {
    %c0_i32 = arith.constant 0 : i32
    %c0_i32_0 = arith.constant 0 : i32
    return %arg0, %c0_i32 : i32, i32
  }
  func.func @transform_3(%arg0: i32) -> (i32, i32) {
    %c0_i32 = arith.constant 0 : i32
    %c0_i32_0 = arith.constant 0 : i32
    return %arg0, %c0_i32 : i32, i32
  }
  func.func @transform_4(%arg0: i32) -> (i32, i32) {
    %c0_i32 = arith.constant 0 : i32
    %c0_i32_0 = arith.constant 0 : i32
    %c0_i32_1 = arith.constant 0 : i32
    return %c0_i32, %c0_i32_0 : i32, i32
  }
  func.func @transform_5(%arg0: i32) -> (i32, i32) {
    %c0_i32 = arith.constant 0 : i32
    %c0_i32_0 = arith.constant 0 : i32
    return %arg0, %c0_i32 : i32, i32
  }
}

module attributes {stable_mosaic.version = 11 : i64} {
  func.func @_conv_relu_pool_kernel(%arg0: i32, %arg1: memref<32x800xbf16, #tpu.memory_space<vmem>>, %arg2: memref<32x800xbf16, #tpu.memory_space<vmem>>, %arg3: memref<32x800xbf16, #tpu.memory_space<vmem>>, %arg4: memref<32x800xbf16, #tpu.memory_space<vmem>>, %arg5: memref<800x32xbf16, #tpu.memory_space<vmem>>, %arg6: memref<32x32xbf16, #tpu.memory_space<vmem>>) attributes {dimension_semantics = [#tpu.dimension_semantics<parallel>], iteration_bounds = array<i64: 1>, scalar_prefetch = 0 : i64, scratch_operands = 0 : i64, tpu.core_type = #tpu.core_type<tc>, window_params = [{transform_indices = @transform_0, window_bounds = array<i64: 32, 800>}, {transform_indices = @transform_1, window_bounds = array<i64: 32, 800>}, {transform_indices = @transform_2, window_bounds = array<i64: 32, 800>}, {transform_indices = @transform_3, window_bounds = array<i64: 32, 800>}, {pipeline_mode = #tpu.pipeline_mode<synchronous>, transform_indices = @transform_4, window_bounds = array<i64: 800, 32>}, {transform_indices = @transform_5, window_bounds = array<i64: 32, 32>}]} {
    %c0 = arith.constant 0 : index
    %c0_0 = arith.constant 0 : index
    %0 = vector.load %arg5[%c0, %c0_0] : memref<800x32xbf16, #tpu.memory_space<vmem>>, vector<800x32xbf16>
    %c0_1 = arith.constant 0 : index
    %c0_2 = arith.constant 0 : index
    %1 = vector.load %arg1[%c0_1, %c0_2] : memref<32x800xbf16, #tpu.memory_space<vmem>>, vector<32x800xbf16>
    %cst = arith.constant dense<0.000000e+00> : vector<32x32xf32>
    %2 = tpu.matmul %1, %0, %cst {dimension_numbers = #tpu.dot_dimension_numbers<[1], [0], [0], [1], [0, 0, 1, 1], [], []>} : vector<32x800xbf16>, vector<800x32xbf16>, vector<32x32xf32> -> vector<32x32xf32>
    %c0_3 = arith.constant 0 : index
    %c0_4 = arith.constant 0 : index
    %3 = vector.load %arg2[%c0_3, %c0_4] : memref<32x800xbf16, #tpu.memory_space<vmem>>, vector<32x800xbf16>
    %cst_5 = arith.constant dense<0.000000e+00> : vector<32x32xf32>
    %4 = tpu.matmul %3, %0, %cst_5 {dimension_numbers = #tpu.dot_dimension_numbers<[1], [0], [0], [1], [0, 0, 1, 1], [], []>} : vector<32x800xbf16>, vector<800x32xbf16>, vector<32x32xf32> -> vector<32x32xf32>
    %c0_6 = arith.constant 0 : index
    %c0_7 = arith.constant 0 : index
    %5 = vector.load %arg3[%c0_6, %c0_7] : memref<32x800xbf16, #tpu.memory_space<vmem>>, vector<32x800xbf16>
    %cst_8 = arith.constant dense<0.000000e+00> : vector<32x32xf32>
    %6 = tpu.matmul %5, %0, %cst_8 {dimension_numbers = #tpu.dot_dimension_numbers<[1], [0], [0], [1], [0, 0, 1, 1], [], []>} : vector<32x800xbf16>, vector<800x32xbf16>, vector<32x32xf32> -> vector<32x32xf32>
    %c0_9 = arith.constant 0 : index
    %c0_10 = arith.constant 0 : index
    %7 = vector.load %arg4[%c0_9, %c0_10] : memref<32x800xbf16, #tpu.memory_space<vmem>>, vector<32x800xbf16>
    %cst_11 = arith.constant dense<0.000000e+00> : vector<32x32xf32>
    %8 = tpu.matmul %7, %0, %cst_11 {dimension_numbers = #tpu.dot_dimension_numbers<[1], [0], [0], [1], [0, 0, 1, 1], [], []>} : vector<32x800xbf16>, vector<800x32xbf16>, vector<32x32xf32> -> vector<32x32xf32>
    %9 = arith.maximumf %2, %4 : vector<32x32xf32>
    %10 = arith.maximumf %6, %8 : vector<32x32xf32>
    %11 = arith.maximumf %9, %10 : vector<32x32xf32>
    %cst_12 = arith.constant 0.000000e+00 : f32
    %12 = vector.broadcast %cst_12 : f32 to vector<32x32xf32>
    %13 = arith.maximumf %11, %12 : vector<32x32xf32>
    %14 = arith.truncf %13 : vector<32x32xf32> to vector<32x32xbf16>
    %c0_13 = arith.constant 0 : index
    %c0_14 = arith.constant 0 : index
    %15 = vector.load %arg6[%c0_13, %c0_14] : memref<32x32xbf16, #tpu.memory_space<vmem>>, vector<32x32xbf16>
    tpu.vector_store %arg6[%c0_13, %c0_14], %14 {strides = array<i32>} : memref<32x32xbf16, #tpu.memory_space<vmem>>, vector<32x32xbf16>,
    return
  }
  func.func @transform_0(%arg0: i32) -> (i32, i32) {
    %c0_i32 = arith.constant 0 : i32
    %c0_i32_0 = arith.constant 0 : i32
    return %arg0, %c0_i32 : i32, i32
  }
  func.func @transform_1(%arg0: i32) -> (i32, i32) {
    %c0_i32 = arith.constant 0 : i32
    %c0_i32_0 = arith.constant 0 : i32
    return %arg0, %c0_i32 : i32, i32
  }
  func.func @transform_2(%arg0: i32) -> (i32, i32) {
    %c0_i32 = arith.constant 0 : i32
    %c0_i32_0 = arith.constant 0 : i32
    return %arg0, %c0_i32 : i32, i32
  }
  func.func @transform_3(%arg0: i32) -> (i32, i32) {
    %c0_i32 = arith.constant 0 : i32
    %c0_i32_0 = arith.constant 0 : i32
    return %arg0, %c0_i32 : i32, i32
  }
  func.func @transform_4(%arg0: i32) -> (i32, i32) {
    %c0_i32 = arith.constant 0 : i32
    %c0_i32_0 = arith.constant 0 : i32
    %c0_i32_1 = arith.constant 0 : i32
    return %c0_i32, %c0_i32_0 : i32, i32
  }
  func.func @transform_5(%arg0: i32) -> (i32, i32) {
    %c0_i32 = arith.constant 0 : i32
    %c0_i32_0 = arith.constant 0 : i32
    return %arg0, %c0_i32 : i32, i32
  }
}

module attributes {stable_mosaic.version = 11 : i64} {
  func.func @_mlp_kernel(%arg0: i32, %arg1: memref<2x512xbf16, #tpu.memory_space<vmem>>, %arg2: memref<512x128xbf16, #tpu.memory_space<vmem>>, %arg3: memref<128x32xbf16, #tpu.memory_space<vmem>>, %arg4: memref<32x10xbf16, #tpu.memory_space<vmem>>, %arg5: memref<2x10xf32, #tpu.memory_space<vmem>>) attributes {dimension_semantics = [#tpu.dimension_semantics<parallel>], iteration_bounds = array<i64: 1>, scalar_prefetch = 0 : i64, scratch_operands = 0 : i64, tpu.core_type = #tpu.core_type<tc>, window_params = [{transform_indices = @transform_0, window_bounds = array<i64: 2, 512>}, {pipeline_mode = #tpu.pipeline_mode<synchronous>, transform_indices = @transform_1, window_bounds = array<i64: 512, 128>}, {pipeline_mode = #tpu.pipeline_mode<synchronous>, transform_indices = @transform_2, window_bounds = array<i64: 128, 32>}, {pipeline_mode = #tpu.pipeline_mode<synchronous>, transform_indices = @transform_3, window_bounds = array<i64: 32, 10>}, {transform_indices = @transform_4, window_bounds = array<i64: 2, 10>}]} {
    %c0 = arith.constant 0 : index
    %c0_0 = arith.constant 0 : index
    %0 = vector.load %arg1[%c0, %c0_0] : memref<2x512xbf16, #tpu.memory_space<vmem>>, vector<2x512xbf16>
    %c0_1 = arith.constant 0 : index
    %c0_2 = arith.constant 0 : index
    %1 = vector.load %arg2[%c0_1, %c0_2] : memref<512x128xbf16, #tpu.memory_space<vmem>>, vector<512x128xbf16>
    %cst = arith.constant dense<0.000000e+00> : vector<2x128xf32>
    %2 = tpu.matmul %0, %1, %cst {dimension_numbers = #tpu.dot_dimension_numbers<[1], [0], [0], [1], [0, 0, 1, 1], [], []>} : vector<2x512xbf16>, vector<512x128xbf16>, vector<2x128xf32> -> vector<2x128xf32>
    %cst_3 = arith.constant 0.000000e+00 : f32
    %3 = vector.broadcast %cst_3 : f32 to vector<2x128xf32>
    %4 = arith.maximumf %2, %3 : vector<2x128xf32>
    %5 = arith.truncf %4 : vector<2x128xf32> to vector<2x128xbf16>
    %c0_4 = arith.constant 0 : index
    %c0_5 = arith.constant 0 : index
    %6 = vector.load %arg3[%c0_4, %c0_5] : memref<128x32xbf16, #tpu.memory_space<vmem>>, vector<128x32xbf16>
    %cst_6 = arith.constant dense<0.000000e+00> : vector<2x32xf32>
    %7 = tpu.matmul %5, %6, %cst_6 {dimension_numbers = #tpu.dot_dimension_numbers<[1], [0], [0], [1], [0, 0, 1, 1], [], []>} : vector<2x128xbf16>, vector<128x32xbf16>, vector<2x32xf32> -> vector<2x32xf32>
    %cst_7 = arith.constant 0.000000e+00 : f32
    %8 = vector.broadcast %cst_7 : f32 to vector<2x32xf32>
    %9 = arith.maximumf %7, %8 : vector<2x32xf32>
    %10 = arith.truncf %9 : vector<2x32xf32> to vector<2x32xbf16>
    %c0_8 = arith.constant 0 : index
    %c0_9 = arith.constant 0 : index
    %11 = vector.load %arg4[%c0_8, %c0_9] : memref<32x10xbf16, #tpu.memory_space<vmem>>, vector<32x10xbf16>
    %cst_10 = arith.constant dense<0.000000e+00> : vector<2x10xf32>
    %12 = tpu.matmul %10, %11, %cst_10 {dimension_numbers = #tpu.dot_dimension_numbers<[1], [0], [0], [1], [0, 0, 1, 1], [], []>} : vector<2x32xbf16>, vector<32x10xbf16>, vector<2x10xf32> -> vector<2x10xf32>
    %c0_11 = arith.constant 0 : index
    %c0_12 = arith.constant 0 : index
    %13 = vector.load %arg5[%c0_11, %c0_12] : memref<2x10xf32, #tpu.memory_space<vmem>>, vector<2x10xf32>
    tpu.vector_store %arg5[%c0_11, %c0_12], %12 {strides = array<i32>} : memref<2x10xf32, #tpu.memory_space<vmem>>, vector<2x10xf32>,
    return
  }
  func.func @transform_0(%arg0: i32) -> (i32, i32) {
    %c0_i32 = arith.constant 0 : i32
    %c0_i32_0 = arith.constant 0 : i32
    return %arg0, %c0_i32 : i32, i32
  }
  func.func @transform_1(%arg0: i32) -> (i32, i32) {
    %c0_i32 = arith.constant 0 : i32
    %c0_i32_0 = arith.constant 0 : i32
    %c0_i32_1 = arith.constant 0 : i32
    return %c0_i32, %c0_i32_0 : i32, i32
  }
  func.func @transform_2(%arg0: i32) -> (i32, i32) {
    %c0_i32 = arith.constant 0 : i32
    %c0_i32_0 = arith.constant 0 : i32
    %c0_i32_1 = arith.constant 0 : i32
    return %c0_i32, %c0_i32_0 : i32, i32
  }
  func.func @transform_3(%arg0: i32) -> (i32, i32) {
    %c0_i32 = arith.constant 0 : i32
    %c0_i32_0 = arith.constant 0 : i32
    %c0_i32_1 = arith.constant 0 : i32
    return %c0_i32, %c0_i32_0 : i32, i32
  }
  func.func @transform_4(%arg0: i32) -> (i32, i32) {
    %c0_i32 = arith.constant 0 : i32
    %c0_i32_0 = arith.constant 0 : i32
    return %arg0, %c0_i32 : i32, i32
  }
}

</mosaic_0001>

<llo_original>
// kernel: forward.3
$region0: #{forward.3}
  #allocation0 [shape = 'u32[]', space=smem, size = 0x4, offset = 0x4, fixed_abs, tag = 'smem constant byte address 0x4 - core index']
  #allocation1 [shape = 'u32[144,128]{1,0:T(1,128)}', space=vmem, size = 0x12000, scoped, tag = 'internal scratch']
  %s0 = inlined_call_operand.vmem [shape: bf16[288,75], index: 0, kind: input, shape index: {}]
  %s1 = inlined_call_operand.vmem [shape: bf16[288,75], index: 1, kind: input, shape index: {}]
  %s2 = inlined_call_operand.vmem [shape: bf16[288,75], index: 2, kind: input, shape index: {}]
  %s3 = inlined_call_operand.vmem [shape: bf16[288,75], index: 3, kind: input, shape index: {}]
  %s4 = inlined_call_operand.vmem [shape: bf16[75,32], index: 4, kind: input, shape index: {}]
  %s5 = inlined_call_operand.vmem [shape: bf16[288,32], index: 5, kind: output, shape index: {}]
  %s6 = sld [smem:[#allocation0]]
  $region30: #{forward.3} parent=0
    _
  %s8 = ssub.s32 1, %s6
  %s9 = scalar_select 0, %s8, %s6
  // Predicated region
  $region2: #{forward.3} parent=0 // pred_check
    _
  $region3: #{forward.3} parent=0 // pred_check_branch
    %11 = sbr.rel (0) target = $region5
  $region4: #{forward.3} parent=0 // pred_region
    _
  $region5: #{forward.3} parent=0 // pred_fallthru
    _
  // Predicated region
  $region6: #{forward.3} parent=0 // pred_check
    _
  $region7: #{forward.3} parent=0 // pred_check_branch
    %13 = sbr.rel (0) target = $region9
  $region8: #{forward.3} parent=0 // pred_region
    _
  $region9: #{forward.3} parent=0 // pred_fallthru
    _
  // Predicated region
  $region10: #{forward.3} parent=0 // pred_check
    _
  $region11: #{forward.3} parent=0 // pred_check_branch
    %15 = sbr.rel (0) target = $region13
  $region12: #{forward.3} parent=0 // pred_region
    _
  $region13: #{forward.3} parent=0 // pred_fallthru
    _
  // Predicated region
  $region14: #{forward.3} parent=0 // pred_check
    _
  $region15: #{forward.3} parent=0 // pred_check_branch
    %17 = sbr.rel (0) target = $region17
  $region16: #{forward.3} parent=0 // pred_region
    _
  $region17: #{forward.3} parent=0 // pred_fallthru
    _
  // Predicated region
  $region18: #{forward.3} parent=0 // pred_check
    _
  $region19: #{forward.3} parent=0 // pred_check_branch
    %19 = sbr.rel (0) target = $region21
  $region20: #{forward.3} parent=0 // pred_region
    _
  $region21: #{forward.3} parent=0 // pred_fallthru
    _
  %v21 = vld [vmem:[%s4] sm:$0xf]
  %v22 = vld [vmem:[%s4 + $0x4] sm:$0xf]
  %v23 = vld [vmem:[%s4 + $0x8] sm:$0xf]
  %v24 = vld [vmem:[%s4 + $0xc] sm:$0xf]
  %v25 = vld [vmem:[%s4 + $0x10] sm:$0xf]
  %v26 = vld [vmem:[%s4 + $0x14] sm:$0xf]
  %v27 = vld [vmem:[%s4 + $0x18] sm:$0xf]
  %v28 = vld [vmem:[%s4 + $0x1c] sm:$0xf]
  %v29 = vld [vmem:[%s4 + $0x20] sm:$0xf]
  %v30 = vld [vmem:[%s4 + $0x24] sm:$0x3]
  %v31 = vld [vmem:[%s0] sm:$0xf]
  %v32 = vld [vmem:[%s0 + $0x4] sm:$0xf]
  %v33 = vld [vmem:[%s0 + $0x8] sm:$0xf]
  %v34 = vld [vmem:[%s0 + $0xc] sm:$0xf]
  %v35 = vld [vmem:[%s0 + $0x10] sm:$0xf]
  %v36 = vld [vmem:[%s0 + $0x14] sm:$0xf]
  %v37 = vld [vmem:[%s0 + $0x18] sm:$0xf]
  %v38 = vld [vmem:[%s0 + $0x1c] sm:$0xf]
  %v39 = vld [vmem:[%s0 + $0x20] sm:$0xf]
  %v40 = vld [vmem:[%s0 + $0x24] sm:$0xf]
  %v41 = vld [vmem:[%s0 + $0x28] sm:$0xf]
  %v42 = vld [vmem:[%s0 + $0x2c] sm:$0xf]
  %v43 = vld [vmem:[%s0 + $0x30] sm:$0xf]
  %v44 = vld [vmem:[%s0 + $0x34] sm:$0xf]
  %v45 = vld [vmem:[%s0 + $0x38] sm:$0xf]
  %v46 = vld [vmem:[%s0 + $0x3c] sm:$0xf]
  %v47 = vld [vmem:[%s0 + $0x40] sm:$0xf]
  %v48 = vld [vmem:[%s0 + $0x44] sm:$0xf]
  %v49 = vld [vmem:[%s0 + $0x48] sm:$0xf]
  %v50 = vld [vmem:[%s0 + $0x4c] sm:$0xf]
  %v51 = vld [vmem:[%s0 + $0x50] sm:$0xf]
  %v52 = vld [vmem:[%s0 + $0x54] sm:$0xf]
  %v53 = vld [vmem:[%s0 + $0x58] sm:$0xf]
  %v54 = vld [vmem:[%s0 + $0x5c] sm:$0xf]
  %v55 = vld [vmem:[%s0 + $0x60] sm:$0xf]
  %v56 = vld [vmem:[%s0 + $0x64] sm:$0xf]
  %v57 = vld [vmem:[%s0 + $0x68] sm:$0xf]
  %v58 = vld [vmem:[%s0 + $0x6c] sm:$0xf]
  %v59 = vld [vmem:[%s0 + $0x70] sm:$0xf]
  %v60 = vld [vmem:[%s0 + $0x74] sm:$0xf]
  %v61 = vld [vmem:[%s0 + $0x78] sm:$0xf]
  %v62 = vld [vmem:[%s0 + $0x7c] sm:$0xf]
  %v63 = vld [vmem:[%s0 + $0x80] sm:$0xf]
  %v64 = vld [vmem:[%s0 + $0x84] sm:$0xf]
  %v65 = vld [vmem:[%s0 + $0x88] sm:$0xf]
  %v66 = vld [vmem:[%s0 + $0x8c] sm:$0xf]
  %v103 = vunpack.c.l.b16 %v31
  %v104 = vunpack.c.l.b16 %v32
  %v105 = vunpack.c.l.b16 %v33
  %v106 = vunpack.c.l.b16 %v34
  %v107 = vunpack.c.l.b16 %v35
  %v108 = vunpack.c.l.b16 %v36
  %v109 = vunpack.c.l.b16 %v37
  %v110 = vunpack.c.l.b16 %v38
  %v111 = vunpack.c.l.b16 %v39
  %v112 = vunpack.c.l.b16 %v40
  %v113 = vunpack.c.l.b16 %v41
  %v114 = vunpack.c.l.b16 %v42
  %v115 = vunpack.c.l.b16 %v43
  %v116 = vunpack.c.l.b16 %v44
  %v117 = vunpack.c.l.b16 %v45
  %v118 = vunpack.c.l.b16 %v46
  %v119 = vunpack.c.l.b16 %v47
  %v120 = vunpack.c.l.b16 %v48
  %v121 = vunpack.c.l.b16 %v49
  %v122 = vunpack.c.l.b16 %v50
  %v123 = vunpack.c.l.b16 %v51
  %v124 = vunpack.c.l.b16 %v52
  %v125 = vunpack.c.l.b16 %v53
  %v126 = vunpack.c.l.b16 %v54
  %v127 = vunpack.c.l.b16 %v55
  %v128 = vunpack.c.l.b16 %v56
  %v129 = vunpack.c.l.b16 %v57
  %v130 = vunpack.c.l.b16 %v58
  %v131 = vunpack.c.l.b16 %v59
  %v132 = vunpack.c.l.b16 %v60
  %v133 = vunpack.c.l.b16 %v61
  %v134 = vunpack.c.l.b16 %v62
  %v135 = vunpack.c.l.b16 %v63
  %v136 = vunpack.c.l.b16 %v64
  %v137 = vunpack.c.l.b16 %v65
  %v138 = vunpack.c.l.b16 %v66
  %v139 = vpack.c.b16 %v104, %v103
  %v140 = vpack.c.b16 %v106, %v105
  %v141 = vpack.c.b16 %v108, %v107
  %v142 = vpack.c.b16 %v110, %v109
  %v143 = vpack.c.b16 %v112, %v111
  %v144 = vpack.c.b16 %v114, %v113
  %v145 = vpack.c.b16 %v116, %v115
  %v146 = vpack.c.b16 %v118, %v117
  %v147 = vpack.c.b16 %v120, %v119
  %v148 = vpack.c.b16 %v122, %v121
  %v149 = vpack.c.b16 %v124, %v123
  %v150 = vpack.c.b16 %v126, %v125
  %v151 = vpack.c.b16 %v128, %v127
  %v152 = vpack.c.b16 %v130, %v129
  %v153 = vpack.c.b16 %v132, %v131
  %v154 = vpack.c.b16 %v134, %v133
  %v155 = vpack.c.b16 %v136, %v135
  %v156 = vpack.c.b16 %v138, %v137
  %v167 = vunpack.c.l.b16 %v21
  %v168 = vunpack.c.l.b16 %v22
  %v169 = vunpack.c.l.b16 %v23
  %v170 = vunpack.c.l.b16 %v24
  %v171 = vunpack.c.l.b16 %v25
  %v172 = vunpack.c.l.b16 %v26
  %v173 = vunpack.c.l.b16 %v27
  %v174 = vunpack.c.l.b16 %v28
  %v175 = vunpack.c.l.b16 %v29
  %v176 = vunpack.c.l.b16 %v30
  %v177 = vpack.c.b16 %v168, %v167
  %v178 = vpack.c.b16 %v170, %v169
  %v179 = vpack.c.b16 %v172, %v171
  %v180 = vpack.c.b16 %v174, %v173
  %v181 = vpack.c.b16 %v176, %v175
  %vm186 = vcmask 613376
  %v188 = vsel %vm186, %v139, 0
  %v191 = vsel %vm186, %v140, 0
  %v194 = vsel %vm186, %v141, 0
  %v197 = vsel %vm186, %v142, 0
  %v200 = vsel %vm186, %v143, 0
  %v203 = vsel %vm186, %v144, 0
  %v206 = vsel %vm186, %v145, 0
  %v209 = vsel %vm186, %v146, 0
  %v212 = vsel %vm186, %v147, 0
  %v215 = vsel %vm186, %v148, 0
  %v218 = vsel %vm186, %v149, 0
  %v221 = vsel %vm186, %v150, 0
  %v224 = vsel %vm186, %v151, 0
  %v227 = vsel %vm186, %v152, 0
  %v230 = vsel %vm186, %v153, 0
  %v233 = vsel %vm186, %v154, 0
  %v236 = vsel %vm186, %v155, 0
  %v239 = vsel %vm186, %v156, 0
  %vm241 = vcmask 1044480
  %vm242 = vcmask 1045504
  %v243 = vsel %vm241, 4294967295, 65535
  %v244 = vsel %vm242, %v243, 0
  %v246 = vand.u32 %v181, %v244
  %248 = vmatprep.subr.bf16.mxu0 0
  %249 = vmatpush1.bf16.msra.mxu0 %v177
  %250 = vmatprep.subr.bf16.mxu0 0
  %251 = vmatpush1.bf16.msra.mxu0 %v178
  %252 = vmatprep.subr.bf16.mxu0 0
  %253 = vmatpush1.bf16.msra.mxu0 %v179
  %254 = vmatprep.subr.bf16.mxu0 0
  %255 = vmatpush1.bf16.msra.mxu0 %v180
  %256 = vmatprep.subr.bf16.mxu0 0
  %257 = vmatpush1.bf16.msra.mxu0 %v246
  %258 = vmatprep.subr.bf16.mxu0 0
  %259 = vmatpush1.bf16.msra.mxu0 0
  %260 = vmatprep.subr.bf16.mxu0 0
  %261 = vmatpush1.bf16.msra.mxu0 0
  %262 = vmatprep.subr.bf16.mxu0 0
  %263 = vmatpush1.bf16.msra.mxu0 0
  %264 = vmatprep.subr.bf16.mxu0 0
  %265 = vmatpush1.bf16.msra.mxu0 0
  %266 = vmatprep.subr.bf16.mxu0 0
  %267 = vmatpush1.bf16.msra.mxu0 0
  %268 = vmatprep.subr.bf16.mxu0 0
  %269 = vmatpush1.bf16.msra.mxu0 0
  %270 = vmatprep.subr.bf16.mxu0 0
  %271 = vmatpush1.bf16.msra.mxu0 0
  %272 = vmatprep.subr.bf16.mxu0 0
  %273 = vmatpush1.bf16.msra.mxu0 0
  %274 = vmatprep.subr.bf16.mxu0 0
  %275 = vmatpush1.bf16.msra.mxu0 0
  %276 = vmatprep.subr.bf16.mxu0 0
  %277 = vmatpush1.bf16.msra.mxu0 0
  %278 = vmatprep.subr.bf16.mxu0 0
  %279 = vmatpush1.bf16.msra.mxu0 0
  %280 = vmatprep.mubr.bf16.mxu0 0
  %281 = vmatmul.mubr.bf16.gmra.mrb[0].mxu0 %v188
  %v282 = vpop.f32.mrb[0].mxu0
  %v283 = vadd.f32 0.0, %v282
  %v284 = vpop.f32.mrb[0].mxu0
  %v285 = vpop.f32.mrb[0].mxu0
  %v286 = vadd.f32 0.0, %v285
  %v287 = vpop.f32.mrb[0].mxu0
  %288 = vmatprep.mubr.bf16.mxu0 0
  %289 = vmatmul.mubr.bf16.gmra.mrb[0].mxu0 %v191
  %v290 = vpop.f32.mrb[0].mxu0
  %v291 = vadd.f32 0.0, %v290
  %v292 = vpop.f32.mrb[0].mxu0
  %v293 = vpop.f32.mrb[0].mxu0
  %v294 = vadd.f32 0.0, %v293
  %v295 = vpop.f32.mrb[0].mxu0
  %296 = vmatprep.mubr.bf16.mxu0 0
  %297 = vmatmul.mubr.bf16.gmra.mrb[0].mxu0 %v194
  %v298 = vpop.f32.mrb[0].mxu0
  %v299 = vadd.f32 0.0, %v298
  %v300 = vpop.f32.mrb[0].mxu0
  %v301 = vpop.f32.mrb[0].mxu0
  %v302 = vadd.f32 0.0, %v301
  %v303 = vpop.f32.mrb[0].mxu0
  %304 = vmatprep.mubr.bf16.mxu0 0
  %305 = vmatmul.mubr.bf16.gmra.mrb[0].mxu0 %v197
  %v306 = vpop.f32.mrb[0].mxu0
  %v307 = vadd.f32 0.0, %v306
  %v308 = vpop.f32.mrb[0].mxu0
  %v309 = vpop.f32.mrb[0].mxu0
  %v310 = vadd.f32 0.0, %v309
  %v311 = vpop.f32.mrb[0].mxu0
  %312 = vmatprep.mubr.bf16.mxu0 0
  %313 = vmatmul.mubr.bf16.gmra.mrb[0].mxu0 %v200
  %v314 = vpop.f32.mrb[0].mxu0
  %v315 = vadd.f32 0.0, %v314
  %v316 = vpop.f32.mrb[0].mxu0
  %v317 = vpop.f32.mrb[0].mxu0
  %v318 = vadd.f32 0.0, %v317
  %v319 = vpop.f32.mrb[0].mxu0
  %320 = vmatprep.mubr.bf16.mxu0 0
  %321 = vmatmul.mubr.bf16.gmra.mrb[0].mxu0 %v203
  %v322 = vpop.f32.mrb[0].mxu0
  %v323 = vadd.f32 0.0, %v322
  %v324 = vpop.f32.mrb[0].mxu0
  %v325 = vpop.f32.mrb[0].mxu0
  %v326 = vadd.f32 0.0, %v325
  %v327 = vpop.f32.mrb[0].mxu0
  %328 = vmatprep.mubr.bf16.mxu0 0
  %329 = vmatmul.mubr.bf16.gmra.mrb[0].mxu0 %v206
  %v330 = vpop.f32.mrb[0].mxu0
  %v331 = vadd.f32 0.0, %v330
  %v332 = vpop.f32.mrb[0].mxu0
  %v333 = vpop.f32.mrb[0].mxu0
  %v334 = vadd.f32 0.0, %v333
  %v335 = vpop.f32.mrb[0].mxu0
  %336 = vmatprep.mubr.bf16.mxu0 0
  %337 = vmatmul.mubr.bf16.gmra.mrb[0].mxu0 %v209
  %v338 = vpop.f32.mrb[0].mxu0
  %v339 = vadd.f32 0.0, %v338
  %v340 = vpop.f32.mrb[0].mxu0
  %v341 = vpop.f32.mrb[0].mxu0
  %v342 = vadd.f32 0.0, %v341
  %v343 = vpop.f32.mrb[0].mxu0
  %344 = vmatprep.mubr.bf16.mxu0 0
  %345 = vmatmul.mubr.bf16.gmra.mrb[0].mxu0 %v212
  %v346 = vpop.f32.mrb[0].mxu0
  %v347 = vadd.f32 0.0, %v346
  %v348 = vpop.f32.mrb[0].mxu0
  %v349 = vpop.f32.mrb[0].mxu0
  %v350 = vadd.f32 0.0, %v349
  %v351 = vpop.f32.mrb[0].mxu0
  %352 = vmatprep.mubr.bf16.mxu0 0
  %353 = vmatmul.mubr.bf16.gmra.mrb[0].mxu0 %v215
  %v354 = vpop.f32.mrb[0].mxu0
  %v355 = vadd.f32 0.0, %v354
  %v356 = vpop.f32.mrb[0].mxu0
  %v357 = vpop.f32.mrb[0].mxu0
  %v358 = vadd.f32 0.0, %v357
  %v359 = vpop.f32.mrb[0].mxu0
  %360 = vmatprep.mubr.bf16.mxu0 0
  %361 = vmatmul.mubr.bf16.gmra.mrb[0].mxu0 %v218
  %v362 = vpop.f32.mrb[0].mxu0
  %v363 = vadd.f32 0.0, %v362
  %v364 = vpop.f32.mrb[0].mxu0
  %v365 = vpop.f32.mrb[0].mxu0
  %v366 = vadd.f32 0.0, %v365
  %v367 = vpop.f32.mrb[0].mxu0
  %368 = vmatprep.mubr.bf16.mxu0 0
  %369 = vmatmul.mubr.bf16.gmra.mrb[0].mxu0 %v221
  %v370 = vpop.f32.mrb[0].mxu0
  %v371 = vadd.f32 0.0, %v370
  %v372 = vpop.f32.mrb[0].mxu0
  %v373 = vpop.f32.mrb[0].mxu0
  %v374 = vadd.f32 0.0, %v373
  %v375 = vpop.f32.mrb[0].mxu0
  %376 = vmatprep.mubr.bf16.mxu0 0
  %377 = vmatmul.mubr.bf16.gmra.mrb[0].mxu0 %v224
  %v378 = vpop.f32.mrb[0].mxu0
  %v379 = vadd.f32 0.0, %v378
  %v380 = vpop.f32.mrb[0].mxu0
  %v381 = vpop.f32.mrb[0].mxu0
  %v382 = vadd.f32 0.0, %v381
  %v383 = vpop.f32.mrb[0].mxu0
  %384 = vmatprep.mubr.bf16.mxu0 0
  %385 = vmatmul.mubr.bf16.gmra.mrb[0].mxu0 %v227
  %v386 = vpop.f32.mrb[0].mxu0
  %v387 = vadd.f32 0.0, %v386
  %v388 = vpop.f32.mrb[0].mxu0
  %v389 = vpop.f32.mrb[0].mxu0
  %v390 = vadd.f32 0.0, %v389
  %v391 = vpop.f32.mrb[0].mxu0
  %392 = vmatprep.mubr.bf16.mxu0 0
  %393 = vmatmul.mubr.bf16.gmra.mrb[0].mxu0 %v230
  %v394 = vpop.f32.mrb[0].mxu0
  %v395 = vadd.f32 0.0, %v394
  %v396 = vpop.f32.mrb[0].mxu0
  %v397 = vpop.f32.mrb[0].mxu0
  %v398 = vadd.f32 0.0, %v397
  %v399 = vpop.f32.mrb[0].mxu0
  %400 = vmatprep.mubr.bf16.mxu0 0
  %401 = vmatmul.mubr.bf16.gmra.mrb[0].mxu0 %v233
  %v402 = vpop.f32.mrb[0].mxu0
  %v403 = vadd.f32 0.0, %v402
  %v404 = vpop.f32.mrb[0].mxu0
  %v405 = vpop.f32.mrb[0].mxu0
  %v406 = vadd.f32 0.0, %v405
  %v407 = vpop.f32.mrb[0].mxu0
  %408 = vmatprep.mubr.bf16.mxu0 0
  %409 = vmatmul.mubr.bf16.gmra.mrb[0].mxu0 %v236
  %v410 = vpop.f32.mrb[0].mxu0
  %v411 = vadd.f32 0.0, %v410
  %v412 = vpop.f32.mrb[0].mxu0
  %v413 = vpop.f32.mrb[0].mxu0
  %v414 = vadd.f32 0.0, %v413
  %v415 = vpop.f32.mrb[0].mxu0
  %416 = vmatprep.mubr.bf16.mxu0 0
  %417 = vmatmul.mubr.bf16.gmra.mrb[0].mxu0 %v239
  %v418 = vpop.f32.mrb[0].mxu0
  %v419 = vadd.f32 0.0, %v418
  %v420 = vpop.f32.mrb[0].mxu0
  %v421 = vpop.f32.mrb[0].mxu0
  %v422 = vadd.f32 0.0, %v421
  %v423 = vpop.f32.mrb[0].mxu0
  %424 = vdwg.mxu0
  %v425 = vld [vmem:[%s1] sm:$0xf]
  %v426 = vld [vmem:[%s1 + $0x4] sm:$0xf]
  %v427 = vld [vmem:[%s1 + $0x8] sm:$0xf]
  %v428 = vld [vmem:[%s1 + $0xc] sm:$0xf]
  %v429 = vld [vmem:[%s1 + $0x10] sm:$0xf]
  %v430 = vld [vmem:[%s1 + $0x14] sm:$0xf]
  %v431 = vld [vmem:[%s1 + $0x18] sm:$0xf]
  %v432 = vld [vmem:[%s1 + $0x1c] sm:$0xf]
  %v433 = vld [vmem:[%s1 + $0x20] sm:$0xf]
  %v434 = vld [vmem:[%s1 + $0x24] sm:$0xf]
  %v435 = vld [vmem:[%s1 + $0x28] sm:$0xf]
  %v436 = vld [vmem:[%s1 + $0x2c] sm:$0xf]
  %v437 = vld [vmem:[%s1 + $0x30] sm:$0xf]
  %v438 = vld [vmem:[%s1 + $0x34] sm:$0xf]
  %v439 = vld [vmem:[%s1 + $0x38] sm:$0xf]
  %v440 = vld [vmem:[%s1 + $0x3c] sm:$0xf]
  %v441 = vld [vmem:[%s1 + $0x40] sm:$0xf]
  %v442 = vld [vmem:[%s1 + $0x44] sm:$0xf]
  %v443 = vld [vmem:[%s1 + $0x48] sm:$0xf]
  %v444 = vld [vmem:[%s1 + $0x4c] sm:$0xf]
  %v445 = vld [vmem:[%s1 + $0x50] sm:$0xf]
  %v446 = vld [vmem:[%s1 + $0x54] sm:$0xf]
  %v447 = vld [vmem:[%s1 + $0x58] sm:$0xf]
  %v448 = vld [vmem:[%s1 + $0x5c] sm:$0xf]
  %v449 = vld [vmem:[%s1 + $0x60] sm:$0xf]
  %v450 = vld [vmem:[%s1 + $0x64] sm:$0xf]
  %v451 = vld [vmem:[%s1 + $0x68] sm:$0xf]
  %v452 = vld [vmem:[%s1 + $0x6c] sm:$0xf]
  %v453 = vld [vmem:[%s1 + $0x70] sm:$0xf]
  %v454 = vld [vmem:[%s1 + $0x74] sm:$0xf]
  %v455 = vld [vmem:[%s1 + $0x78] sm:$0xf]
  %v456 = vld [vmem:[%s1 + $0x7c] sm:$0xf]
  %v457 = vld [vmem:[%s1 + $0x80] sm:$0xf]
  %v458 = vld [vmem:[%s1 + $0x84] sm:$0xf]
  %v459 = vld [vmem:[%s1 + $0x88] sm:$0xf]
  %v460 = vld [vmem:[%s1 + $0x8c] sm:$0xf]
  %v497 = vunpack.c.l.b16 %v425
  %v498 = vunpack.c.l.b16 %v426
  %v499 = vunpack.c.l.b16 %v427
  %v500 = vunpack.c.l.b16 %v428
  %v501 = vunpack.c.l.b16 %v429
  %v502 = vunpack.c.l.b16 %v430
  %v503 = vunpack.c.l.b16 %v431
  %v504 = vunpack.c.l.b16 %v432
  %v505 = vunpack.c.l.b16 %v433
  %v506 = vunpack.c.l.b16 %v434
  %v507 = vunpack.c.l.b16 %v435
  %v508 = vunpack.c.l.b16 %v436
  %v509 = vunpack.c.l.b16 %v437
  %v510 = vunpack.c.l.b16 %v438
  %v511 = vunpack.c.l.b16 %v439
  %v512 = vunpack.c.l.b16 %v440
  %v513 = vunpack.c.l.b16 %v441
  %v514 = vunpack.c.l.b16 %v442
  %v515 = vunpack.c.l.b16 %v443
  %v516 = vunpack.c.l.b16 %v444
  %v517 = vunpack.c.l.b16 %v445
  %v518 = vunpack.c.l.b16 %v446
  %v519 = vunpack.c.l.b16 %v447
  %v520 = vunpack.c.l.b16 %v448
  %v521 = vunpack.c.l.b16 %v449
  %v522 = vunpack.c.l.b16 %v450
  %v523 = vunpack.c.l.b16 %v451
  %v524 = vunpack.c.l.b16 %v452
  %v525 = vunpack.c.l.b16 %v453
  %v526 = vunpack.c.l.b16 %v454
  %v527 = vunpack.c.l.b16 %v455
  %v528 = vunpack.c.l.b16 %v456
  %v529 = vunpack.c.l.b16 %v457
  %v530 = vunpack.c.l.b16 %v458
  %v531 = vunpack.c.l.b16 %v459
  %v532 = vunpack.c.l.b16 %v460
  %v533 = vpack.c.b16 %v498, %v497
  %v534 = vpack.c.b16 %v500, %v499
  %v535 = vpack.c.b16 %v502, %v501
  %v536 = vpack.c.b16 %v504, %v503
  %v537 = vpack.c.b16 %v506, %v505
  %v538 = vpack.c.b16 %v508, %v507
  %v539 = vpack.c.b16 %v510, %v509
  %v540 = vpack.c.b16 %v512, %v511
  %v541 = vpack.c.b16 %v514, %v513
  %v542 = vpack.c.b16 %v516, %v515
  %v543 = vpack.c.b16 %v518, %v517
  %v544 = vpack.c.b16 %v520, %v519
  %v545 = vpack.c.b16 %v522, %v521
  %v546 = vpack.c.b16 %v524, %v523
  %v547 = vpack.c.b16 %v526, %v525
  %v548 = vpack.c.b16 %v528, %v527
  %v549 = vpack.c.b16 %v530, %v529
  %v550 = vpack.c.b16 %v532, %v531
  %v552 = vsel %vm186, %v533, 0
  %v555 = vsel %vm186, %v534, 0
  %v558 = vsel %vm186, %v535, 0
  %v561 = vsel %vm186, %v536, 0
  %v564 = vsel %vm186, %v537, 0
  %v567 = vsel %vm186, %v538, 0
  %v570 = vsel %vm186, %v539, 0
  %v573 = vsel %vm186, %v540, 0
  %v576 = vsel %vm186, %v541, 0
  %v579 = vsel %vm186, %v542, 0
  %v582 = vsel %vm186, %v543, 0
  %v585 = vsel %vm186, %v544, 0
  %v588 = vsel %vm186, %v545, 0
  %v591 = vsel %vm186, %v546, 0
  %v594 = vsel %vm186, %v547, 0
  %v597 = vsel %vm186, %v548, 0
  %v600 = vsel %vm186, %v549, 0
  %v603 = vsel %vm186, %v550, 0
  %605 = vmatprep.subr.bf16.mxu0 0
  %606 = vmatpush1.bf16.msra.mxu0 %v177
  %607 = vmatprep.subr.bf16.mxu0 0
  %608 = vmatpush1.bf16.msra.mxu0 %v178
  %609 = vmatprep.subr.bf16.mxu0 0
  %610 = vmatpush1.bf16.msra.mxu0 %v179
  %611 = vmatprep.subr.bf16.mxu0 0
  %612 = vmatpush1.bf16.msra.mxu0 %v180
  %613 = vmatprep.subr.bf16.mxu0 0
  %614 = vmatpush1.bf16.msra.mxu0 %v246
  %615 = vmatprep.subr.bf16.mxu0 0
  %616 = vmatpush1.bf16.msra.mxu0 0
  %617 = vmatprep.subr.bf16.mxu0 0
  %618 = vmatpush1.bf16.msra.mxu0 0
  %619 = vmatprep.subr.bf16.mxu0 0
  %620 = vmatpush1.bf16.msra.mxu0 0
  %621 = vmatprep.subr.bf16.mxu0 0
  %622 = vmatpush1.bf16.msra.mxu0 0
  %623 = vmatprep.subr.bf16.mxu0 0
  %624 = vmatpush1.bf16.msra.mxu0 0
  %625 = vmatprep.subr.bf16.mxu0 0
  %626 = vmatpush1.bf16.msra.mxu0 0
  %627 = vmatprep.subr.bf16.mxu0 0
  %628 = vmatpush1.bf16.msra.mxu0 0
  %629 = vmatprep.subr.bf16.mxu0 0
  %630 = vmatpush1.bf16.msra.mxu0 0
  %631 = vmatprep.subr.bf16.mxu0 0
  %632 = vmatpush1.bf16.msra.mxu0 0
  %633 = vmatprep.subr.bf16.mxu0 0
  %634 = vmatpush1.bf16.msra.mxu0 0
  %635 = vmatprep.subr.bf16.mxu0 0
  %636 = vmatpush1.bf16.msra.mxu0 0
  %637 = vmatprep.mubr.bf16.mxu0 0
  %638 = vmatmul.mubr.bf16.gmra.mrb[0].mxu0 %v552
  %v639 = vpop.f32.mrb[0].mxu0
  %v640 = vadd.f32 0.0, %v639
  %v641 = vpop.f32.mrb[0].mxu0
  %v642 = vpop.f32.mrb[0].mxu0
  %v643 = vadd.f32 0.0, %v642
  %v644 = vpop.f32.mrb[0].mxu0
  %645 = vmatprep.mubr.bf16.mxu0 0
  %646 = vmatmul.mubr.bf16.gmra.mrb[0].mxu0 %v555
  %v647 = vpop.f32.mrb[0].mxu0
  %v648 = vadd.f32 0.0, %v647
  %v649 = vpop.f32.mrb[0].mxu0
  %v650 = vpop.f32.mrb[0].mxu0
  %v651 = vadd.f32 0.0, %v650
  %v652 = vpop.f32.mrb[0].mxu0
  %653 = vmatprep.mubr.bf16.mxu0 0
  %654 = vmatmul.mubr.bf16.gmra.mrb[0].mxu0 %v558
  %v655 = vpop.f32.mrb[0].mxu0
  %v656 = vadd.f32 0.0, %v655
  %v657 = vpop.f32.mrb[0].mxu0
  %v658 = vpop.f32.mrb[0].mxu0
  %v659 = vadd.f32 0.0, %v658
  %v660 = vpop.f32.mrb[0].mxu0
  %661 = vmatprep.mubr.bf16.mxu0 0
  %662 = vmatmul.mubr.bf16.gmra.mrb[0].mxu0 %v561
  %v663 = vpop.f32.mrb[0].mxu0
  %v664 = vadd.f32 0.0, %v663
  %v665 = vpop.f32.mrb[0].mxu0
  %v666 = vpop.f32.mrb[0].mxu0
  %v667 = vadd.f32 0.0, %v666
  %v668 = vpop.f32.mrb[0].mxu0
  %669 = vmatprep.mubr.bf16.mxu0 0
  %670 = vmatmul.mubr.bf16.gmra.mrb[0].mxu0 %v564
  %v671 = vpop.f32.mrb[0].mxu0
  %v672 = vadd.f32 0.0, %v671
  %v673 = vpop.f32.mrb[0].mxu0
  %v674 = vpop.f32.mrb[0].mxu0
  %v675 = vadd.f32 0.0, %v674
  %v676 = vpop.f32.mrb[0].mxu0
  %677 = vmatprep.mubr.bf16.mxu0 0
  %678 = vmatmul.mubr.bf16.gmra.mrb[0].mxu0 %v567
  %v679 = vpop.f32.mrb[0].mxu0
  %v680 = vadd.f32 0.0, %v679
  %v681 = vpop.f32.mrb[0].mxu0
  %v682 = vpop.f32.mrb[0].mxu0
  %v683 = vadd.f32 0.0, %v682
  %v684 = vpop.f32.mrb[0].mxu0
  %685 = vmatprep.mubr.bf16.mxu0 0
  %686 = vmatmul.mubr.bf16.gmra.mrb[0].mxu0 %v570
  %v687 = vpop.f32.mrb[0].mxu0
  %v688 = vadd.f32 0.0, %v687
  %v689 = vpop.f32.mrb[0].mxu0
  %v690 = vpop.f32.mrb[0].mxu0
  %v691 = vadd.f32 0.0, %v690
  %v692 = vpop.f32.mrb[0].mxu0
  %693 = vmatprep.mubr.bf16.mxu0 0
  %694 = vmatmul.mubr.bf16.gmra.mrb[0].mxu0 %v573
  %v695 = vpop.f32.mrb[0].mxu0
  %v696 = vadd.f32 0.0, %v695
  %v697 = vpop.f32.mrb[0].mxu0
  %v698 = vpop.f32.mrb[0].mxu0
  %v699 = vadd.f32 0.0, %v698
  %v700 = vpop.f32.mrb[0].mxu0
  %701 = vmatprep.mubr.bf16.mxu0 0
  %702 = vmatmul.mubr.bf16.gmra.mrb[0].mxu0 %v576
  %v703 = vpop.f32.mrb[0].mxu0
  %v704 = vadd.f32 0.0, %v703
  %v705 = vpop.f32.mrb[0].mxu0
  %v706 = vpop.f32.mrb[0].mxu0
  %v707 = vadd.f32 0.0, %v706
  %v708 = vpop.f32.mrb[0].mxu0
  %709 = vmatprep.mubr.bf16.mxu0 0
  %710 = vmatmul.mubr.bf16.gmra.mrb[0].mxu0 %v579
  %v711 = vpop.f32.mrb[0].mxu0
  %v712 = vadd.f32 0.0, %v711
  %v713 = vpop.f32.mrb[0].mxu0
  %v714 = vpop.f32.mrb[0].mxu0
  %v715 = vadd.f32 0.0, %v714
  %v716 = vpop.f32.mrb[0].mxu0
  %717 = vmatprep.mubr.bf16.mxu0 0
  %718 = vmatmul.mubr.bf16.gmra.mrb[0].mxu0 %v582
  %v719 = vpop.f32.mrb[0].mxu0
  %v720 = vadd.f32 0.0, %v719
  %v721 = vpop.f32.mrb[0].mxu0
  %v722 = vpop.f32.mrb[0].mxu0
  %v723 = vadd.f32 0.0, %v722
  %v724 = vpop.f32.mrb[0].mxu0
  %725 = vmatprep.mubr.bf16.mxu0 0
  %726 = vmatmul.mubr.bf16.gmra.mrb[0].mxu0 %v585
  %v727 = vpop.f32.mrb[0].mxu0
  %v728 = vadd.f32 0.0, %v727
  %v729 = vpop.f32.mrb[0].mxu0
  %v730 = vpop.f32.mrb[0].mxu0
  %v731 = vadd.f32 0.0, %v730
  %v732 = vpop.f32.mrb[0].mxu0
  %733 = vmatprep.mubr.bf16.mxu0 0
  %734 = vmatmul.mubr.bf16.gmra.mrb[0].mxu0 %v588
  %v735 = vpop.f32.mrb[0].mxu0
  %v736 = vadd.f32 0.0, %v735
  %v737 = vpop.f32.mrb[0].mxu0
  %v738 = vpop.f32.mrb[0].mxu0
  %v739 = vadd.f32 0.0, %v738
  %v740 = vpop.f32.mrb[0].mxu0
  %741 = vmatprep.mubr.bf16.mxu0 0
  %742 = vmatmul.mubr.bf16.gmra.mrb[0].mxu0 %v591
  %v743 = vpop.f32.mrb[0].mxu0
  %v744 = vadd.f32 0.0, %v743
  %v745 = vpop.f32.mrb[0].mxu0
  %v746 = vpop.f32.mrb[0].mxu0
  %v747 = vadd.f32 0.0, %v746
  %v748 = vpop.f32.mrb[0].mxu0
  %749 = vmatprep.mubr.bf16.mxu0 0
  %750 = vmatmul.mubr.bf16.gmra.mrb[0].mxu0 %v594
  %v751 = vpop.f32.mrb[0].mxu0
  %v752 = vadd.f32 0.0, %v751
  %v753 = vpop.f32.mrb[0].mxu0
  %v754 = vpop.f32.mrb[0].mxu0
  %v755 = vadd.f32 0.0, %v754
  %v756 = vpop.f32.mrb[0].mxu0
  %757 = vmatprep.mubr.bf16.mxu0 0
  %758 = vmatmul.mubr.bf16.gmra.mrb[0].mxu0 %v597
  %v759 = vpop.f32.mrb[0].mxu0
  %v760 = vadd.f32 0.0, %v759
  %v761 = vpop.f32.mrb[0].mxu0
  %v762 = vpop.f32.mrb[0].mxu0
  %v763 = vadd.f32 0.0, %v762
  %v764 = vpop.f32.mrb[0].mxu0
  %765 = vmatprep.mubr.bf16.mxu0 0
  %766 = vmatmul.mubr.bf16.gmra.mrb[0].mxu0 %v600
  %v767 = vpop.f32.mrb[0].mxu0
  %v768 = vadd.f32 0.0, %v767
  %v769 = vpop.f32.mrb[0].mxu0
  %v770 = vpop.f32.mrb[0].mxu0
  %v771 = vadd.f32 0.0, %v770
  %v772 = vpop.f32.mrb[0].mxu0
  %773 = vmatprep.mubr.bf16.mxu0 0
  %774 = vmatmul.mubr.bf16.gmra.mrb[0].mxu0 %v603
  %v775 = vpop.f32.mrb[0].mxu0
  %v776 = vadd.f32 0.0, %v775
  %v777 = vpop.f32.mrb[0].mxu0
  %v778 = vpop.f32.mrb[0].mxu0
  %v779 = vadd.f32 0.0, %v778
  %v780 = vpop.f32.mrb[0].mxu0
  %781 = vdwg.mxu0
  %v782 = vld [vmem:[%s2] sm:$0xf]
  %v783 = vld [vmem:[%s2 + $0x4] sm:$0xf]
  %v784 = vld [vmem:[%s2 + $0x8] sm:$0xf]
  %v785 = vld [vmem:[%s2 + $0xc] sm:$0xf]
  %v786 = vld [vmem:[%s2 + $0x10] sm:$0xf]
  %v787 = vld [vmem:[%s2 + $0x14] sm:$0xf]
  %v788 = vld [vmem:[%s2 + $0x18] sm:$0xf]
  %v789 = vld [vmem:[%s2 + $0x1c] sm:$0xf]
  %v790 = vld [vmem:[%s2 + $0x20] sm:$0xf]
  %v791 = vld [vmem:[%s2 + $0x24] sm:$0xf]
  %v792 = vld [vmem:[%s2 + $0x28] sm:$0xf]
  %v793 = vld [vmem:[%s2 + $0x2c] sm:$0xf]
  %v794 = vld [vmem:[%s2 + $0x30] sm:$0xf]
  %v795 = vld [vmem:[%s2 + $0x34] sm:$0xf]
  %v796 = vld [vmem:[%s2 + $0x38] sm:$0xf]
  %v797 = vld [vmem:[%s2 + $0x3c] sm:$0xf]
  %v798 = vld [vmem:[%s2 + $0x40] sm:$0xf]
  %v799 = vld [vmem:[%s2 + $0x44] sm:$0xf]
  %v800 = vld [vmem:[%s2 + $0x48] sm:$0xf]
  %v801 = vld [vmem:[%s2 + $0x4c] sm:$0xf]
  %v802 = vld [vmem:[%s2 + $0x50] sm:$0xf]
  %v803 = vld [vmem:[%s2 + $0x54] sm:$0xf]
  %v804 = vld [vmem:[%s2 + $0x58] sm:$0xf]
  %v805 = vld [vmem:[%s2 + $0x5c] sm:$0xf]
  %v806 = vld [vmem:[%s2 + $0x60] sm:$0xf]
  %v807 = vld [vmem:[%s2 + $0x64] sm:$0xf]
  %v808 = vld [vmem:[%s2 + $0x68] sm:$0xf]
  %v809 = vld [vmem:[%s2 + $0x6c] sm:$0xf]
  %v810 = vld [vmem:[%s2 + $0x70] sm:$0xf]
  %v811 = vld [vmem:[%s2 + $0x74] sm:$0xf]
  %v812 = vld [vmem:[%s2 + $0x78] sm:$0xf]
  %v813 = vld [vmem:[%s2 + $0x7c] sm:$0xf]
  %v814 = vld [vmem:[%s2 + $0x80] sm:$0xf]
  %v815 = vld [vmem:[%s2 + $0x84] sm:$0xf]
  %v816 = vld [vmem:[%s2 + $0x88] sm:$0xf]
  %v817 = vld [vmem:[%s2 + $0x8c] sm:$0xf]
  %v854 = vunpack.c.l.b16 %v782
  %v855 = vunpack.c.l.b16 %v783
  %v856 = vunpack.c.l.b16 %v784
  %v857 = vunpack.c.l.b16 %v785
  %v858 = vunpack.c.l.b16 %v786
  %v859 = vunpack.c.l.b16 %v787
  %v860 = vunpack.c.l.b16 %v788
  %v861 = vunpack.c.l.b16 %v789
  %v862 = vunpack.c.l.b16 %v790
  %v863 = vunpack.c.l.b16 %v791
  %v864 = vunpack.c.l.b16 %v792
  %v865 = vunpack.c.l.b16 %v793
  %v866 = vunpack.c.l.b16 %v794
  %v867 = vunpack.c.l.b16 %v795
  %v868 = vunpack.c.l.b16 %v796
  %v869 = vunpack.c.l.b16 %v797
  %v870 = vunpack.c.l.b16 %v798
  %v871 = vunpack.c.l.b16 %v799
  %v872 = vunpack.c.l.b16 %v800
  %v873 = vunpack.c.l.b16 %v801
  %v874 = vunpack.c.l.b16 %v802
  %v875 = vunpack.c.l.b16 %v803
  %v876 = vunpack.c.l.b16 %v804
  %v877 = vunpack.c.l.b16 %v805
  %v878 = vunpack.c.l.b16 %v806
  %v879 = vunpack.c.l.b16 %v807
  %v880 = vunpack.c.l.b16 %v808
  %v881 = vunpack.c.l.b16 %v809
  %v882 = vunpack.c.l.b16 %v810
  %v883 = vunpack.c.l.b16 %v811
  %v884 = vunpack.c.l.b16 %v812
  %v885 = vunpack.c.l.b16 %v813
  %v886 = vunpack.c.l.b16 %v814
  %v887 = vunpack.c.l.b16 %v815
  %v888 = vunpack.c.l.b16 %v816
  %v889 = vunpack.c.l.b16 %v817
  %v890 = vpack.c.b16 %v855, %v854
  %v891 = vpack.c.b16 %v857, %v856
  %v892 = vpack.c.b16 %v859, %v858
  %v893 = vpack.c.b16 %v861, %v860
  %v894 = vpack.c.b16 %v863, %v862
  %v895 = vpack.c.b16 %v865, %v864
  %v896 = vpack.c.b16 %v867, %v866
  %v897 = vpack.c.b16 %v869, %v868
  %v898 = vpack.c.b16 %v871, %v870
  %v899 = vpack.c.b16 %v873, %v872
  %v900 = vpack.c.b16 %v875, %v874
  %v901 = vpack.c.b16 %v877, %v876
  %v902 = vpack.c.b16 %v879, %v878
  %v903 = vpack.c.b16 %v881, %v880
  %v904 = vpack.c.b16 %v883, %v882
  %v905 = vpack.c.b16 %v885, %v884
  %v906 = vpack.c.b16 %v887, %v886
  %v907 = vpack.c.b16 %v889, %v888
  %v909 = vsel %vm186, %v890, 0
  %v912 = vsel %vm186, %v891, 0
  %v915 = vsel %vm186, %v892, 0
  %v918 = vsel %vm186, %v893, 0
  %v921 = vsel %vm186, %v894, 0
  %v924 = vsel %vm186, %v895, 0
  %v927 = vsel %vm186, %v896, 0
  %v930 = vsel %vm186, %v897, 0
  %v933 = vsel %vm186, %v898, 0
  %v936 = vsel %vm186, %v899, 0
  %v939 = vsel %vm186, %v900, 0
  %v942 = vsel %vm186, %v901, 0
  %v945 = vsel %vm186, %v902, 0
  %v948 = vsel %vm186, %v903, 0
  %v951 = vsel %vm186, %v904, 0
  %v954 = vsel %vm186, %v905, 0
  %v957 = vsel %vm186, %v906, 0
  %v960 = vsel %vm186, %v907, 0
  %962 = vmatprep.subr.bf16.mxu0 0
  %963 = vmatpush1.bf16.msra.mxu0 %v177
  %964 = vmatprep.subr.bf16.mxu0 0
  %965 = vmatpush1.bf16.msra.mxu0 %v178
  %966 = vmatprep.subr.bf16.mxu0 0
  %967 = vmatpush1.bf16.msra.mxu0 %v179
  %968 = vmatprep.subr.bf16.mxu0 0
  %969 = vmatpush1.bf16.msra.mxu0 %v180
  %970 = vmatprep.subr.bf16.mxu0 0
  %971 = vmatpush1.bf16.msra.mxu0 %v246
  %972 = vmatprep.subr.bf16.mxu0 0
  %973 = vmatpush1.bf16.msra.mxu0 0
  %974 = vmatprep.subr.bf16.mxu0 0
  %975 = vmatpush1.bf16.msra.mxu0 0
  %976 = vmatprep.subr.bf16.mxu0 0
  %977 = vmatpush1.bf16.msra.mxu0 0
  %978 = vmatprep.subr.bf16.mxu0 0
  %979 = vmatpush1.bf16.msra.mxu0 0
  %980 = vmatprep.subr.bf16.mxu0 0
  %981 = vmatpush1.bf16.msra.mxu0 0
  %982 = vmatprep.subr.bf16.mxu0 0
  %983 = vmatpush1.bf16.msra.mxu0 0
  %984 = vmatprep.subr.bf16.mxu0 0
  %985 = vmatpush1.bf16.msra.mxu0 0
  %986 = vmatprep.subr.bf16.mxu0 0
  %987 = vmatpush1.bf16.msra.mxu0 0
  %988 = vmatprep.subr.bf16.mxu0 0
  %989 = vmatpush1.bf16.msra.mxu0 0
  %990 = vmatprep.subr.bf16.mxu0 0
  %991 = vmatpush1.bf16.msra.mxu0 0
  %992 = vmatprep.subr.bf16.mxu0 0
  %993 = vmatpush1.bf16.msra.mxu0 0
  %994 = vmatprep.mubr.bf16.mxu0 0
  %995 = vmatmul.mubr.bf16.gmra.mrb[0].mxu0 %v909
  %v996 = vpop.f32.mrb[0].mxu0
  %v997 = vadd.f32 0.0, %v996
  %v998 = vpop.f32.mrb[0].mxu0
  %v999 = vpop.f32.mrb[0].mxu0
  %v1000 = vadd.f32 0.0, %v999
  %v1001 = vpop.f32.mrb[0].mxu0
  %1002 = vmatprep.mubr.bf16.mxu0 0
  %1003 = vmatmul.mubr.bf16.gmra.mrb[0].mxu0 %v912
  %v1004 = vpop.f32.mrb[0].mxu0
  %v1005 = vadd.f32 0.0, %v1004
  %v1006 = vpop.f32.mrb[0].mxu0
  %v1007 = vpop.f32.mrb[0].mxu0
  %v1008 = vadd.f32 0.0, %v1007
  %v1009 = vpop.f32.mrb[0].mxu0
  %1010 = vmatprep.mubr.bf16.mxu0 0
  %1011 = vmatmul.mubr.bf16.gmra.mrb[0].mxu0 %v915
  %v1012 = vpop.f32.mrb[0].mxu0
  %v1013 = vadd.f32 0.0, %v1012
  %v1014 = vpop.f32.mrb[0].mxu0
  %v1015 = vpop.f32.mrb[0].mxu0
  %v1016 = vadd.f32 0.0, %v1015
  %v1017 = vpop.f32.mrb[0].mxu0
  %1018 = vmatprep.mubr.bf16.mxu0 0
  %1019 = vmatmul.mubr.bf16.gmra.mrb[0].mxu0 %v918
  %v1020 = vpop.f32.mrb[0].mxu0
  %v1021 = vadd.f32 0.0, %v1020
  %v1022 = vpop.f32.mrb[0].mxu0
  %v1023 = vpop.f32.mrb[0].mxu0
  %v1024 = vadd.f32 0.0, %v1023
  %v1025 = vpop.f32.mrb[0].mxu0
  %1026 = vmatprep.mubr.bf16.mxu0 0
  %1027 = vmatmul.mubr.bf16.gmra.mrb[0].mxu0 %v921
  %v1028 = vpop.f32.mrb[0].mxu0
  %v1029 = vadd.f32 0.0, %v1028
  %v1030 = vpop.f32.mrb[0].mxu0
  %v1031 = vpop.f32.mrb[0].mxu0
  %v1032 = vadd.f32 0.0, %v1031
  %v1033 = vpop.f32.mrb[0].mxu0
  %1034 = vmatprep.mubr.bf16.mxu0 0
  %1035 = vmatmul.mubr.bf16.gmra.mrb[0].mxu0 %v924
  %v1036 = vpop.f32.mrb[0].mxu0
  %v1037 = vadd.f32 0.0, %v1036
  %v1038 = vpop.f32.mrb[0].mxu0
  %v1039 = vpop.f32.mrb[0].mxu0
  %v1040 = vadd.f32 0.0, %v1039
  %v1041 = vpop.f32.mrb[0].mxu0
  %1042 = vmatprep.mubr.bf16.mxu0 0
  %1043 = vmatmul.mubr.bf16.gmra.mrb[0].mxu0 %v927
  %v1044 = vpop.f32.mrb[0].mxu0
  %v1045 = vadd.f32 0.0, %v1044
  %v1046 = vpop.f32.mrb[0].mxu0
  %v1047 = vpop.f32.mrb[0].mxu0
  %v1048 = vadd.f32 0.0, %v1047
  %v1049 = vpop.f32.mrb[0].mxu0
  %1050 = vmatprep.mubr.bf16.mxu0 0
  %1051 = vmatmul.mubr.bf16.gmra.mrb[0].mxu0 %v930
  %v1052 = vpop.f32.mrb[0].mxu0
  %v1053 = vadd.f32 0.0, %v1052
  %v1054 = vpop.f32.mrb[0].mxu0
  %v1055 = vpop.f32.mrb[0].mxu0
  %v1056 = vadd.f32 0.0, %v1055
  %v1057 = vpop.f32.mrb[0].mxu0
  %1058 = vmatprep.mubr.bf16.mxu0 0
  %1059 = vmatmul.mubr.bf16.gmra.mrb[0].mxu0 %v933
  %v1060 = vpop.f32.mrb[0].mxu0
  %v1061 = vadd.f32 0.0, %v1060
  %v1062 = vpop.f32.mrb[0].mxu0
  %v1063 = vpop.f32.mrb[0].mxu0
  %v1064 = vadd.f32 0.0, %v1063
  %v1065 = vpop.f32.mrb[0].mxu0
  %1066 = vmatprep.mubr.bf16.mxu0 0
  %1067 = vmatmul.mubr.bf16.gmra.mrb[0].mxu0 %v936
  %v1068 = vpop.f32.mrb[0].mxu0
  %v1069 = vadd.f32 0.0, %v1068
  %v1070 = vpop.f32.mrb[0].mxu0
  %v1071 = vpop.f32.mrb[0].mxu0
  %v1072 = vadd.f32 0.0, %v1071
  %v1073 = vpop.f32.mrb[0].mxu0
  %1074 = vmatprep.mubr.bf16.mxu0 0
  %1075 = vmatmul.mubr.bf16.gmra.mrb[0].mxu0 %v939
  %v1076 = vpop.f32.mrb[0].mxu0
  %v1077 = vadd.f32 0.0, %v1076
  %v1078 = vpop.f32.mrb[0].mxu0
  %v1079 = vpop.f32.mrb[0].mxu0
  %v1080 = vadd.f32 0.0, %v1079
  %v1081 = vpop.f32.mrb[0].mxu0
  %1082 = vmatprep.mubr.bf16.mxu0 0
  %1083 = vmatmul.mubr.bf16.gmra.mrb[0].mxu0 %v942
  %v1084 = vpop.f32.mrb[0].mxu0
  %v1085 = vadd.f32 0.0, %v1084
  %v1086 = vpop.f32.mrb[0].mxu0
  %v1087 = vpop.f32.mrb[0].mxu0
  %v1088 = vadd.f32 0.0, %v1087
  %v1089 = vpop.f32.mrb[0].mxu0
  %1090 = vmatprep.mubr.bf16.mxu0 0
  %1091 = vmatmul.mubr.bf16.gmra.mrb[0].mxu0 %v945
  %v1092 = vpop.f32.mrb[0].mxu0
  %v1093 = vadd.f32 0.0, %v1092
  %v1094 = vpop.f32.mrb[0].mxu0
  %v1095 = vpop.f32.mrb[0].mxu0
  %v1096 = vadd.f32 0.0, %v1095
  %v1097 = vpop.f32.mrb[0].mxu0
  %1098 = vmatprep.mubr.bf16.mxu0 0
  %1099 = vmatmul.mubr.bf16.gmra.mrb[0].mxu0 %v948
  %v1100 = vpop.f32.mrb[0].mxu0
  %v1101 = vadd.f32 0.0, %v1100
  %v1102 = vpop.f32.mrb[0].mxu0
  %v1103 = vpop.f32.mrb[0].mxu0
  %v1104 = vadd.f32 0.0, %v1103
  %v1105 = vpop.f32.mrb[0].mxu0
  %1106 = vmatprep.mubr.bf16.mxu0 0
  %1107 = vmatmul.mubr.bf16.gmra.mrb[0].mxu0 %v951
  %v1108 = vpop.f32.mrb[0].mxu0
  %v1109 = vadd.f32 0.0, %v1108
  %v1110 = vpop.f32.mrb[0].mxu0
  %v1111 = vpop.f32.mrb[0].mxu0
  %v1112 = vadd.f32 0.0, %v1111
  %v1113 = vpop.f32.mrb[0].mxu0
  %1114 = vmatprep.mubr.bf16.mxu0 0
  %1115 = vmatmul.mubr.bf16.gmra.mrb[0].mxu0 %v954
  %v1116 = vpop.f32.mrb[0].mxu0
  %v1117 = vadd.f32 0.0, %v1116
  %v1118 = vpop.f32.mrb[0].mxu0
  %v1119 = vpop.f32.mrb[0].mxu0
  %v1120 = vadd.f32 0.0, %v1119
  %v1121 = vpop.f32.mrb[0].mxu0
  %1122 = vmatprep.mubr.bf16.mxu0 0
  %1123 = vmatmul.mubr.bf16.gmra.mrb[0].mxu0 %v957
  %v1124 = vpop.f32.mrb[0].mxu0
  %v1125 = vadd.f32 0.0, %v1124
  %v1126 = vpop.f32.mrb[0].mxu0
  %v1127 = vpop.f32.mrb[0].mxu0
  %v1128 = vadd.f32 0.0, %v1127
  %v1129 = vpop.f32.mrb[0].mxu0
  %1130 = vmatprep.mubr.bf16.mxu0 0
  %1131 = vmatmul.mubr.bf16.gmra.mrb[0].mxu0 %v960
  %v1132 = vpop.f32.mrb[0].mxu0
  %v1133 = vadd.f32 0.0, %v1132
  %v1134 = vpop.f32.mrb[0].mxu0
  %v1135 = vpop.f32.mrb[0].mxu0
  %v1136 = vadd.f32 0.0, %v1135
  %v1137 = vpop.f32.mrb[0].mxu0
  %1138 = vdwg.mxu0
  %v1139 = vld [vmem:[%s3] sm:$0xf]
  %v1140 = vld [vmem:[%s3 + $0x4] sm:$0xf]
  %v1141 = vld [vmem:[%s3 + $0x8] sm:$0xf]
  %v1142 = vld [vmem:[%s3 + $0xc] sm:$0xf]
  %v1143 = vld [vmem:[%s3 + $0x10] sm:$0xf]
  %v1144 = vld [vmem:[%s3 + $0x14] sm:$0xf]
  %v1145 = vld [vmem:[%s3 + $0x18] sm:$0xf]
  %v1146 = vld [vmem:[%s3 + $0x1c] sm:$0xf]
  %v1147 = vld [vmem:[%s3 + $0x20] sm:$0xf]
  %v1148 = vld [vmem:[%s3 + $0x24] sm:$0xf]
  %v1149 = vld [vmem:[%s3 + $0x28] sm:$0xf]
  %v1150 = vld [vmem:[%s3 + $0x2c] sm:$0xf]
  %v1151 = vld [vmem:[%s3 + $0x30] sm:$0xf]
  %v1152 = vld [vmem:[%s3 + $0x34] sm:$0xf]
  %v1153 = vld [vmem:[%s3 + $0x38] sm:$0xf]
  %v1154 = vld [vmem:[%s3 + $0x3c] sm:$0xf]
  %v1155 = vld [vmem:[%s3 + $0x40] sm:$0xf]
  %v1156 = vld [vmem:[%s3 + $0x44] sm:$0xf]
  %v1157 = vld [vmem:[%s3 + $0x48] sm:$0xf]
  %v1158 = vld [vmem:[%s3 + $0x4c] sm:$0xf]
  %v1159 = vld [vmem:[%s3 + $0x50] sm:$0xf]
  %v1160 = vld [vmem:[%s3 + $0x54] sm:$0xf]
  %v1161 = vld [vmem:[%s3 + $0x58] sm:$0xf]
  %v1162 = vld [vmem:[%s3 + $0x5c] sm:$0xf]
  %v1163 = vld [vmem:[%s3 + $0x60] sm:$0xf]
  %v1164 = vld [vmem:[%s3 + $0x64] sm:$0xf]
  %v1165 = vld [vmem:[%s3 + $0x68] sm:$0xf]
  %v1166 = vld [vmem:[%s3 + $0x6c] sm:$0xf]
  %v1167 = vld [vmem:[%s3 + $0x70] sm:$0xf]
  %v1168 = vld [vmem:[%s3 + $0x74] sm:$0xf]
  %v1169 = vld [vmem:[%s3 + $0x78] sm:$0xf]
  %v1170 = vld [vmem:[%s3 + $0x7c] sm:$0xf]
  %v1171 = vld [vmem:[%s3 + $0x80] sm:$0xf]
  %v1172 = vld [vmem:[%s3 + $0x84] sm:$0xf]
  %v1173 = vld [vmem:[%s3 + $0x88] sm:$0xf]
  %v1174 = vld [vmem:[%s3 + $0x8c] sm:$0xf]
  %v1211 = vunpack.c.l.b16 %v1139
  %v1212 = vunpack.c.l.b16 %v1140
  %v1213 = vunpack.c.l.b16 %v1141
  %v1214 = vunpack.c.l.b16 %v1142
  %v1215 = vunpack.c.l.b16 %v1143
  %v1216 = vunpack.c.l.b16 %v1144
  %v1217 = vunpack.c.l.b16 %v1145
  %v1218 = vunpack.c.l.b16 %v1146
  %v1219 = vunpack.c.l.b16 %v1147
  %v1220 = vunpack.c.l.b16 %v1148
  %v1221 = vunpack.c.l.b16 %v1149
  %v1222 = vunpack.c.l.b16 %v1150
  %v1223 = vunpack.c.l.b16 %v1151
  %v1224 = vunpack.c.l.b16 %v1152
  %v1225 = vunpack.c.l.b16 %v1153
  %v1226 = vunpack.c.l.b16 %v1154
  %v1227 = vunpack.c.l.b16 %v1155
  %v1228 = vunpack.c.l.b16 %v1156
  %v1229 = vunpack.c.l.b16 %v1157
  %v1230 = vunpack.c.l.b16 %v1158
  %v1231 = vunpack.c.l.b16 %v1159
  %v1232 = vunpack.c.l.b16 %v1160
  %v1233 = vunpack.c.l.b16 %v1161
  %v1234 = vunpack.c.l.b16 %v1162
  %v1235 = vunpack.c.l.b16 %v1163
  %v1236 = vunpack.c.l.b16 %v1164
  %v1237 = vunpack.c.l.b16 %v1165
  %v1238 = vunpack.c.l.b16 %v1166
  %v1239 = vunpack.c.l.b16 %v1167
  %v1240 = vunpack.c.l.b16 %v1168
  %v1241 = vunpack.c.l.b16 %v1169
  %v1242 = vunpack.c.l.b16 %v1170
  %v1243 = vunpack.c.l.b16 %v1171
  %v1244 = vunpack.c.l.b16 %v1172
  %v1245 = vunpack.c.l.b16 %v1173
  %v1246 = vunpack.c.l.b16 %v1174
  %v1247 = vpack.c.b16 %v1212, %v1211
  %v1248 = vpack.c.b16 %v1214, %v1213
  %v1249 = vpack.c.b16 %v1216, %v1215
  %v1250 = vpack.c.b16 %v1218, %v1217
  %v1251 = vpack.c.b16 %v1220, %v1219
  %v1252 = vpack.c.b16 %v1222, %v1221
  %v1253 = vpack.c.b16 %v1224, %v1223
  %v1254 = vpack.c.b16 %v1226, %v1225
  %v1255 = vpack.c.b16 %v1228, %v1227
  %v1256 = vpack.c.b16 %v1230, %v1229
  %v1257 = vpack.c.b16 %v1232, %v1231
  %v1258 = vpack.c.b16 %v1234, %v1233
  %v1259 = vpack.c.b16 %v1236, %v1235
  %v1260 = vpack.c.b16 %v1238, %v1237
  %v1261 = vpack.c.b16 %v1240, %v1239
  %v1262 = vpack.c.b16 %v1242, %v1241
  %v1263 = vpack.c.b16 %v1244, %v1243
  %v1264 = vpack.c.b16 %v1246, %v1245
  %v1266 = vsel %vm186, %v1247, 0
  %v1269 = vsel %vm186, %v1248, 0
  %v1272 = vsel %vm186, %v1249, 0
  %v1275 = vsel %vm186, %v1250, 0
  %v1278 = vsel %vm186, %v1251, 0
  %v1281 = vsel %vm186, %v1252, 0
  %v1284 = vsel %vm186, %v1253, 0
  %v1287 = vsel %vm186, %v1254, 0
  %v1290 = vsel %vm186, %v1255, 0
  %v1293 = vsel %vm186, %v1256, 0
  %v1296 = vsel %vm186, %v1257, 0
  %v1299 = vsel %vm186, %v1258, 0
  %v1302 = vsel %vm186, %v1259, 0
  %v1305 = vsel %vm186, %v1260, 0
  %v1308 = vsel %vm186, %v1261, 0
  %v1311 = vsel %vm186, %v1262, 0
  %v1314 = vsel %vm186, %v1263, 0
  %v1317 = vsel %vm186, %v1264, 0
  %1319 = vmatprep.subr.bf16.mxu0 0
  %1320 = vmatpush1.bf16.msra.mxu0 %v177
  %1321 = vmatprep.subr.bf16.mxu0 0
  %1322 = vmatpush1.bf16.msra.mxu0 %v178
  %1323 = vmatprep.subr.bf16.mxu0 0
  %1324 = vmatpush1.bf16.msra.mxu0 %v179
  %1325 = vmatprep.subr.bf16.mxu0 0
  %1326 = vmatpush1.bf16.msra.mxu0 %v180
  %1327 = vmatprep.subr.bf16.mxu0 0
  %1328 = vmatpush1.bf16.msra.mxu0 %v246
  %1329 = vmatprep.subr.bf16.mxu0 0
  %1330 = vmatpush1.bf16.msra.mxu0 0
  %1331 = vmatprep.subr.bf16.mxu0 0
  %1332 = vmatpush1.bf16.msra.mxu0 0
  %1333 = vmatprep.subr.bf16.mxu0 0
  %1334 = vmatpush1.bf16.msra.mxu0 0
  %1335 = vmatprep.subr.bf16.mxu0 0
  %1336 = vmatpush1.bf16.msra.mxu0 0
  %1337 = vmatprep.subr.bf16.mxu0 0
  %1338 = vmatpush1.bf16.msra.mxu0 0
  %1339 = vmatprep.subr.bf16.mxu0 0
  %1340 = vmatpush1.bf16.msra.mxu0 0
  %1341 = vmatprep.subr.bf16.mxu0 0
  %1342 = vmatpush1.bf16.msra.mxu0 0
  %1343 = vmatprep.subr.bf16.mxu0 0
  %1344 = vmatpush1.bf16.msra.mxu0 0
  %1345 = vmatprep.subr.bf16.mxu0 0
  %1346 = vmatpush1.bf16.msra.mxu0 0
  %1347 = vmatprep.subr.bf16.mxu0 0
  %1348 = vmatpush1.bf16.msra.mxu0 0
  %1349 = vmatprep.subr.bf16.mxu0 0
  %1350 = vmatpush1.bf16.msra.mxu0 0
  %1351 = vmatprep.mubr.bf16.mxu0 0
  %1352 = vmatmul.mubr.bf16.gmra.mrb[0].mxu0 %v1266
  %v1353 = vpop.f32.mrb[0].mxu0
  %v1354 = vadd.f32 0.0, %v1353
  %v1355 = vpop.f32.mrb[0].mxu0
  %v1356 = vpop.f32.mrb[0].mxu0
  %v1357 = vadd.f32 0.0, %v1356
  %v1358 = vpop.f32.mrb[0].mxu0
  %1359 = vmatprep.mubr.bf16.mxu0 0
  %1360 = vmatmul.mubr.bf16.gmra.mrb[0].mxu0 %v1269
  %v1361 = vpop.f32.mrb[0].mxu0
  %v1362 = vadd.f32 0.0, %v1361
  %v1363 = vpop.f32.mrb[0].mxu0
  %v1364 = vpop.f32.mrb[0].mxu0
  %v1365 = vadd.f32 0.0, %v1364
  %v1366 = vpop.f32.mrb[0].mxu0
  %1367 = vmatprep.mubr.bf16.mxu0 0
  %1368 = vmatmul.mubr.bf16.gmra.mrb[0].mxu0 %v1272
  %v1369 = vpop.f32.mrb[0].mxu0
  %v1370 = vadd.f32 0.0, %v1369
  %v1371 = vpop.f32.mrb[0].mxu0
  %v1372 = vpop.f32.mrb[0].mxu0
  %v1373 = vadd.f32 0.0, %v1372
  %v1374 = vpop.f32.mrb[0].mxu0
  %1375 = vmatprep.mubr.bf16.mxu0 0
  %1376 = vmatmul.mubr.bf16.gmra.mrb[0].mxu0 %v1275
  %v1377 = vpop.f32.mrb[0].mxu0
  %v1378 = vadd.f32 0.0, %v1377
  %v1379 = vpop.f32.mrb[0].mxu0
  %v1380 = vpop.f32.mrb[0].mxu0
  %v1381 = vadd.f32 0.0, %v1380
  %v1382 = vpop.f32.mrb[0].mxu0
  %1383 = vmatprep.mubr.bf16.mxu0 0
  %1384 = vmatmul.mubr.bf16.gmra.mrb[0].mxu0 %v1278
  %v1385 = vpop.f32.mrb[0].mxu0
  %v1386 = vadd.f32 0.0, %v1385
  %v1387 = vpop.f32.mrb[0].mxu0
  %v1388 = vpop.f32.mrb[0].mxu0
  %v1389 = vadd.f32 0.0, %v1388
  %v1390 = vpop.f32.mrb[0].mxu0
  %1391 = vmatprep.mubr.bf16.mxu0 0
  %1392 = vmatmul.mubr.bf16.gmra.mrb[0].mxu0 %v1281
  %v1393 = vpop.f32.mrb[0].mxu0
  %v1394 = vadd.f32 0.0, %v1393
  %v1395 = vpop.f32.mrb[0].mxu0
  %v1396 = vpop.f32.mrb[0].mxu0
  %v1397 = vadd.f32 0.0, %v1396
  %v1398 = vpop.f32.mrb[0].mxu0
  %1399 = vmatprep.mubr.bf16.mxu0 0
  %1400 = vmatmul.mubr.bf16.gmra.mrb[0].mxu0 %v1284
  %v1401 = vpop.f32.mrb[0].mxu0
  %v1402 = vadd.f32 0.0, %v1401
  %v1403 = vpop.f32.mrb[0].mxu0
  %v1404 = vpop.f32.mrb[0].mxu0
  %v1405 = vadd.f32 0.0, %v1404
  %v1406 = vpop.f32.mrb[0].mxu0
  %1407 = vmatprep.mubr.bf16.mxu0 0
  %1408 = vmatmul.mubr.bf16.gmra.mrb[0].mxu0 %v1287
  %v1409 = vpop.f32.mrb[0].mxu0
  %v1410 = vadd.f32 0.0, %v1409
  %v1411 = vpop.f32.mrb[0].mxu0
  %v1412 = vpop.f32.mrb[0].mxu0
  %v1413 = vadd.f32 0.0, %v1412
  %v1414 = vpop.f32.mrb[0].mxu0
  %1415 = vmatprep.mubr.bf16.mxu0 0
  %1416 = vmatmul.mubr.bf16.gmra.mrb[0].mxu0 %v1290
  %v1417 = vpop.f32.mrb[0].mxu0
  %v1418 = vadd.f32 0.0, %v1417
  %v1419 = vpop.f32.mrb[0].mxu0
  %v1420 = vpop.f32.mrb[0].mxu0
  %v1421 = vadd.f32 0.0, %v1420
  %v1422 = vpop.f32.mrb[0].mxu0
  %1423 = vmatprep.mubr.bf16.mxu0 0
  %1424 = vmatmul.mubr.bf16.gmra.mrb[0].mxu0 %v1293
  %v1425 = vpop.f32.mrb[0].mxu0
  %v1426 = vadd.f32 0.0, %v1425
  %v1427 = vpop.f32.mrb[0].mxu0
  %v1428 = vpop.f32.mrb[0].mxu0
  %v1429 = vadd.f32 0.0, %v1428
  %v1430 = vpop.f32.mrb[0].mxu0
  %1431 = vmatprep.mubr.bf16.mxu0 0
  %1432 = vmatmul.mubr.bf16.gmra.mrb[0].mxu0 %v1296
  %v1433 = vpop.f32.mrb[0].mxu0
  %v1434 = vadd.f32 0.0, %v1433
  %v1435 = vpop.f32.mrb[0].mxu0
  %v1436 = vpop.f32.mrb[0].mxu0
  %v1437 = vadd.f32 0.0, %v1436
  %v1438 = vpop.f32.mrb[0].mxu0
  %1439 = vmatprep.mubr.bf16.mxu0 0
  %1440 = vmatmul.mubr.bf16.gmra.mrb[0].mxu0 %v1299
  %v1441 = vpop.f32.mrb[0].mxu0
  %v1442 = vadd.f32 0.0, %v1441
  %v1443 = vpop.f32.mrb[0].mxu0
  %v1444 = vpop.f32.mrb[0].mxu0
  %v1445 = vadd.f32 0.0, %v1444
  %v1446 = vpop.f32.mrb[0].mxu0
  %1447 = vmatprep.mubr.bf16.mxu0 0
  %1448 = vmatmul.mubr.bf16.gmra.mrb[0].mxu0 %v1302
  %v1449 = vpop.f32.mrb[0].mxu0
  %v1450 = vadd.f32 0.0, %v1449
  %v1451 = vpop.f32.mrb[0].mxu0
  %v1452 = vpop.f32.mrb[0].mxu0
  %v1453 = vadd.f32 0.0, %v1452
  %v1454 = vpop.f32.mrb[0].mxu0
  %1455 = vmatprep.mubr.bf16.mxu0 0
  %1456 = vmatmul.mubr.bf16.gmra.mrb[0].mxu0 %v1305
  %v1457 = vpop.f32.mrb[0].mxu0
  %v1458 = vadd.f32 0.0, %v1457
  %v1459 = vpop.f32.mrb[0].mxu0
  %v1460 = vpop.f32.mrb[0].mxu0
  %v1461 = vadd.f32 0.0, %v1460
  %v1462 = vpop.f32.mrb[0].mxu0
  %1463 = vmatprep.mubr.bf16.mxu0 0
  %1464 = vmatmul.mubr.bf16.gmra.mrb[0].mxu0 %v1308
  %v1465 = vpop.f32.mrb[0].mxu0
  %v1466 = vadd.f32 0.0, %v1465
  %v1467 = vpop.f32.mrb[0].mxu0
  %v1468 = vpop.f32.mrb[0].mxu0
  %v1469 = vadd.f32 0.0, %v1468
  %v1470 = vpop.f32.mrb[0].mxu0
  %1471 = vmatprep.mubr.bf16.mxu0 0
  %1472 = vmatmul.mubr.bf16.gmra.mrb[0].mxu0 %v1311
  %v1473 = vpop.f32.mrb[0].mxu0
  %v1474 = vadd.f32 0.0, %v1473
  %v1475 = vpop.f32.mrb[0].mxu0
  %v1476 = vpop.f32.mrb[0].mxu0
  %v1477 = vadd.f32 0.0, %v1476
  %v1478 = vpop.f32.mrb[0].mxu0
  %1479 = vmatprep.mubr.bf16.mxu0 0
  %1480 = vmatmul.mubr.bf16.gmra.mrb[0].mxu0 %v1314
  %v1481 = vpop.f32.mrb[0].mxu0
  %v1482 = vadd.f32 0.0, %v1481
  %v1483 = vpop.f32.mrb[0].mxu0
  %v1484 = vpop.f32.mrb[0].mxu0
  %v1485 = vadd.f32 0.0, %v1484
  %v1486 = vpop.f32.mrb[0].mxu0
  %1487 = vmatprep.mubr.bf16.mxu0 0
  %1488 = vmatmul.mubr.bf16.gmra.mrb[0].mxu0 %v1317
  %v1489 = vpop.f32.mrb[0].mxu0
  %v1490 = vadd.f32 0.0, %v1489
  %v1491 = vpop.f32.mrb[0].mxu0
  %v1492 = vpop.f32.mrb[0].mxu0
  %v1493 = vadd.f32 0.0, %v1492
  %v1494 = vpop.f32.mrb[0].mxu0
  %1495 = vdwg.mxu0
  %v1496 = vmax.f32 %v283, %v640
  %v1497 = vmax.f32 %v286, %v643
  %v1498 = vmax.f32 %v291, %v648
  %v1499 = vmax.f32 %v294, %v651
  %v1500 = vmax.f32 %v299, %v656
  %v1501 = vmax.f32 %v302, %v659
  %v1502 = vmax.f32 %v307, %v664
  %v1503 = vmax.f32 %v310, %v667
  %v1504 = vmax.f32 %v315, %v672
  %v1505 = vmax.f32 %v318, %v675
  %v1506 = vmax.f32 %v323, %v680
  %v1507 = vmax.f32 %v326, %v683
  %v1508 = vmax.f32 %v331, %v688
  %v1509 = vmax.f32 %v334, %v691
  %v1510 = vmax.f32 %v339, %v696
  %v1511 = vmax.f32 %v342, %v699
  %v1512 = vmax.f32 %v347, %v704
  %v1513 = vmax.f32 %v350, %v707
  %v1514 = vmax.f32 %v355, %v712
  %v1515 = vmax.f32 %v358, %v715
  %v1516 = vmax.f32 %v363, %v720
  %v1517 = vmax.f32 %v366, %v723
  %v1518 = vmax.f32 %v371, %v728
  %v1519 = vmax.f32 %v374, %v731
  %v1520 = vmax.f32 %v379, %v736
  %v1521 = vmax.f32 %v382, %v739
  %v1522 = vmax.f32 %v387, %v744
  %v1523 = vmax.f32 %v390, %v747
  %v1524 = vmax.f32 %v395, %v752
  %v1525 = vmax.f32 %v398, %v755
  %v1526 = vmax.f32 %v403, %v760
  %v1527 = vmax.f32 %v406, %v763
  %v1528 = vmax.f32 %v411, %v768
  %v1529 = vmax.f32 %v414, %v771
  %v1530 = vmax.f32 %v419, %v776
  %v1531 = vmax.f32 %v422, %v779
  %v1532 = vmax.f32 %v997, %v1354
  %v1533 = vmax.f32 %v1000, %v1357
  %v1534 = vmax.f32 %v1005, %v1362
  %v1535 = vmax.f32 %v1008, %v1365
  %v1536 = vmax.f32 %v1013, %v1370
  %v1537 = vmax.f32 %v1016, %v1373
  %v1538 = vmax.f32 %v1021, %v1378
  %v1539 = vmax.f32 %v1024, %v1381
  %v1540 = vmax.f32 %v1029, %v1386
  %v1541 = vmax.f32 %v1032, %v1389
  %v1542 = vmax.f32 %v1037, %v1394
  %v1543 = vmax.f32 %v1040, %v1397
  %v1544 = vmax.f32 %v1045, %v1402
  %v1545 = vmax.f32 %v1048, %v1405
  %v1546 = vmax.f32 %v1053, %v1410
  %v1547 = vmax.f32 %v1056, %v1413
  %v1548 = vmax.f32 %v1061, %v1418
  %v1549 = vmax.f32 %v1064, %v1421
  %v1550 = vmax.f32 %v1069, %v1426
  %v1551 = vmax.f32 %v1072, %v1429
  %v1552 = vmax.f32 %v1077, %v1434
  %v1553 = vmax.f32 %v1080, %v1437
  %v1554 = vmax.f32 %v1085, %v1442
  %v1555 = vmax.f32 %v1088, %v1445
  %v1556 = vmax.f32 %v1093, %v1450
  %v1557 = vmax.f32 %v1096, %v1453
  %v1558 = vmax.f32 %v1101, %v1458
  %v1559 = vmax.f32 %v1104, %v1461
  %v1560 = vmax.f32 %v1109, %v1466
  %v1561 = vmax.f32 %v1112, %v1469
  %v1562 = vmax.f32 %v1117, %v1474
  %v1563 = vmax.f32 %v1120, %v1477
  %v1564 = vmax.f32 %v1125, %v1482
  %v1565 = vmax.f32 %v1128, %v1485
  %v1566 = vmax.f32 %v1133, %v1490
  %v1567 = vmax.f32 %v1136, %v1493
  %v1568 = vmax.f32 %v1496, %v1532
  %v1569 = vmax.f32 %v1497, %v1533
  %v1570 = vmax.f32 %v1498, %v1534
  %v1571 = vmax.f32 %v1499, %v1535
  %v1572 = vmax.f32 %v1500, %v1536
  %v1573 = vmax.f32 %v1501, %v1537
  %v1574 = vmax.f32 %v1502, %v1538
  %v1575 = vmax.f32 %v1503, %v1539
  %v1576 = vmax.f32 %v1504, %v1540
  %v1577 = vmax.f32 %v1505, %v1541
  %v1578 = vmax.f32 %v1506, %v1542
  %v1579 = vmax.f32 %v1507, %v1543
  %v1580 = vmax.f32 %v1508, %v1544
  %v1581 = vmax.f32 %v1509, %v1545
  %v1582 = vmax.f32 %v1510, %v1546
  %v1583 = vmax.f32 %v1511, %v1547
  %v1584 = vmax.f32 %v1512, %v1548
  %v1585 = vmax.f32 %v1513, %v1549
  %v1586 = vmax.f32 %v1514, %v1550
  %v1587 = vmax.f32 %v1515, %v1551
  %v1588 = vmax.f32 %v1516, %v1552
  %v1589 = vmax.f32 %v1517, %v1553
  %v1590 = vmax.f32 %v1518, %v1554
  %v1591 = vmax.f32 %v1519, %v1555
  %v1592 = vmax.f32 %v1520, %v1556
  %v1593 = vmax.f32 %v1521, %v1557
  %v1594 = vmax.f32 %v1522, %v1558
  %v1595 = vmax.f32 %v1523, %v1559
  %v1596 = vmax.f32 %v1524, %v1560
  %v1597 = vmax.f32 %v1525, %v1561
  %v1598 = vmax.f32 %v1526, %v1562
  %v1599 = vmax.f32 %v1527, %v1563
  %v1600 = vmax.f32 %v1528, %v1564
  %v1601 = vmax.f32 %v1529, %v1565
  %v1602 = vmax.f32 %v1530, %v1566
  %v1603 = vmax.f32 %v1531, %v1567
  %v1604 = vmax.f32 %v1568, 0.0
  %v1605 = vmax.f32 %v1569, 0.0
  %v1606 = vmax.f32 %v1570, 0.0
  %v1607 = vmax.f32 %v1571, 0.0
  %v1608 = vmax.f32 %v1572, 0.0
  %v1609 = vmax.f32 %v1573, 0.0
  %v1610 = vmax.f32 %v1574, 0.0
  %v1611 = vmax.f32 %v1575, 0.0
  %v1612 = vmax.f32 %v1576, 0.0
  %v1613 = vmax.f32 %v1577, 0.0
  %v1614 = vmax.f32 %v1578, 0.0
  %v1615 = vmax.f32 %v1579, 0.0
  %v1616 = vmax.f32 %v1580, 0.0
  %v1617 = vmax.f32 %v1581, 0.0
  %v1618 = vmax.f32 %v1582, 0.0
  %v1619 = vmax.f32 %v1583, 0.0
  %v1620 = vmax.f32 %v1584, 0.0
  %v1621 = vmax.f32 %v1585, 0.0
  %v1622 = vmax.f32 %v1586, 0.0
  %v1623 = vmax.f32 %v1587, 0.0
  %v1624 = vmax.f32 %v1588, 0.0
  %v1625 = vmax.f32 %v1589, 0.0
  %v1626 = vmax.f32 %v1590, 0.0
  %v1627 = vmax.f32 %v1591, 0.0
  %v1628 = vmax.f32 %v1592, 0.0
  %v1629 = vmax.f32 %v1593, 0.0
  %v1630 = vmax.f32 %v1594, 0.0
  %v1631 = vmax.f32 %v1595, 0.0
  %v1632 = vmax.f32 %v1596, 0.0
  %v1633 = vmax.f32 %v1597, 0.0
  %v1634 = vmax.f32 %v1598, 0.0
  %v1635 = vmax.f32 %v1599, 0.0
  %v1636 = vmax.f32 %v1600, 0.0
  %v1637 = vmax.f32 %v1601, 0.0
  %v1638 = vmax.f32 %v1602, 0.0
  %v1639 = vmax.f32 %v1603, 0.0
  %v1640 = vpack.c.bf16 %v1605, %v1604
  %v1641 = vpack.c.bf16 %v1607, %v1606
  %v1642 = vpack.c.bf16 %v1609, %v1608
  %v1643 = vpack.c.bf16 %v1611, %v1610
  %v1644 = vpack.c.bf16 %v1613, %v1612
  %v1645 = vpack.c.bf16 %v1615, %v1614
  %v1646 = vpack.c.bf16 %v1617, %v1616
  %v1647 = vpack.c.bf16 %v1619, %v1618
  %v1648 = vpack.c.bf16 %v1621, %v1620
  %v1649 = vpack.c.bf16 %v1623, %v1622
  %v1650 = vpack.c.bf16 %v1625, %v1624
  %v1651 = vpack.c.bf16 %v1627, %v1626
  %v1652 = vpack.c.bf16 %v1629, %v1628
  %v1653 = vpack.c.bf16 %v1631, %v1630
  %v1654 = vpack.c.bf16 %v1633, %v1632
  %v1655 = vpack.c.bf16 %v1635, %v1634
  %v1656 = vpack.c.bf16 %v1637, %v1636
  %v1657 = vpack.c.bf16 %v1639, %v1638
  %v1676 = vunpack.c.l.b16 %v1640
  %v1677 = vunpack.c.h.b16 %v1640
  %v1678 = vunpack.c.l.b16 %v1641
  %v1679 = vunpack.c.h.b16 %v1641
  %v1680 = vunpack.c.l.b16 %v1642
  %v1681 = vunpack.c.h.b16 %v1642
  %v1682 = vunpack.c.l.b16 %v1643
  %v1683 = vunpack.c.h.b16 %v1643
  %v1684 = vunpack.c.l.b16 %v1644
  %v1685 = vunpack.c.h.b16 %v1644
  %v1686 = vunpack.c.l.b16 %v1645
  %v1687 = vunpack.c.h.b16 %v1645
  %v1688 = vunpack.c.l.b16 %v1646
  %v1689 = vunpack.c.h.b16 %v1646
  %v1690 = vunpack.c.l.b16 %v1647
  %v1691 = vunpack.c.h.b16 %v1647
  %v1692 = vunpack.c.l.b16 %v1648
  %v1693 = vunpack.c.h.b16 %v1648
  %v1694 = vunpack.c.l.b16 %v1649
  %v1695 = vunpack.c.h.b16 %v1649
  %v1696 = vunpack.c.l.b16 %v1650
  %v1697 = vunpack.c.h.b16 %v1650
  %v1698 = vunpack.c.l.b16 %v1651
  %v1699 = vunpack.c.h.b16 %v1651
  %v1700 = vunpack.c.l.b16 %v1652
  %v1701 = vunpack.c.h.b16 %v1652
  %v1702 = vunpack.c.l.b16 %v1653
  %v1703 = vunpack.c.h.b16 %v1653
  %v1704 = vunpack.c.l.b16 %v1654
  %v1705 = vunpack.c.h.b16 %v1654
  %v1706 = vunpack.c.l.b16 %v1655
  %v1707 = vunpack.c.h.b16 %v1655
  %v1708 = vunpack.c.l.b16 %v1656
  %v1709 = vunpack.c.h.b16 %v1656
  %v1710 = vunpack.c.l.b16 %v1657
  %v1711 = vunpack.c.h.b16 %v1657
  %v1712 = vpack.c.b16 %v1676, %v1676
  %v1713 = vpack.c.b16 %v1677, %v1677
  %v1714 = vpack.c.b16 %v1678, %v1678
  %v1715 = vpack.c.b16 %v1679, %v1679
  %v1716 = vpack.c.b16 %v1680, %v1680
  %v1717 = vpack.c.b16 %v1681, %v1681
  %v1718 = vpack.c.b16 %v1682, %v1682
  %v1719 = vpack.c.b16 %v1683, %v1683
  %v1720 = vpack.c.b16 %v1684, %v1684
  %v1721 = vpack.c.b16 %v1685, %v1685
  %v1722 = vpack.c.b16 %v1686, %v1686
  %v1723 = vpack.c.b16 %v1687, %v1687
  %v1724 = vpack.c.b16 %v1688, %v1688
  %v1725 = vpack.c.b16 %v1689, %v1689
  %v1726 = vpack.c.b16 %v1690, %v1690
  %v1727 = vpack.c.b16 %v1691, %v1691
  %v1728 = vpack.c.b16 %v1692, %v1692
  %v1729 = vpack.c.b16 %v1693, %v1693
  %v1730 = vpack.c.b16 %v1694, %v1694
  %v1731 = vpack.c.b16 %v1695, %v1695
  %v1732 = vpack.c.b16 %v1696, %v1696
  %v1733 = vpack.c.b16 %v1697, %v1697
  %v1734 = vpack.c.b16 %v1698, %v1698
  %v1735 = vpack.c.b16 %v1699, %v1699
  %v1736 = vpack.c.b16 %v1700, %v1700
  %v1737 = vpack.c.b16 %v1701, %v1701
  %v1738 = vpack.c.b16 %v1702, %v1702
  %v1739 = vpack.c.b16 %v1703, %v1703
  %v1740 = vpack.c.b16 %v1704, %v1704
  %v1741 = vpack.c.b16 %v1705, %v1705
  %v1742 = vpack.c.b16 %v1706, %v1706
  %v1743 = vpack.c.b16 %v1707, %v1707
  %v1744 = vpack.c.b16 %v1708, %v1708
  %v1745 = vpack.c.b16 %v1709, %v1709
  %v1746 = vpack.c.b16 %v1710, %v1710
  %v1747 = vpack.c.b16 %v1711, %v1711
  %vm1784 = vcmask 257024
  %1785 = vst.msk [vmem:[%s5] sm:$0xf] %vm1784, %v1712
  %1786 = vst.msk [vmem:[%s5 + $0x4] sm:$0xf] %vm1784, %v1713
  %1787 = vst.msk [vmem:[%s5 + $0x8] sm:$0xf] %vm1784, %v1714
  %1788 = vst.msk [vmem:[%s5 + $0xc] sm:$0xf] %vm1784, %v1715
  %1789 = vst.msk [vmem:[%s5 + $0x10] sm:$0xf] %vm1784, %v1716
  %1790 = vst.msk [vmem:[%s5 + $0x14] sm:$0xf] %vm1784, %v1717
  %1791 = vst.msk [vmem:[%s5 + $0x18] sm:$0xf] %vm1784, %v1718
  %1792 = vst.msk [vmem:[%s5 + $0x1c] sm:$0xf] %vm1784, %v1719
  %1793 = vst.msk [vmem:[%s5 + $0x20] sm:$0xf] %vm1784, %v1720
  %1794 = vst.msk [vmem:[%s5 + $0x24] sm:$0xf] %vm1784, %v1721
  %1795 = vst.msk [vmem:[%s5 + $0x28] sm:$0xf] %vm1784, %v1722
  %1796 = vst.msk [vmem:[%s5 + $0x2c] sm:$0xf] %vm1784, %v1723
  %1797 = vst.msk [vmem:[%s5 + $0x30] sm:$0xf] %vm1784, %v1724
  %1798 = vst.msk [vmem:[%s5 + $0x34] sm:$0xf] %vm1784, %v1725
  %1799 = vst.msk [vmem:[%s5 + $0x38] sm:$0xf] %vm1784, %v1726
  %1800 = vst.msk [vmem:[%s5 + $0x3c] sm:$0xf] %vm1784, %v1727
  %1801 = vst.msk [vmem:[%s5 + $0x40] sm:$0xf] %vm1784, %v1728
  %1802 = vst.msk [vmem:[%s5 + $0x44] sm:$0xf] %vm1784, %v1729
  %1803 = vst.msk [vmem:[%s5 + $0x48] sm:$0xf] %vm1784, %v1730
  %1804 = vst.msk [vmem:[%s5 + $0x4c] sm:$0xf] %vm1784, %v1731
  %1805 = vst.msk [vmem:[%s5 + $0x50] sm:$0xf] %vm1784, %v1732
  %1806 = vst.msk [vmem:[%s5 + $0x54] sm:$0xf] %vm1784, %v1733
  %1807 = vst.msk [vmem:[%s5 + $0x58] sm:$0xf] %vm1784, %v1734
  %1808 = vst.msk [vmem:[%s5 + $0x5c] sm:$0xf] %vm1784, %v1735
  %1809 = vst.msk [vmem:[%s5 + $0x60] sm:$0xf] %vm1784, %v1736
  %1810 = vst.msk [vmem:[%s5 + $0x64] sm:$0xf] %vm1784, %v1737
  %1811 = vst.msk [vmem:[%s5 + $0x68] sm:$0xf] %vm1784, %v1738
  %1812 = vst.msk [vmem:[%s5 + $0x6c] sm:$0xf] %vm1784, %v1739
  %1813 = vst.msk [vmem:[%s5 + $0x70] sm:$0xf] %vm1784, %v1740
  %1814 = vst.msk [vmem:[%s5 + $0x74] sm:$0xf] %vm1784, %v1741
  %1815 = vst.msk [vmem:[%s5 + $0x78] sm:$0xf] %vm1784, %v1742
  %1816 = vst.msk [vmem:[%s5 + $0x7c] sm:$0xf] %vm1784, %v1743
  %1817 = vst.msk [vmem:[%s5 + $0x80] sm:$0xf] %vm1784, %v1744
  %1818 = vst.msk [vmem:[%s5 + $0x84] sm:$0xf] %vm1784, %v1745
  %1819 = vst.msk [vmem:[%s5 + $0x88] sm:$0xf] %vm1784, %v1746
  %1820 = vst.msk [vmem:[%s5 + $0x8c] sm:$0xf] %vm1784, %v1747
  // Predicated region
  $region22: #{forward.3} parent=0 // pred_check
    _
  $region23: #{forward.3} parent=0 // pred_check_branch
    %1822 = sbr.rel (0) target = $region25
  $region24: #{forward.3} parent=0 // pred_region
    _
  $region25: #{forward.3} parent=0 // pred_fallthru
    _
  // Predicated region
  $region26: #{forward.3} parent=0 // pred_check
    _
  $region27: #{forward.3} parent=0 // pred_check_branch
    %1824 = sbr.rel (0) target = $region29
  $region28: #{forward.3} parent=0 // pred_region
    _
  $region29: #{forward.3} parent=0 // pred_fallthru
    _

// kernel: forward.4
$region0: #{forward.4}
  #allocation0 [shape = 'u32[]', space=smem, size = 0x4, offset = 0x4, fixed_abs, tag = 'smem constant byte address 0x4 - core index']
  #allocation1 [shape = 'u32[144,128]{1,0:T(1,128)}', space=vmem, size = 0x12000, scoped, tag = 'internal scratch']
  %s0 = inlined_call_operand.vmem [shape: bf16[32,800], index: 0, kind: input, shape index: {}]
  %s1 = inlined_call_operand.vmem [shape: bf16[32,800], index: 1, kind: input, shape index: {}]
  %s2 = inlined_call_operand.vmem [shape: bf16[32,800], index: 2, kind: input, shape index: {}]
  %s3 = inlined_call_operand.vmem [shape: bf16[32,800], index: 3, kind: input, shape index: {}]
  %s4 = inlined_call_operand.vmem [shape: bf16[800,32], index: 4, kind: input, shape index: {}]
  %s5 = inlined_call_operand.vmem [shape: bf16[32,32], index: 5, kind: output, shape index: {}]
  %s6 = sld [smem:[#allocation0]]
  $region30: #{forward.4} parent=0
    _
  %s8 = ssub.s32 1, %s6
  %s9 = scalar_select 0, %s8, %s6
  // Predicated region
  $region2: #{forward.4} parent=0 // pred_check
    _
  $region3: #{forward.4} parent=0 // pred_check_branch
    %11 = sbr.rel (0) target = $region5
  $region4: #{forward.4} parent=0 // pred_region
    _
  $region5: #{forward.4} parent=0 // pred_fallthru
    _
  // Predicated region
  $region6: #{forward.4} parent=0 // pred_check
    _
  $region7: #{forward.4} parent=0 // pred_check_branch
    %13 = sbr.rel (0) target = $region9
  $region8: #{forward.4} parent=0 // pred_region
    _
  $region9: #{forward.4} parent=0 // pred_fallthru
    _
  // Predicated region
  $region10: #{forward.4} parent=0 // pred_check
    _
  $region11: #{forward.4} parent=0 // pred_check_branch
    %15 = sbr.rel (0) target = $region13
  $region12: #{forward.4} parent=0 // pred_region
    _
  $region13: #{forward.4} parent=0 // pred_fallthru
    _
  // Predicated region
  $region14: #{forward.4} parent=0 // pred_check
    _
  $region15: #{forward.4} parent=0 // pred_check_branch
    %17 = sbr.rel (0) target = $region17
  $region16: #{forward.4} parent=0 // pred_region
    _
  $region17: #{forward.4} parent=0 // pred_fallthru
    _
  // Predicated region
  $region18: #{forward.4} parent=0 // pred_check
    _
  $region19: #{forward.4} parent=0 // pred_check_branch
    %19 = sbr.rel (0) target = $region21
  $region20: #{forward.4} parent=0 // pred_region
    _
  $region21: #{forward.4} parent=0 // pred_fallthru
    _
  %v21 = vld [vmem:[%s4] sm:$0xf]
  %v22 = vld [vmem:[%s4 + $0x4] sm:$0xf]
  %v23 = vld [vmem:[%s4 + $0x8] sm:$0xf]
  %v24 = vld [vmem:[%s4 + $0xc] sm:$0xf]
  %v25 = vld [vmem:[%s4 + $0x10] sm:$0xf]
  %v26 = vld [vmem:[%s4 + $0x14] sm:$0xf]
  %v27 = vld [vmem:[%s4 + $0x18] sm:$0xf]
  %v28 = vld [vmem:[%s4 + $0x1c] sm:$0xf]
  %v29 = vld [vmem:[%s4 + $0x20] sm:$0xf]
  %v30 = vld [vmem:[%s4 + $0x24] sm:$0xf]
  %v31 = vld [vmem:[%s4 + $0x28] sm:$0xf]
  %v32 = vld [vmem:[%s4 + $0x2c] sm:$0xf]
  %v33 = vld [vmem:[%s4 + $0x30] sm:$0xf]
  %v34 = vld [vmem:[%s4 + $0x34] sm:$0xf]
  %v35 = vld [vmem:[%s4 + $0x38] sm:$0xf]
  %v36 = vld [vmem:[%s4 + $0x3c] sm:$0xf]
  %v37 = vld [vmem:[%s4 + $0x40] sm:$0xf]
  %v38 = vld [vmem:[%s4 + $0x44] sm:$0xf]
  %v39 = vld [vmem:[%s4 + $0x48] sm:$0xf]
  %v40 = vld [vmem:[%s4 + $0x4c] sm:$0xf]
  %v41 = vld [vmem:[%s4 + $0x50] sm:$0xf]
  %v42 = vld [vmem:[%s4 + $0x54] sm:$0xf]
  %v43 = vld [vmem:[%s4 + $0x58] sm:$0xf]
  %v44 = vld [vmem:[%s4 + $0x5c] sm:$0xf]
  %v45 = vld [vmem:[%s4 + $0x60] sm:$0xf]
  %v46 = vld [vmem:[%s4 + $0x64] sm:$0xf]
  %v47 = vld [vmem:[%s4 + $0x68] sm:$0xf]
  %v48 = vld [vmem:[%s4 + $0x6c] sm:$0xf]
  %v49 = vld [vmem:[%s4 + $0x70] sm:$0xf]
  %v50 = vld [vmem:[%s4 + $0x74] sm:$0xf]
  %v51 = vld [vmem:[%s4 + $0x78] sm:$0xf]
  %v52 = vld [vmem:[%s4 + $0x7c] sm:$0xf]
  %v53 = vld [vmem:[%s4 + $0x80] sm:$0xf]
  %v54 = vld [vmem:[%s4 + $0x84] sm:$0xf]
  %v55 = vld [vmem:[%s4 + $0x88] sm:$0xf]
  %v56 = vld [vmem:[%s4 + $0x8c] sm:$0xf]
  %v57 = vld [vmem:[%s4 + $0x90] sm:$0xf]
  %v58 = vld [vmem:[%s4 + $0x94] sm:$0xf]
  %v59 = vld [vmem:[%s4 + $0x98] sm:$0xf]
  %v60 = vld [vmem:[%s4 + $0x9c] sm:$0xf]
  %v61 = vld [vmem:[%s4 + $0xa0] sm:$0xf]
  %v62 = vld [vmem:[%s4 + $0xa4] sm:$0xf]
  %v63 = vld [vmem:[%s4 + $0xa8] sm:$0xf]
  %v64 = vld [vmem:[%s4 + $0xac] sm:$0xf]
  %v65 = vld [vmem:[%s4 + $0xb0] sm:$0xf]
  %v66 = vld [vmem:[%s4 + $0xb4] sm:$0xf]
  %v67 = vld [vmem:[%s4 + $0xb8] sm:$0xf]
  %v68 = vld [vmem:[%s4 + $0xbc] sm:$0xf]
  %v69 = vld [vmem:[%s4 + $0xc0] sm:$0xf]
  %v70 = vld [vmem:[%s4 + $0xc4] sm:$0xf]
  %v71 = vld [vmem:[%s4 + $0xc8] sm:$0xf]
  %v72 = vld [vmem:[%s4 + $0xcc] sm:$0xf]
  %v73 = vld [vmem:[%s4 + $0xd0] sm:$0xf]
  %v74 = vld [vmem:[%s4 + $0xd4] sm:$0xf]
  %v75 = vld [vmem:[%s4 + $0xd8] sm:$0xf]
  %v76 = vld [vmem:[%s4 + $0xdc] sm:$0xf]
  %v77 = vld [vmem:[%s4 + $0xe0] sm:$0xf]
  %v78 = vld [vmem:[%s4 + $0xe4] sm:$0xf]
  %v79 = vld [vmem:[%s4 + $0xe8] sm:$0xf]
  %v80 = vld [vmem:[%s4 + $0xec] sm:$0xf]
  %v81 = vld [vmem:[%s4 + $0xf0] sm:$0xf]
  %v82 = vld [vmem:[%s4 + $0xf4] sm:$0xf]
  %v83 = vld [vmem:[%s4 + $0xf8] sm:$0xf]
  %v84 = vld [vmem:[%s4 + $0xfc] sm:$0xf]
  %v85 = vld [vmem:[%s4 + $0x100] sm:$0xf]
  %v86 = vld [vmem:[%s4 + $0x104] sm:$0xf]
  %v87 = vld [vmem:[%s4 + $0x108] sm:$0xf]
  %v88 = vld [vmem:[%s4 + $0x10c] sm:$0xf]
  %v89 = vld [vmem:[%s4 + $0x110] sm:$0xf]
  %v90 = vld [vmem:[%s4 + $0x114] sm:$0xf]
  %v91 = vld [vmem:[%s4 + $0x118] sm:$0xf]
  %v92 = vld [vmem:[%s4 + $0x11c] sm:$0xf]
  %v93 = vld [vmem:[%s4 + $0x120] sm:$0xf]
  %v94 = vld [vmem:[%s4 + $0x124] sm:$0xf]
  %v95 = vld [vmem:[%s4 + $0x128] sm:$0xf]
  %v96 = vld [vmem:[%s4 + $0x12c] sm:$0xf]
  %v97 = vld [vmem:[%s4 + $0x130] sm:$0xf]
  %v98 = vld [vmem:[%s4 + $0x134] sm:$0xf]
  %v99 = vld [vmem:[%s4 + $0x138] sm:$0xf]
  %v100 = vld [vmem:[%s4 + $0x13c] sm:$0xf]
  %v101 = vld [vmem:[%s4 + $0x140] sm:$0xf]
  %v102 = vld [vmem:[%s4 + $0x144] sm:$0xf]
  %v103 = vld [vmem:[%s4 + $0x148] sm:$0xf]
  %v104 = vld [vmem:[%s4 + $0x14c] sm:$0xf]
  %v105 = vld [vmem:[%s4 + $0x150] sm:$0xf]
  %v106 = vld [vmem:[%s4 + $0x154] sm:$0xf]
  %v107 = vld [vmem:[%s4 + $0x158] sm:$0xf]
  %v108 = vld [vmem:[%s4 + $0x15c] sm:$0xf]
  %v109 = vld [vmem:[%s4 + $0x160] sm:$0xf]
  %v110 = vld [vmem:[%s4 + $0x164] sm:$0xf]
  %v111 = vld [vmem:[%s4 + $0x168] sm:$0xf]
  %v112 = vld [vmem:[%s4 + $0x16c] sm:$0xf]
  %v113 = vld [vmem:[%s4 + $0x170] sm:$0xf]
  %v114 = vld [vmem:[%s4 + $0x174] sm:$0xf]
  %v115 = vld [vmem:[%s4 + $0x178] sm:$0xf]
  %v116 = vld [vmem:[%s4 + $0x17c] sm:$0xf]
  %v117 = vld [vmem:[%s4 + $0x180] sm:$0xf]
  %v118 = vld [vmem:[%s4 + $0x184] sm:$0xf]
  %v119 = vld [vmem:[%s4 + $0x188] sm:$0xf]
  %v120 = vld [vmem:[%s4 + $0x18c] sm:$0xf]
  %v121 = vld [vmem:[%s0] sm:$0xff]
  %v122 = vld [vmem:[%s0 + $0x8] sm:$0xff]
  %v123 = vld [vmem:[%s0 + $0x10] sm:$0xff]
  %v124 = vld [vmem:[%s0 + $0x18] sm:$0xf]
  %v125 = vld [vmem:[%s0 + $0x1c] sm:$0xff]
  %v126 = vld [vmem:[%s0 + $0x24] sm:$0xff]
  %v127 = vld [vmem:[%s0 + $0x2c] sm:$0xff]
  %v128 = vld [vmem:[%s0 + $0x34] sm:$0xf]
  %v129 = vld [vmem:[%s0 + $0x38] sm:$0xff]
  %v130 = vld [vmem:[%s0 + $0x40] sm:$0xff]
  %v131 = vld [vmem:[%s0 + $0x48] sm:$0xff]
  %v132 = vld [vmem:[%s0 + $0x50] sm:$0xf]
  %v133 = vld [vmem:[%s0 + $0x54] sm:$0xff]
  %v134 = vld [vmem:[%s0 + $0x5c] sm:$0xff]
  %v135 = vld [vmem:[%s0 + $0x64] sm:$0xff]
  %v136 = vld [vmem:[%s0 + $0x6c] sm:$0xf]
  %v153 = vunpack.c.l.b16 %v121
  %v154 = vunpack.c.h.b16 %v121
  %v155 = vunpack.c.l.b16 %v122
  %v156 = vunpack.c.h.b16 %v122
  %v157 = vunpack.c.l.b16 %v123
  %v158 = vunpack.c.h.b16 %v123
  %v159 = vunpack.c.l.b16 %v124
  %v160 = vunpack.c.l.b16 %v125
  %v161 = vunpack.c.h.b16 %v125
  %v162 = vunpack.c.l.b16 %v126
  %v163 = vunpack.c.h.b16 %v126
  %v164 = vunpack.c.l.b16 %v127
  %v165 = vunpack.c.h.b16 %v127
  %v166 = vunpack.c.l.b16 %v128
  %v167 = vunpack.c.l.b16 %v129
  %v168 = vunpack.c.h.b16 %v129
  %v169 = vunpack.c.l.b16 %v130
  %v170 = vunpack.c.h.b16 %v130
  %v171 = vunpack.c.l.b16 %v131
  %v172 = vunpack.c.h.b16 %v131
  %v173 = vunpack.c.l.b16 %v132
  %v174 = vunpack.c.l.b16 %v133
  %v175 = vunpack.c.h.b16 %v133
  %v176 = vunpack.c.l.b16 %v134
  %v177 = vunpack.c.h.b16 %v134
  %v178 = vunpack.c.l.b16 %v135
  %v179 = vunpack.c.h.b16 %v135
  %v180 = vunpack.c.l.b16 %v136
  %v181 = vpack.c.b16 %v160, %v153
  %v182 = vpack.c.b16 %v161, %v154
  %v183 = vpack.c.b16 %v162, %v155
  %v184 = vpack.c.b16 %v163, %v156
  %v185 = vpack.c.b16 %v164, %v157
  %v186 = vpack.c.b16 %v165, %v158
  %v187 = vpack.c.b16 %v166, %v159
  %v188 = vpack.c.b16 %v174, %v167
  %v189 = vpack.c.b16 %v175, %v168
  %v190 = vpack.c.b16 %v176, %v169
  %v191 = vpack.c.b16 %v177, %v170
  %v192 = vpack.c.b16 %v178, %v171
  %v193 = vpack.c.b16 %v179, %v172
  %v194 = vpack.c.b16 %v180, %v173
  %v307 = vunpack.c.l.b16 %v21
  %v308 = vunpack.c.l.b16 %v22
  %v309 = vunpack.c.l.b16 %v23
  %v310 = vunpack.c.l.b16 %v24
  %v311 = vunpack.c.l.b16 %v25
  %v312 = vunpack.c.l.b16 %v26
  %v313 = vunpack.c.l.b16 %v27
  %v314 = vunpack.c.l.b16 %v28
  %v315 = vunpack.c.l.b16 %v29
  %v316 = vunpack.c.l.b16 %v30
  %v317 = vunpack.c.l.b16 %v31
  %v318 = vunpack.c.l.b16 %v32
  %v319 = vunpack.c.l.b16 %v33
  %v320 = vunpack.c.l.b16 %v34
  %v321 = vunpack.c.l.b16 %v35
  %v322 = vunpack.c.l.b16 %v36
  %v323 = vunpack.c.l.b16 %v37
  %v324 = vunpack.c.l.b16 %v38
  %v325 = vunpack.c.l.b16 %v39
  %v326 = vunpack.c.l.b16 %v40
  %v327 = vunpack.c.l.b16 %v41
  %v328 = vunpack.c.l.b16 %v42
  %v329 = vunpack.c.l.b16 %v43
  %v330 = vunpack.c.l.b16 %v44
  %v331 = vunpack.c.l.b16 %v45
  %v332 = vunpack.c.l.b16 %v46
  %v333 = vunpack.c.l.b16 %v47
  %v334 = vunpack.c.l.b16 %v48
  %v335 = vunpack.c.l.b16 %v49
  %v336 = vunpack.c.l.b16 %v50
  %v337 = vunpack.c.l.b16 %v51
  %v338 = vunpack.c.l.b16 %v52
  %v339 = vunpack.c.l.b16 %v53
  %v340 = vunpack.c.l.b16 %v54
  %v341 = vunpack.c.l.b16 %v55
  %v342 = vunpack.c.l.b16 %v56
  %v343 = vunpack.c.l.b16 %v57
  %v344 = vunpack.c.l.b16 %v58
  %v345 = vunpack.c.l.b16 %v59
  %v346 = vunpack.c.l.b16 %v60
  %v347 = vunpack.c.l.b16 %v61
  %v348 = vunpack.c.l.b16 %v62
  %v349 = vunpack.c.l.b16 %v63
  %v350 = vunpack.c.l.b16 %v64
  %v351 = vunpack.c.l.b16 %v65
  %v352 = vunpack.c.l.b16 %v66
  %v353 = vunpack.c.l.b16 %v67
  %v354 = vunpack.c.l.b16 %v68
  %v355 = vunpack.c.l.b16 %v69
  %v356 = vunpack.c.l.b16 %v70
  %v357 = vunpack.c.l.b16 %v71
  %v358 = vunpack.c.l.b16 %v72
  %v359 = vunpack.c.l.b16 %v73
  %v360 = vunpack.c.l.b16 %v74
  %v361 = vunpack.c.l.b16 %v75
  %v362 = vunpack.c.l.b16 %v76
  %v363 = vunpack.c.l.b16 %v77
  %v364 = vunpack.c.l.b16 %v78
  %v365 = vunpack.c.l.b16 %v79
  %v366 = vunpack.c.l.b16 %v80
  %v367 = vunpack.c.l.b16 %v81
  %v368 = vunpack.c.l.b16 %v82
  %v369 = vunpack.c.l.b16 %v83
  %v370 = vunpack.c.l.b16 %v84
  %v371 = vunpack.c.l.b16 %v85
  %v372 = vunpack.c.l.b16 %v86
  %v373 = vunpack.c.l.b16 %v87
  %v374 = vunpack.c.l.b16 %v88
  %v375 = vunpack.c.l.b16 %v89
  %v376 = vunpack.c.l.b16 %v90
  %v377 = vunpack.c.l.b16 %v91
  %v378 = vunpack.c.l.b16 %v92
  %v379 = vunpack.c.l.b16 %v93
  %v380 = vunpack.c.l.b16 %v94
  %v381 = vunpack.c.l.b16 %v95
  %v382 = vunpack.c.l.b16 %v96
  %v383 = vunpack.c.l.b16 %v97
  %v384 = vunpack.c.l.b16 %v98
  %v385 = vunpack.c.l.b16 %v99
  %v386 = vunpack.c.l.b16 %v100
  %v387 = vunpack.c.l.b16 %v101
  %v388 = vunpack.c.l.b16 %v102
  %v389 = vunpack.c.l.b16 %v103
  %v390 = vunpack.c.l.b16 %v104
  %v391 = vunpack.c.l.b16 %v105
  %v392 = vunpack.c.l.b16 %v106
  %v393 = vunpack.c.l.b16 %v107
  %v394 = vunpack.c.l.b16 %v108
  %v395 = vunpack.c.l.b16 %v109
  %v396 = vunpack.c.l.b16 %v110
  %v397 = vunpack.c.l.b16 %v111
  %v398 = vunpack.c.l.b16 %v112
  %v399 = vunpack.c.l.b16 %v113
  %v400 = vunpack.c.l.b16 %v114
  %v401 = vunpack.c.l.b16 %v115
  %v402 = vunpack.c.l.b16 %v116
  %v403 = vunpack.c.l.b16 %v117
  %v404 = vunpack.c.l.b16 %v118
  %v405 = vunpack.c.l.b16 %v119
  %v406 = vunpack.c.l.b16 %v120
  %v407 = vpack.c.b16 %v308, %v307
  %v408 = vpack.c.b16 %v310, %v309
  %v409 = vpack.c.b16 %v312, %v311
  %v410 = vpack.c.b16 %v314, %v313
  %v411 = vpack.c.b16 %v316, %v315
  %v412 = vpack.c.b16 %v318, %v317
  %v413 = vpack.c.b16 %v320, %v319
  %v414 = vpack.c.b16 %v322, %v321
  %v415 = vpack.c.b16 %v324, %v323
  %v416 = vpack.c.b16 %v326, %v325
  %v417 = vpack.c.b16 %v328, %v327
  %v418 = vpack.c.b16 %v330, %v329
  %v419 = vpack.c.b16 %v332, %v331
  %v420 = vpack.c.b16 %v334, %v333
  %v421 = vpack.c.b16 %v336, %v335
  %v422 = vpack.c.b16 %v338, %v337
  %v423 = vpack.c.b16 %v340, %v339
  %v424 = vpack.c.b16 %v342, %v341
  %v425 = vpack.c.b16 %v344, %v343
  %v426 = vpack.c.b16 %v346, %v345
  %v427 = vpack.c.b16 %v348, %v347
  %v428 = vpack.c.b16 %v350, %v349
  %v429 = vpack.c.b16 %v352, %v351
  %v430 = vpack.c.b16 %v354, %v353
  %v431 = vpack.c.b16 %v356, %v355
  %v432 = vpack.c.b16 %v358, %v357
  %v433 = vpack.c.b16 %v360, %v359
  %v434 = vpack.c.b16 %v362, %v361
  %v435 = vpack.c.b16 %v364, %v363
  %v436 = vpack.c.b16 %v366, %v365
  %v437 = vpack.c.b16 %v368, %v367
  %v438 = vpack.c.b16 %v370, %v369
  %v439 = vpack.c.b16 %v372, %v371
  %v440 = vpack.c.b16 %v374, %v373
  %v441 = vpack.c.b16 %v376, %v375
  %v442 = vpack.c.b16 %v378, %v377
  %v443 = vpack.c.b16 %v380, %v379
  %v444 = vpack.c.b16 %v382, %v381
  %v445 = vpack.c.b16 %v384, %v383
  %v446 = vpack.c.b16 %v386, %v385
  %v447 = vpack.c.b16 %v388, %v387
  %v448 = vpack.c.b16 %v390, %v389
  %v449 = vpack.c.b16 %v392, %v391
  %v450 = vpack.c.b16 %v394, %v393
  %v451 = vpack.c.b16 %v396, %v395
  %v452 = vpack.c.b16 %v398, %v397
  %v453 = vpack.c.b16 %v400, %v399
  %v454 = vpack.c.b16 %v402, %v401
  %v455 = vpack.c.b16 %v404, %v403
  %v456 = vpack.c.b16 %v406, %v405
  %vm507 = vcmask 261120
  %v509 = vsel %vm507, %v187, 0
  %v512 = vsel %vm507, %v194, 0
  %514 = vmatprep.subr.bf16.mxu0 0
  %515 = vmatpush1.bf16.msra.mxu0 %v407
  %516 = vmatprep.subr.bf16.mxu0 0
  %517 = vmatpush1.bf16.msra.mxu0 %v408
  %518 = vmatprep.subr.bf16.mxu0 0
  %519 = vmatpush1.bf16.msra.mxu0 %v409
  %520 = vmatprep.subr.bf16.mxu0 0
  %521 = vmatpush1.bf16.msra.mxu0 %v410
  %522 = vmatprep.subr.bf16.mxu0 0
  %523 = vmatpush1.bf16.msra.mxu0 %v411
  %524 = vmatprep.subr.bf16.mxu0 0
  %525 = vmatpush1.bf16.msra.mxu0 %v412
  %526 = vmatprep.subr.bf16.mxu0 0
  %527 = vmatpush1.bf16.msra.mxu0 %v413
  %528 = vmatprep.subr.bf16.mxu0 0
  %529 = vmatpush1.bf16.msra.mxu0 %v414
  %530 = vmatprep.subr.bf16.mxu0 0
  %531 = vmatpush1.bf16.msra.mxu0 %v415
  %532 = vmatprep.subr.bf16.mxu0 0
  %533 = vmatpush1.bf16.msra.mxu0 %v416
  %534 = vmatprep.subr.bf16.mxu0 0
  %535 = vmatpush1.bf16.msra.mxu0 %v417
  %536 = vmatprep.subr.bf16.mxu0 0
  %537 = vmatpush1.bf16.msra.mxu0 %v418
  %538 = vmatprep.subr.bf16.mxu0 0
  %539 = vmatpush1.bf16.msra.mxu0 %v419
  %540 = vmatprep.subr.bf16.mxu0 0
  %541 = vmatpush1.bf16.msra.mxu0 %v420
  %542 = vmatprep.subr.bf16.mxu0 0
  %543 = vmatpush1.bf16.msra.mxu0 %v421
  %544 = vmatprep.subr.bf16.mxu0 0
  %545 = vmatpush1.bf16.msra.mxu0 %v422
  %546 = vmatprep.mubr.bf16.mxu0 %v182
  %547 = vmatmul.mubr.bf16.gmra.mrb[0].mxu0 %v181
  %v548 = vpop.f32.mrb[0].mxu0
  %v549 = vadd.f32 0.0, %v548
  %v550 = vpop.f32.mrb[0].mxu0
  %v551 = vpop.f32.mrb[0].mxu0
  %v552 = vadd.f32 0.0, %v551
  %v553 = vpop.f32.mrb[0].mxu0
  %554 = vmatprep.mubr.bf16.mxu0 %v189
  %555 = vmatmul.mubr.bf16.gmra.mrb[0].mxu0 %v188
  %v556 = vpop.f32.mrb[0].mxu0
  %v557 = vadd.f32 0.0, %v556
  %v558 = vpop.f32.mrb[0].mxu0
  %v559 = vpop.f32.mrb[0].mxu0
  %v560 = vadd.f32 0.0, %v559
  %v561 = vpop.f32.mrb[0].mxu0
  %562 = vdwg.mxu0
  %563 = vmatprep.subr.bf16.mxu0 0
  %564 = vmatpush1.bf16.msra.mxu0 %v423
  %565 = vmatprep.subr.bf16.mxu0 0
  %566 = vmatpush1.bf16.msra.mxu0 %v424
  %567 = vmatprep.subr.bf16.mxu0 0
  %568 = vmatpush1.bf16.msra.mxu0 %v425
  %569 = vmatprep.subr.bf16.mxu0 0
  %570 = vmatpush1.bf16.msra.mxu0 %v426
  %571 = vmatprep.subr.bf16.mxu0 0
  %572 = vmatpush1.bf16.msra.mxu0 %v427
  %573 = vmatprep.subr.bf16.mxu0 0
  %574 = vmatpush1.bf16.msra.mxu0 %v428
  %575 = vmatprep.subr.bf16.mxu0 0
  %576 = vmatpush1.bf16.msra.mxu0 %v429
  %577 = vmatprep.subr.bf16.mxu0 0
  %578 = vmatpush1.bf16.msra.mxu0 %v430
  %579 = vmatprep.subr.bf16.mxu0 0
  %580 = vmatpush1.bf16.msra.mxu0 %v431
  %581 = vmatprep.subr.bf16.mxu0 0
  %582 = vmatpush1.bf16.msra.mxu0 %v432
  %583 = vmatprep.subr.bf16.mxu0 0
  %584 = vmatpush1.bf16.msra.mxu0 %v433
  %585 = vmatprep.subr.bf16.mxu0 0
  %586 = vmatpush1.bf16.msra.mxu0 %v434
  %587 = vmatprep.subr.bf16.mxu0 0
  %588 = vmatpush1.bf16.msra.mxu0 %v435
  %589 = vmatprep.subr.bf16.mxu0 0
  %590 = vmatpush1.bf16.msra.mxu0 %v436
  %591 = vmatprep.subr.bf16.mxu0 0
  %592 = vmatpush1.bf16.msra.mxu0 %v437
  %593 = vmatprep.subr.bf16.mxu0 0
  %594 = vmatpush1.bf16.msra.mxu0 %v438
  %595 = vmatprep.mubr.bf16.mxu0 %v184
  %596 = vmatmul.mubr.bf16.gmra.mrb[0].mxu0 %v183
  %v597 = vpop.f32.mrb[0].mxu0
  %v598 = vadd.f32 %v549, %v597
  %v599 = vpop.f32.mrb[0].mxu0
  %v600 = vpop.f32.mrb[0].mxu0
  %v601 = vadd.f32 %v552, %v600
  %v602 = vpop.f32.mrb[0].mxu0
  %603 = vmatprep.mubr.bf16.mxu0 %v191
  %604 = vmatmul.mubr.bf16.gmra.mrb[0].mxu0 %v190
  %v605 = vpop.f32.mrb[0].mxu0
  %v606 = vadd.f32 %v557, %v605
  %v607 = vpop.f32.mrb[0].mxu0
  %v608 = vpop.f32.mrb[0].mxu0
  %v609 = vadd.f32 %v560, %v608
  %v610 = vpop.f32.mrb[0].mxu0
  %611 = vdwg.mxu0
  %612 = vmatprep.subr.bf16.mxu0 0
  %613 = vmatpush1.bf16.msra.mxu0 %v439
  %614 = vmatprep.subr.bf16.mxu0 0
  %615 = vmatpush1.bf16.msra.mxu0 %v440
  %616 = vmatprep.subr.bf16.mxu0 0
  %617 = vmatpush1.bf16.msra.mxu0 %v441
  %618 = vmatprep.subr.bf16.mxu0 0
  %619 = vmatpush1.bf16.msra.mxu0 %v442
  %620 = vmatprep.subr.bf16.mxu0 0
  %621 = vmatpush1.bf16.msra.mxu0 %v443
  %622 = vmatprep.subr.bf16.mxu0 0
  %623 = vmatpush1.bf16.msra.mxu0 %v444
  %624 = vmatprep.subr.bf16.mxu0 0
  %625 = vmatpush1.bf16.msra.mxu0 %v445
  %626 = vmatprep.subr.bf16.mxu0 0
  %627 = vmatpush1.bf16.msra.mxu0 %v446
  %628 = vmatprep.subr.bf16.mxu0 0
  %629 = vmatpush1.bf16.msra.mxu0 %v447
  %630 = vmatprep.subr.bf16.mxu0 0
  %631 = vmatpush1.bf16.msra.mxu0 %v448
  %632 = vmatprep.subr.bf16.mxu0 0
  %633 = vmatpush1.bf16.msra.mxu0 %v449
  %634 = vmatprep.subr.bf16.mxu0 0
  %635 = vmatpush1.bf16.msra.mxu0 %v450
  %636 = vmatprep.subr.bf16.mxu0 0
  %637 = vmatpush1.bf16.msra.mxu0 %v451
  %638 = vmatprep.subr.bf16.mxu0 0
  %639 = vmatpush1.bf16.msra.mxu0 %v452
  %640 = vmatprep.subr.bf16.mxu0 0
  %641 = vmatpush1.bf16.msra.mxu0 %v453
  %642 = vmatprep.subr.bf16.mxu0 0
  %643 = vmatpush1.bf16.msra.mxu0 %v454
  %644 = vmatprep.mubr.bf16.mxu0 %v186
  %645 = vmatmul.mubr.bf16.gmra.mrb[0].mxu0 %v185
  %v646 = vpop.f32.mrb[0].mxu0
  %v647 = vadd.f32 %v598, %v646
  %v648 = vpop.f32.mrb[0].mxu0
  %v649 = vpop.f32.mrb[0].mxu0
  %v650 = vadd.f32 %v601, %v649
  %v651 = vpop.f32.mrb[0].mxu0
  %652 = vmatprep.mubr.bf16.mxu0 %v193
  %653 = vmatmul.mubr.bf16.gmra.mrb[0].mxu0 %v192
  %v654 = vpop.f32.mrb[0].mxu0
  %v655 = vadd.f32 %v606, %v654
  %v656 = vpop.f32.mrb[0].mxu0
  %v657 = vpop.f32.mrb[0].mxu0
  %v658 = vadd.f32 %v609, %v657
  %v659 = vpop.f32.mrb[0].mxu0
  %660 = vdwg.mxu0
  %661 = vmatprep.subr.bf16.mxu0 0
  %662 = vmatpush1.bf16.msra.mxu0 %v455
  %663 = vmatprep.subr.bf16.mxu0 0
  %664 = vmatpush1.bf16.msra.mxu0 %v456
  %665 = vmatprep.subr.bf16.mxu0 0
  %666 = vmatpush1.bf16.msra.mxu0 0
  %667 = vmatprep.subr.bf16.mxu0 0
  %668 = vmatpush1.bf16.msra.mxu0 0
  %669 = vmatprep.subr.bf16.mxu0 0
  %670 = vmatpush1.bf16.msra.mxu0 0
  %671 = vmatprep.subr.bf16.mxu0 0
  %672 = vmatpush1.bf16.msra.mxu0 0
  %673 = vmatprep.subr.bf16.mxu0 0
  %674 = vmatpush1.bf16.msra.mxu0 0
  %675 = vmatprep.subr.bf16.mxu0 0
  %676 = vmatpush1.bf16.msra.mxu0 0
  %677 = vmatprep.subr.bf16.mxu0 0
  %678 = vmatpush1.bf16.msra.mxu0 0
  %679 = vmatprep.subr.bf16.mxu0 0
  %680 = vmatpush1.bf16.msra.mxu0 0
  %681 = vmatprep.subr.bf16.mxu0 0
  %682 = vmatpush1.bf16.msra.mxu0 0
  %683 = vmatprep.subr.bf16.mxu0 0
  %684 = vmatpush1.bf16.msra.mxu0 0
  %685 = vmatprep.subr.bf16.mxu0 0
  %686 = vmatpush1.bf16.msra.mxu0 0
  %687 = vmatprep.subr.bf16.mxu0 0
  %688 = vmatpush1.bf16.msra.mxu0 0
  %689 = vmatprep.subr.bf16.mxu0 0
  %690 = vmatpush1.bf16.msra.mxu0 0
  %691 = vmatprep.subr.bf16.mxu0 0
  %692 = vmatpush1.bf16.msra.mxu0 0
  %693 = vmatprep.mubr.bf16.mxu0 0
  %694 = vmatmul.mubr.bf16.gmra.mrb[0].mxu0 %v509
  %v695 = vpop.f32.mrb[0].mxu0
  %v696 = vadd.f32 %v647, %v695
  %v697 = vpop.f32.mrb[0].mxu0
  %v698 = vpop.f32.mrb[0].mxu0
  %v699 = vadd.f32 %v650, %v698
  %v700 = vpop.f32.mrb[0].mxu0
  %701 = vmatprep.mubr.bf16.mxu0 0
  %702 = vmatmul.mubr.bf16.gmra.mrb[0].mxu0 %v512
  %v703 = vpop.f32.mrb[0].mxu0
  %v704 = vadd.f32 %v655, %v703
  %v705 = vpop.f32.mrb[0].mxu0
  %v706 = vpop.f32.mrb[0].mxu0
  %v707 = vadd.f32 %v658, %v706
  %v708 = vpop.f32.mrb[0].mxu0
  %709 = vdwg.mxu0
  %v710 = vld [vmem:[%s1] sm:$0xff]
  %v711 = vld [vmem:[%s1 + $0x8] sm:$0xff]
  %v712 = vld [vmem:[%s1 + $0x10] sm:$0xff]
  %v713 = vld [vmem:[%s1 + $0x18] sm:$0xf]
  %v714 = vld [vmem:[%s1 + $0x1c] sm:$0xff]
  %v715 = vld [vmem:[%s1 + $0x24] sm:$0xff]
  %v716 = vld [vmem:[%s1 + $0x2c] sm:$0xff]
  %v717 = vld [vmem:[%s1 + $0x34] sm:$0xf]
  %v718 = vld [vmem:[%s1 + $0x38] sm:$0xff]
  %v719 = vld [vmem:[%s1 + $0x40] sm:$0xff]
  %v720 = vld [vmem:[%s1 + $0x48] sm:$0xff]
  %v721 = vld [vmem:[%s1 + $0x50] sm:$0xf]
  %v722 = vld [vmem:[%s1 + $0x54] sm:$0xff]
  %v723 = vld [vmem:[%s1 + $0x5c] sm:$0xff]
  %v724 = vld [vmem:[%s1 + $0x64] sm:$0xff]
  %v725 = vld [vmem:[%s1 + $0x6c] sm:$0xf]
  %v742 = vunpack.c.l.b16 %v710
  %v743 = vunpack.c.h.b16 %v710
  %v744 = vunpack.c.l.b16 %v711
  %v745 = vunpack.c.h.b16 %v711
  %v746 = vunpack.c.l.b16 %v712
  %v747 = vunpack.c.h.b16 %v712
  %v748 = vunpack.c.l.b16 %v713
  %v749 = vunpack.c.l.b16 %v714
  %v750 = vunpack.c.h.b16 %v714
  %v751 = vunpack.c.l.b16 %v715
  %v752 = vunpack.c.h.b16 %v715
  %v753 = vunpack.c.l.b16 %v716
  %v754 = vunpack.c.h.b16 %v716
  %v755 = vunpack.c.l.b16 %v717
  %v756 = vunpack.c.l.b16 %v718
  %v757 = vunpack.c.h.b16 %v718
  %v758 = vunpack.c.l.b16 %v719
  %v759 = vunpack.c.h.b16 %v719
  %v760 = vunpack.c.l.b16 %v720
  %v761 = vunpack.c.h.b16 %v720
  %v762 = vunpack.c.l.b16 %v721
  %v763 = vunpack.c.l.b16 %v722
  %v764 = vunpack.c.h.b16 %v722
  %v765 = vunpack.c.l.b16 %v723
  %v766 = vunpack.c.h.b16 %v723
  %v767 = vunpack.c.l.b16 %v724
  %v768 = vunpack.c.h.b16 %v724
  %v769 = vunpack.c.l.b16 %v725
  %v770 = vpack.c.b16 %v749, %v742
  %v771 = vpack.c.b16 %v750, %v743
  %v772 = vpack.c.b16 %v751, %v744
  %v773 = vpack.c.b16 %v752, %v745
  %v774 = vpack.c.b16 %v753, %v746
  %v775 = vpack.c.b16 %v754, %v747
  %v776 = vpack.c.b16 %v755, %v748
  %v777 = vpack.c.b16 %v763, %v756
  %v778 = vpack.c.b16 %v764, %v757
  %v779 = vpack.c.b16 %v765, %v758
  %v780 = vpack.c.b16 %v766, %v759
  %v781 = vpack.c.b16 %v767, %v760
  %v782 = vpack.c.b16 %v768, %v761
  %v783 = vpack.c.b16 %v769, %v762
  %v797 = vsel %vm507, %v776, 0
  %v800 = vsel %vm507, %v783, 0
  %802 = vmatprep.subr.bf16.mxu0 0
  %803 = vmatpush1.bf16.msra.mxu0 %v407
  %804 = vmatprep.subr.bf16.mxu0 0
  %805 = vmatpush1.bf16.msra.mxu0 %v408
  %806 = vmatprep.subr.bf16.mxu0 0
  %807 = vmatpush1.bf16.msra.mxu0 %v409
  %808 = vmatprep.subr.bf16.mxu0 0
  %809 = vmatpush1.bf16.msra.mxu0 %v410
  %810 = vmatprep.subr.bf16.mxu0 0
  %811 = vmatpush1.bf16.msra.mxu0 %v411
  %812 = vmatprep.subr.bf16.mxu0 0
  %813 = vmatpush1.bf16.msra.mxu0 %v412
  %814 = vmatprep.subr.bf16.mxu0 0
  %815 = vmatpush1.bf16.msra.mxu0 %v413
  %816 = vmatprep.subr.bf16.mxu0 0
  %817 = vmatpush1.bf16.msra.mxu0 %v414
  %818 = vmatprep.subr.bf16.mxu0 0
  %819 = vmatpush1.bf16.msra.mxu0 %v415
  %820 = vmatprep.subr.bf16.mxu0 0
  %821 = vmatpush1.bf16.msra.mxu0 %v416
  %822 = vmatprep.subr.bf16.mxu0 0
  %823 = vmatpush1.bf16.msra.mxu0 %v417
  %824 = vmatprep.subr.bf16.mxu0 0
  %825 = vmatpush1.bf16.msra.mxu0 %v418
  %826 = vmatprep.subr.bf16.mxu0 0
  %827 = vmatpush1.bf16.msra.mxu0 %v419
  %828 = vmatprep.subr.bf16.mxu0 0
  %829 = vmatpush1.bf16.msra.mxu0 %v420
  %830 = vmatprep.subr.bf16.mxu0 0
  %831 = vmatpush1.bf16.msra.mxu0 %v421
  %832 = vmatprep.subr.bf16.mxu0 0
  %833 = vmatpush1.bf16.msra.mxu0 %v422
  %834 = vmatprep.mubr.bf16.mxu0 %v771
  %835 = vmatmul.mubr.bf16.gmra.mrb[0].mxu0 %v770
  %v836 = vpop.f32.mrb[0].mxu0
  %v837 = vadd.f32 0.0, %v836
  %v838 = vpop.f32.mrb[0].mxu0
  %v839 = vpop.f32.mrb[0].mxu0
  %v840 = vadd.f32 0.0, %v839
  %v841 = vpop.f32.mrb[0].mxu0
  %842 = vmatprep.mubr.bf16.mxu0 %v778
  %843 = vmatmul.mubr.bf16.gmra.mrb[0].mxu0 %v777
  %v844 = vpop.f32.mrb[0].mxu0
  %v845 = vadd.f32 0.0, %v844
  %v846 = vpop.f32.mrb[0].mxu0
  %v847 = vpop.f32.mrb[0].mxu0
  %v848 = vadd.f32 0.0, %v847
  %v849 = vpop.f32.mrb[0].mxu0
  %850 = vdwg.mxu0
  %851 = vmatprep.subr.bf16.mxu0 0
  %852 = vmatpush1.bf16.msra.mxu0 %v423
  %853 = vmatprep.subr.bf16.mxu0 0
  %854 = vmatpush1.bf16.msra.mxu0 %v424
  %855 = vmatprep.subr.bf16.mxu0 0
  %856 = vmatpush1.bf16.msra.mxu0 %v425
  %857 = vmatprep.subr.bf16.mxu0 0
  %858 = vmatpush1.bf16.msra.mxu0 %v426
  %859 = vmatprep.subr.bf16.mxu0 0
  %860 = vmatpush1.bf16.msra.mxu0 %v427
  %861 = vmatprep.subr.bf16.mxu0 0
  %862 = vmatpush1.bf16.msra.mxu0 %v428
  %863 = vmatprep.subr.bf16.mxu0 0
  %864 = vmatpush1.bf16.msra.mxu0 %v429
  %865 = vmatprep.subr.bf16.mxu0 0
  %866 = vmatpush1.bf16.msra.mxu0 %v430
  %867 = vmatprep.subr.bf16.mxu0 0
  %868 = vmatpush1.bf16.msra.mxu0 %v431
  %869 = vmatprep.subr.bf16.mxu0 0
  %870 = vmatpush1.bf16.msra.mxu0 %v432
  %871 = vmatprep.subr.bf16.mxu0 0
  %872 = vmatpush1.bf16.msra.mxu0 %v433
  %873 = vmatprep.subr.bf16.mxu0 0
  %874 = vmatpush1.bf16.msra.mxu0 %v434
  %875 = vmatprep.subr.bf16.mxu0 0
  %876 = vmatpush1.bf16.msra.mxu0 %v435
  %877 = vmatprep.subr.bf16.mxu0 0
  %878 = vmatpush1.bf16.msra.mxu0 %v436
  %879 = vmatprep.subr.bf16.mxu0 0
  %880 = vmatpush1.bf16.msra.mxu0 %v437
  %881 = vmatprep.subr.bf16.mxu0 0
  %882 = vmatpush1.bf16.msra.mxu0 %v438
  %883 = vmatprep.mubr.bf16.mxu0 %v773
  %884 = vmatmul.mubr.bf16.gmra.mrb[0].mxu0 %v772
  %v885 = vpop.f32.mrb[0].mxu0
  %v886 = vadd.f32 %v837, %v885
  %v887 = vpop.f32.mrb[0].mxu0
  %v888 = vpop.f32.mrb[0].mxu0
  %v889 = vadd.f32 %v840, %v888
  %v890 = vpop.f32.mrb[0].mxu0
  %891 = vmatprep.mubr.bf16.mxu0 %v780
  %892 = vmatmul.mubr.bf16.gmra.mrb[0].mxu0 %v779
  %v893 = vpop.f32.mrb[0].mxu0
  %v894 = vadd.f32 %v845, %v893
  %v895 = vpop.f32.mrb[0].mxu0
  %v896 = vpop.f32.mrb[0].mxu0
  %v897 = vadd.f32 %v848, %v896
  %v898 = vpop.f32.mrb[0].mxu0
  %899 = vdwg.mxu0
  %900 = vmatprep.subr.bf16.mxu0 0
  %901 = vmatpush1.bf16.msra.mxu0 %v439
  %902 = vmatprep.subr.bf16.mxu0 0
  %903 = vmatpush1.bf16.msra.mxu0 %v440
  %904 = vmatprep.subr.bf16.mxu0 0
  %905 = vmatpush1.bf16.msra.mxu0 %v441
  %906 = vmatprep.subr.bf16.mxu0 0
  %907 = vmatpush1.bf16.msra.mxu0 %v442
  %908 = vmatprep.subr.bf16.mxu0 0
  %909 = vmatpush1.bf16.msra.mxu0 %v443
  %910 = vmatprep.subr.bf16.mxu0 0
  %911 = vmatpush1.bf16.msra.mxu0 %v444
  %912 = vmatprep.subr.bf16.mxu0 0
  %913 = vmatpush1.bf16.msra.mxu0 %v445
  %914 = vmatprep.subr.bf16.mxu0 0
  %915 = vmatpush1.bf16.msra.mxu0 %v446
  %916 = vmatprep.subr.bf16.mxu0 0
  %917 = vmatpush1.bf16.msra.mxu0 %v447
  %918 = vmatprep.subr.bf16.mxu0 0
  %919 = vmatpush1.bf16.msra.mxu0 %v448
  %920 = vmatprep.subr.bf16.mxu0 0
  %921 = vmatpush1.bf16.msra.mxu0 %v449
  %922 = vmatprep.subr.bf16.mxu0 0
  %923 = vmatpush1.bf16.msra.mxu0 %v450
  %924 = vmatprep.subr.bf16.mxu0 0
  %925 = vmatpush1.bf16.msra.mxu0 %v451
  %926 = vmatprep.subr.bf16.mxu0 0
  %927 = vmatpush1.bf16.msra.mxu0 %v452
  %928 = vmatprep.subr.bf16.mxu0 0
  %929 = vmatpush1.bf16.msra.mxu0 %v453
  %930 = vmatprep.subr.bf16.mxu0 0
  %931 = vmatpush1.bf16.msra.mxu0 %v454
  %932 = vmatprep.mubr.bf16.mxu0 %v775
  %933 = vmatmul.mubr.bf16.gmra.mrb[0].mxu0 %v774
  %v934 = vpop.f32.mrb[0].mxu0
  %v935 = vadd.f32 %v886, %v934
  %v936 = vpop.f32.mrb[0].mxu0
  %v937 = vpop.f32.mrb[0].mxu0
  %v938 = vadd.f32 %v889, %v937
  %v939 = vpop.f32.mrb[0].mxu0
  %940 = vmatprep.mubr.bf16.mxu0 %v782
  %941 = vmatmul.mubr.bf16.gmra.mrb[0].mxu0 %v781
  %v942 = vpop.f32.mrb[0].mxu0
  %v943 = vadd.f32 %v894, %v942
  %v944 = vpop.f32.mrb[0].mxu0
  %v945 = vpop.f32.mrb[0].mxu0
  %v946 = vadd.f32 %v897, %v945
  %v947 = vpop.f32.mrb[0].mxu0
  %948 = vdwg.mxu0
  %949 = vmatprep.subr.bf16.mxu0 0
  %950 = vmatpush1.bf16.msra.mxu0 %v455
  %951 = vmatprep.subr.bf16.mxu0 0
  %952 = vmatpush1.bf16.msra.mxu0 %v456
  %953 = vmatprep.subr.bf16.mxu0 0
  %954 = vmatpush1.bf16.msra.mxu0 0
  %955 = vmatprep.subr.bf16.mxu0 0
  %956 = vmatpush1.bf16.msra.mxu0 0
  %957 = vmatprep.subr.bf16.mxu0 0
  %958 = vmatpush1.bf16.msra.mxu0 0
  %959 = vmatprep.subr.bf16.mxu0 0
  %960 = vmatpush1.bf16.msra.mxu0 0
  %961 = vmatprep.subr.bf16.mxu0 0
  %962 = vmatpush1.bf16.msra.mxu0 0
  %963 = vmatprep.subr.bf16.mxu0 0
  %964 = vmatpush1.bf16.msra.mxu0 0
  %965 = vmatprep.subr.bf16.mxu0 0
  %966 = vmatpush1.bf16.msra.mxu0 0
  %967 = vmatprep.subr.bf16.mxu0 0
  %968 = vmatpush1.bf16.msra.mxu0 0
  %969 = vmatprep.subr.bf16.mxu0 0
  %970 = vmatpush1.bf16.msra.mxu0 0
  %971 = vmatprep.subr.bf16.mxu0 0
  %972 = vmatpush1.bf16.msra.mxu0 0
  %973 = vmatprep.subr.bf16.mxu0 0
  %974 = vmatpush1.bf16.msra.mxu0 0
  %975 = vmatprep.subr.bf16.mxu0 0
  %976 = vmatpush1.bf16.msra.mxu0 0
  %977 = vmatprep.subr.bf16.mxu0 0
  %978 = vmatpush1.bf16.msra.mxu0 0
  %979 = vmatprep.subr.bf16.mxu0 0
  %980 = vmatpush1.bf16.msra.mxu0 0
  %981 = vmatprep.mubr.bf16.mxu0 0
  %982 = vmatmul.mubr.bf16.gmra.mrb[0].mxu0 %v797
  %v983 = vpop.f32.mrb[0].mxu0
  %v984 = vadd.f32 %v935, %v983
  %v985 = vpop.f32.mrb[0].mxu0
  %v986 = vpop.f32.mrb[0].mxu0
  %v987 = vadd.f32 %v938, %v986
  %v988 = vpop.f32.mrb[0].mxu0
  %989 = vmatprep.mubr.bf16.mxu0 0
  %990 = vmatmul.mubr.bf16.gmra.mrb[0].mxu0 %v800
  %v991 = vpop.f32.mrb[0].mxu0
  %v992 = vadd.f32 %v943, %v991
  %v993 = vpop.f32.mrb[0].mxu0
  %v994 = vpop.f32.mrb[0].mxu0
  %v995 = vadd.f32 %v946, %v994
  %v996 = vpop.f32.mrb[0].mxu0
  %997 = vdwg.mxu0
  %v998 = vld [vmem:[%s2] sm:$0xff]
  %v999 = vld [vmem:[%s2 + $0x8] sm:$0xff]
  %v1000 = vld [vmem:[%s2 + $0x10] sm:$0xff]
  %v1001 = vld [vmem:[%s2 + $0x18] sm:$0xf]
  %v1002 = vld [vmem:[%s2 + $0x1c] sm:$0xff]
  %v1003 = vld [vmem:[%s2 + $0x24] sm:$0xff]
  %v1004 = vld [vmem:[%s2 + $0x2c] sm:$0xff]
  %v1005 = vld [vmem:[%s2 + $0x34] sm:$0xf]
  %v1006 = vld [vmem:[%s2 + $0x38] sm:$0xff]
  %v1007 = vld [vmem:[%s2 + $0x40] sm:$0xff]
  %v1008 = vld [vmem:[%s2 + $0x48] sm:$0xff]
  %v1009 = vld [vmem:[%s2 + $0x50] sm:$0xf]
  %v1010 = vld [vmem:[%s2 + $0x54] sm:$0xff]
  %v1011 = vld [vmem:[%s2 + $0x5c] sm:$0xff]
  %v1012 = vld [vmem:[%s2 + $0x64] sm:$0xff]
  %v1013 = vld [vmem:[%s2 + $0x6c] sm:$0xf]
  %v1030 = vunpack.c.l.b16 %v998
  %v1031 = vunpack.c.h.b16 %v998
  %v1032 = vunpack.c.l.b16 %v999
  %v1033 = vunpack.c.h.b16 %v999
  %v1034 = vunpack.c.l.b16 %v1000
  %v1035 = vunpack.c.h.b16 %v1000
  %v1036 = vunpack.c.l.b16 %v1001
  %v1037 = vunpack.c.l.b16 %v1002
  %v1038 = vunpack.c.h.b16 %v1002
  %v1039 = vunpack.c.l.b16 %v1003
  %v1040 = vunpack.c.h.b16 %v1003
  %v1041 = vunpack.c.l.b16 %v1004
  %v1042 = vunpack.c.h.b16 %v1004
  %v1043 = vunpack.c.l.b16 %v1005
  %v1044 = vunpack.c.l.b16 %v1006
  %v1045 = vunpack.c.h.b16 %v1006
  %v1046 = vunpack.c.l.b16 %v1007
  %v1047 = vunpack.c.h.b16 %v1007
  %v1048 = vunpack.c.l.b16 %v1008
  %v1049 = vunpack.c.h.b16 %v1008
  %v1050 = vunpack.c.l.b16 %v1009
  %v1051 = vunpack.c.l.b16 %v1010
  %v1052 = vunpack.c.h.b16 %v1010
  %v1053 = vunpack.c.l.b16 %v1011
  %v1054 = vunpack.c.h.b16 %v1011
  %v1055 = vunpack.c.l.b16 %v1012
  %v1056 = vunpack.c.h.b16 %v1012
  %v1057 = vunpack.c.l.b16 %v1013
  %v1058 = vpack.c.b16 %v1037, %v1030
  %v1059 = vpack.c.b16 %v1038, %v1031
  %v1060 = vpack.c.b16 %v1039, %v1032
  %v1061 = vpack.c.b16 %v1040, %v1033
  %v1062 = vpack.c.b16 %v1041, %v1034
  %v1063 = vpack.c.b16 %v1042, %v1035
  %v1064 = vpack.c.b16 %v1043, %v1036
  %v1065 = vpack.c.b16 %v1051, %v1044
  %v1066 = vpack.c.b16 %v1052, %v1045
  %v1067 = vpack.c.b16 %v1053, %v1046
  %v1068 = vpack.c.b16 %v1054, %v1047
  %v1069 = vpack.c.b16 %v1055, %v1048
  %v1070 = vpack.c.b16 %v1056, %v1049
  %v1071 = vpack.c.b16 %v1057, %v1050
  %v1085 = vsel %vm507, %v1064, 0
  %v1088 = vsel %vm507, %v1071, 0
  %1090 = vmatprep.subr.bf16.mxu0 0
  %1091 = vmatpush1.bf16.msra.mxu0 %v407
  %1092 = vmatprep.subr.bf16.mxu0 0
  %1093 = vmatpush1.bf16.msra.mxu0 %v408
  %1094 = vmatprep.subr.bf16.mxu0 0
  %1095 = vmatpush1.bf16.msra.mxu0 %v409
  %1096 = vmatprep.subr.bf16.mxu0 0
  %1097 = vmatpush1.bf16.msra.mxu0 %v410
  %1098 = vmatprep.subr.bf16.mxu0 0
  %1099 = vmatpush1.bf16.msra.mxu0 %v411
  %1100 = vmatprep.subr.bf16.mxu0 0
  %1101 = vmatpush1.bf16.msra.mxu0 %v412
  %1102 = vmatprep.subr.bf16.mxu0 0
  %1103 = vmatpush1.bf16.msra.mxu0 %v413
  %1104 = vmatprep.subr.bf16.mxu0 0
  %1105 = vmatpush1.bf16.msra.mxu0 %v414
  %1106 = vmatprep.subr.bf16.mxu0 0
  %1107 = vmatpush1.bf16.msra.mxu0 %v415
  %1108 = vmatprep.subr.bf16.mxu0 0
  %1109 = vmatpush1.bf16.msra.mxu0 %v416
  %1110 = vmatprep.subr.bf16.mxu0 0
  %1111 = vmatpush1.bf16.msra.mxu0 %v417
  %1112 = vmatprep.subr.bf16.mxu0 0
  %1113 = vmatpush1.bf16.msra.mxu0 %v418
  %1114 = vmatprep.subr.bf16.mxu0 0
  %1115 = vmatpush1.bf16.msra.mxu0 %v419
  %1116 = vmatprep.subr.bf16.mxu0 0
  %1117 = vmatpush1.bf16.msra.mxu0 %v420
  %1118 = vmatprep.subr.bf16.mxu0 0
  %1119 = vmatpush1.bf16.msra.mxu0 %v421
  %1120 = vmatprep.subr.bf16.mxu0 0
  %1121 = vmatpush1.bf16.msra.mxu0 %v422
  %1122 = vmatprep.mubr.bf16.mxu0 %v1059
  %1123 = vmatmul.mubr.bf16.gmra.mrb[0].mxu0 %v1058
  %v1124 = vpop.f32.mrb[0].mxu0
  %v1125 = vadd.f32 0.0, %v1124
  %v1126 = vpop.f32.mrb[0].mxu0
  %v1127 = vpop.f32.mrb[0].mxu0
  %v1128 = vadd.f32 0.0, %v1127
  %v1129 = vpop.f32.mrb[0].mxu0
  %1130 = vmatprep.mubr.bf16.mxu0 %v1066
  %1131 = vmatmul.mubr.bf16.gmra.mrb[0].mxu0 %v1065
  %v1132 = vpop.f32.mrb[0].mxu0
  %v1133 = vadd.f32 0.0, %v1132
  %v1134 = vpop.f32.mrb[0].mxu0
  %v1135 = vpop.f32.mrb[0].mxu0
  %v1136 = vadd.f32 0.0, %v1135
  %v1137 = vpop.f32.mrb[0].mxu0
  %1138 = vdwg.mxu0
  %1139 = vmatprep.subr.bf16.mxu0 0
  %1140 = vmatpush1.bf16.msra.mxu0 %v423
  %1141 = vmatprep.subr.bf16.mxu0 0
  %1142 = vmatpush1.bf16.msra.mxu0 %v424
  %1143 = vmatprep.subr.bf16.mxu0 0
  %1144 = vmatpush1.bf16.msra.mxu0 %v425
  %1145 = vmatprep.subr.bf16.mxu0 0
  %1146 = vmatpush1.bf16.msra.mxu0 %v426
  %1147 = vmatprep.subr.bf16.mxu0 0
  %1148 = vmatpush1.bf16.msra.mxu0 %v427
  %1149 = vmatprep.subr.bf16.mxu0 0
  %1150 = vmatpush1.bf16.msra.mxu0 %v428
  %1151 = vmatprep.subr.bf16.mxu0 0
  %1152 = vmatpush1.bf16.msra.mxu0 %v429
  %1153 = vmatprep.subr.bf16.mxu0 0
  %1154 = vmatpush1.bf16.msra.mxu0 %v430
  %1155 = vmatprep.subr.bf16.mxu0 0
  %1156 = vmatpush1.bf16.msra.mxu0 %v431
  %1157 = vmatprep.subr.bf16.mxu0 0
  %1158 = vmatpush1.bf16.msra.mxu0 %v432
  %1159 = vmatprep.subr.bf16.mxu0 0
  %1160 = vmatpush1.bf16.msra.mxu0 %v433
  %1161 = vmatprep.subr.bf16.mxu0 0
  %1162 = vmatpush1.bf16.msra.mxu0 %v434
  %1163 = vmatprep.subr.bf16.mxu0 0
  %1164 = vmatpush1.bf16.msra.mxu0 %v435
  %1165 = vmatprep.subr.bf16.mxu0 0
  %1166 = vmatpush1.bf16.msra.mxu0 %v436
  %1167 = vmatprep.subr.bf16.mxu0 0
  %1168 = vmatpush1.bf16.msra.mxu0 %v437
  %1169 = vmatprep.subr.bf16.mxu0 0
  %1170 = vmatpush1.bf16.msra.mxu0 %v438
  %1171 = vmatprep.mubr.bf16.mxu0 %v1061
  %1172 = vmatmul.mubr.bf16.gmra.mrb[0].mxu0 %v1060
  %v1173 = vpop.f32.mrb[0].mxu0
  %v1174 = vadd.f32 %v1125, %v1173
  %v1175 = vpop.f32.mrb[0].mxu0
  %v1176 = vpop.f32.mrb[0].mxu0
  %v1177 = vadd.f32 %v1128, %v1176
  %v1178 = vpop.f32.mrb[0].mxu0
  %1179 = vmatprep.mubr.bf16.mxu0 %v1068
  %1180 = vmatmul.mubr.bf16.gmra.mrb[0].mxu0 %v1067
  %v1181 = vpop.f32.mrb[0].mxu0
  %v1182 = vadd.f32 %v1133, %v1181
  %v1183 = vpop.f32.mrb[0].mxu0
  %v1184 = vpop.f32.mrb[0].mxu0
  %v1185 = vadd.f32 %v1136, %v1184
  %v1186 = vpop.f32.mrb[0].mxu0
  %1187 = vdwg.mxu0
  %1188 = vmatprep.subr.bf16.mxu0 0
  %1189 = vmatpush1.bf16.msra.mxu0 %v439
  %1190 = vmatprep.subr.bf16.mxu0 0
  %1191 = vmatpush1.bf16.msra.mxu0 %v440
  %1192 = vmatprep.subr.bf16.mxu0 0
  %1193 = vmatpush1.bf16.msra.mxu0 %v441
  %1194 = vmatprep.subr.bf16.mxu0 0
  %1195 = vmatpush1.bf16.msra.mxu0 %v442
  %1196 = vmatprep.subr.bf16.mxu0 0
  %1197 = vmatpush1.bf16.msra.mxu0 %v443
  %1198 = vmatprep.subr.bf16.mxu0 0
  %1199 = vmatpush1.bf16.msra.mxu0 %v444
  %1200 = vmatprep.subr.bf16.mxu0 0
  %1201 = vmatpush1.bf16.msra.mxu0 %v445
  %1202 = vmatprep.subr.bf16.mxu0 0
  %1203 = vmatpush1.bf16.msra.mxu0 %v446
  %1204 = vmatprep.subr.bf16.mxu0 0
  %1205 = vmatpush1.bf16.msra.mxu0 %v447
  %1206 = vmatprep.subr.bf16.mxu0 0
  %1207 = vmatpush1.bf16.msra.mxu0 %v448
  %1208 = vmatprep.subr.bf16.mxu0 0
  %1209 = vmatpush1.bf16.msra.mxu0 %v449
  %1210 = vmatprep.subr.bf16.mxu0 0
  %1211 = vmatpush1.bf16.msra.mxu0 %v450
  %1212 = vmatprep.subr.bf16.mxu0 0
  %1213 = vmatpush1.bf16.msra.mxu0 %v451
  %1214 = vmatprep.subr.bf16.mxu0 0
  %1215 = vmatpush1.bf16.msra.mxu0 %v452
  %1216 = vmatprep.subr.bf16.mxu0 0
  %1217 = vmatpush1.bf16.msra.mxu0 %v453
  %1218 = vmatprep.subr.bf16.mxu0 0
  %1219 = vmatpush1.bf16.msra.mxu0 %v454
  %1220 = vmatprep.mubr.bf16.mxu0 %v1063
  %1221 = vmatmul.mubr.bf16.gmra.mrb[0].mxu0 %v1062
  %v1222 = vpop.f32.mrb[0].mxu0
  %v1223 = vadd.f32 %v1174, %v1222
  %v1224 = vpop.f32.mrb[0].mxu0
  %v1225 = vpop.f32.mrb[0].mxu0
  %v1226 = vadd.f32 %v1177, %v1225
  %v1227 = vpop.f32.mrb[0].mxu0
  %1228 = vmatprep.mubr.bf16.mxu0 %v1070
  %1229 = vmatmul.mubr.bf16.gmra.mrb[0].mxu0 %v1069
  %v1230 = vpop.f32.mrb[0].mxu0
  %v1231 = vadd.f32 %v1182, %v1230
  %v1232 = vpop.f32.mrb[0].mxu0
  %v1233 = vpop.f32.mrb[0].mxu0
  %v1234 = vadd.f32 %v1185, %v1233
  %v1235 = vpop.f32.mrb[0].mxu0
  %1236 = vdwg.mxu0
  %1237 = vmatprep.subr.bf16.mxu0 0
  %1238 = vmatpush1.bf16.msra.mxu0 %v455
  %1239 = vmatprep.subr.bf16.mxu0 0
  %1240 = vmatpush1.bf16.msra.mxu0 %v456
  %1241 = vmatprep.subr.bf16.mxu0 0
  %1242 = vmatpush1.bf16.msra.mxu0 0
  %1243 = vmatprep.subr.bf16.mxu0 0
  %1244 = vmatpush1.bf16.msra.mxu0 0
  %1245 = vmatprep.subr.bf16.mxu0 0
  %1246 = vmatpush1.bf16.msra.mxu0 0
  %1247 = vmatprep.subr.bf16.mxu0 0
  %1248 = vmatpush1.bf16.msra.mxu0 0
  %1249 = vmatprep.subr.bf16.mxu0 0
  %1250 = vmatpush1.bf16.msra.mxu0 0
  %1251 = vmatprep.subr.bf16.mxu0 0
  %1252 = vmatpush1.bf16.msra.mxu0 0
  %1253 = vmatprep.subr.bf16.mxu0 0
  %1254 = vmatpush1.bf16.msra.mxu0 0
  %1255 = vmatprep.subr.bf16.mxu0 0
  %1256 = vmatpush1.bf16.msra.mxu0 0
  %1257 = vmatprep.subr.bf16.mxu0 0
  %1258 = vmatpush1.bf16.msra.mxu0 0
  %1259 = vmatprep.subr.bf16.mxu0 0
  %1260 = vmatpush1.bf16.msra.mxu0 0
  %1261 = vmatprep.subr.bf16.mxu0 0
  %1262 = vmatpush1.bf16.msra.mxu0 0
  %1263 = vmatprep.subr.bf16.mxu0 0
  %1264 = vmatpush1.bf16.msra.mxu0 0
  %1265 = vmatprep.subr.bf16.mxu0 0
  %1266 = vmatpush1.bf16.msra.mxu0 0
  %1267 = vmatprep.subr.bf16.mxu0 0
  %1268 = vmatpush1.bf16.msra.mxu0 0
  %1269 = vmatprep.mubr.bf16.mxu0 0
  %1270 = vmatmul.mubr.bf16.gmra.mrb[0].mxu0 %v1085
  %v1271 = vpop.f32.mrb[0].mxu0
  %v1272 = vadd.f32 %v1223, %v1271
  %v1273 = vpop.f32.mrb[0].mxu0
  %v1274 = vpop.f32.mrb[0].mxu0
  %v1275 = vadd.f32 %v1226, %v1274
  %v1276 = vpop.f32.mrb[0].mxu0
  %1277 = vmatprep.mubr.bf16.mxu0 0
  %1278 = vmatmul.mubr.bf16.gmra.mrb[0].mxu0 %v1088
  %v1279 = vpop.f32.mrb[0].mxu0
  %v1280 = vadd.f32 %v1231, %v1279
  %v1281 = vpop.f32.mrb[0].mxu0
  %v1282 = vpop.f32.mrb[0].mxu0
  %v1283 = vadd.f32 %v1234, %v1282
  %v1284 = vpop.f32.mrb[0].mxu0
  %1285 = vdwg.mxu0
  %v1286 = vld [vmem:[%s3] sm:$0xff]
  %v1287 = vld [vmem:[%s3 + $0x8] sm:$0xff]
  %v1288 = vld [vmem:[%s3 + $0x10] sm:$0xff]
  %v1289 = vld [vmem:[%s3 + $0x18] sm:$0xf]
  %v1290 = vld [vmem:[%s3 + $0x1c] sm:$0xff]
  %v1291 = vld [vmem:[%s3 + $0x24] sm:$0xff]
  %v1292 = vld [vmem:[%s3 + $0x2c] sm:$0xff]
  %v1293 = vld [vmem:[%s3 + $0x34] sm:$0xf]
  %v1294 = vld [vmem:[%s3 + $0x38] sm:$0xff]
  %v1295 = vld [vmem:[%s3 + $0x40] sm:$0xff]
  %v1296 = vld [vmem:[%s3 + $0x48] sm:$0xff]
  %v1297 = vld [vmem:[%s3 + $0x50] sm:$0xf]
  %v1298 = vld [vmem:[%s3 + $0x54] sm:$0xff]
  %v1299 = vld [vmem:[%s3 + $0x5c] sm:$0xff]
  %v1300 = vld [vmem:[%s3 + $0x64] sm:$0xff]
  %v1301 = vld [vmem:[%s3 + $0x6c] sm:$0xf]
  %v1318 = vunpack.c.l.b16 %v1286
  %v1319 = vunpack.c.h.b16 %v1286
  %v1320 = vunpack.c.l.b16 %v1287
  %v1321 = vunpack.c.h.b16 %v1287
  %v1322 = vunpack.c.l.b16 %v1288
  %v1323 = vunpack.c.h.b16 %v1288
  %v1324 = vunpack.c.l.b16 %v1289
  %v1325 = vunpack.c.l.b16 %v1290
  %v1326 = vunpack.c.h.b16 %v1290
  %v1327 = vunpack.c.l.b16 %v1291
  %v1328 = vunpack.c.h.b16 %v1291
  %v1329 = vunpack.c.l.b16 %v1292
  %v1330 = vunpack.c.h.b16 %v1292
  %v1331 = vunpack.c.l.b16 %v1293
  %v1332 = vunpack.c.l.b16 %v1294
  %v1333 = vunpack.c.h.b16 %v1294
  %v1334 = vunpack.c.l.b16 %v1295
  %v1335 = vunpack.c.h.b16 %v1295
  %v1336 = vunpack.c.l.b16 %v1296
  %v1337 = vunpack.c.h.b16 %v1296
  %v1338 = vunpack.c.l.b16 %v1297
  %v1339 = vunpack.c.l.b16 %v1298
  %v1340 = vunpack.c.h.b16 %v1298
  %v1341 = vunpack.c.l.b16 %v1299
  %v1342 = vunpack.c.h.b16 %v1299
  %v1343 = vunpack.c.l.b16 %v1300
  %v1344 = vunpack.c.h.b16 %v1300
  %v1345 = vunpack.c.l.b16 %v1301
  %v1346 = vpack.c.b16 %v1325, %v1318
  %v1347 = vpack.c.b16 %v1326, %v1319
  %v1348 = vpack.c.b16 %v1327, %v1320
  %v1349 = vpack.c.b16 %v1328, %v1321
  %v1350 = vpack.c.b16 %v1329, %v1322
  %v1351 = vpack.c.b16 %v1330, %v1323
  %v1352 = vpack.c.b16 %v1331, %v1324
  %v1353 = vpack.c.b16 %v1339, %v1332
  %v1354 = vpack.c.b16 %v1340, %v1333
  %v1355 = vpack.c.b16 %v1341, %v1334
  %v1356 = vpack.c.b16 %v1342, %v1335
  %v1357 = vpack.c.b16 %v1343, %v1336
  %v1358 = vpack.c.b16 %v1344, %v1337
  %v1359 = vpack.c.b16 %v1345, %v1338
  %v1373 = vsel %vm507, %v1352, 0
  %v1376 = vsel %vm507, %v1359, 0
  %1378 = vmatprep.subr.bf16.mxu0 0
  %1379 = vmatpush1.bf16.msra.mxu0 %v407
  %1380 = vmatprep.subr.bf16.mxu0 0
  %1381 = vmatpush1.bf16.msra.mxu0 %v408
  %1382 = vmatprep.subr.bf16.mxu0 0
  %1383 = vmatpush1.bf16.msra.mxu0 %v409
  %1384 = vmatprep.subr.bf16.mxu0 0
  %1385 = vmatpush1.bf16.msra.mxu0 %v410
  %1386 = vmatprep.subr.bf16.mxu0 0
  %1387 = vmatpush1.bf16.msra.mxu0 %v411
  %1388 = vmatprep.subr.bf16.mxu0 0
  %1389 = vmatpush1.bf16.msra.mxu0 %v412
  %1390 = vmatprep.subr.bf16.mxu0 0
  %1391 = vmatpush1.bf16.msra.mxu0 %v413
  %1392 = vmatprep.subr.bf16.mxu0 0
  %1393 = vmatpush1.bf16.msra.mxu0 %v414
  %1394 = vmatprep.subr.bf16.mxu0 0
  %1395 = vmatpush1.bf16.msra.mxu0 %v415
  %1396 = vmatprep.subr.bf16.mxu0 0
  %1397 = vmatpush1.bf16.msra.mxu0 %v416
  %1398 = vmatprep.subr.bf16.mxu0 0
  %1399 = vmatpush1.bf16.msra.mxu0 %v417
  %1400 = vmatprep.subr.bf16.mxu0 0
  %1401 = vmatpush1.bf16.msra.mxu0 %v418
  %1402 = vmatprep.subr.bf16.mxu0 0
  %1403 = vmatpush1.bf16.msra.mxu0 %v419
  %1404 = vmatprep.subr.bf16.mxu0 0
  %1405 = vmatpush1.bf16.msra.mxu0 %v420
  %1406 = vmatprep.subr.bf16.mxu0 0
  %1407 = vmatpush1.bf16.msra.mxu0 %v421
  %1408 = vmatprep.subr.bf16.mxu0 0
  %1409 = vmatpush1.bf16.msra.mxu0 %v422
  %1410 = vmatprep.mubr.bf16.mxu0 %v1347
  %1411 = vmatmul.mubr.bf16.gmra.mrb[0].mxu0 %v1346
  %v1412 = vpop.f32.mrb[0].mxu0
  %v1413 = vadd.f32 0.0, %v1412
  %v1414 = vpop.f32.mrb[0].mxu0
  %v1415 = vpop.f32.mrb[0].mxu0
  %v1416 = vadd.f32 0.0, %v1415
  %v1417 = vpop.f32.mrb[0].mxu0
  %1418 = vmatprep.mubr.bf16.mxu0 %v1354
  %1419 = vmatmul.mubr.bf16.gmra.mrb[0].mxu0 %v1353
  %v1420 = vpop.f32.mrb[0].mxu0
  %v1421 = vadd.f32 0.0, %v1420
  %v1422 = vpop.f32.mrb[0].mxu0
  %v1423 = vpop.f32.mrb[0].mxu0
  %v1424 = vadd.f32 0.0, %v1423
  %v1425 = vpop.f32.mrb[0].mxu0
  %1426 = vdwg.mxu0
  %1427 = vmatprep.subr.bf16.mxu0 0
  %1428 = vmatpush1.bf16.msra.mxu0 %v423
  %1429 = vmatprep.subr.bf16.mxu0 0
  %1430 = vmatpush1.bf16.msra.mxu0 %v424
  %1431 = vmatprep.subr.bf16.mxu0 0
  %1432 = vmatpush1.bf16.msra.mxu0 %v425
  %1433 = vmatprep.subr.bf16.mxu0 0
  %1434 = vmatpush1.bf16.msra.mxu0 %v426
  %1435 = vmatprep.subr.bf16.mxu0 0
  %1436 = vmatpush1.bf16.msra.mxu0 %v427
  %1437 = vmatprep.subr.bf16.mxu0 0
  %1438 = vmatpush1.bf16.msra.mxu0 %v428
  %1439 = vmatprep.subr.bf16.mxu0 0
  %1440 = vmatpush1.bf16.msra.mxu0 %v429
  %1441 = vmatprep.subr.bf16.mxu0 0
  %1442 = vmatpush1.bf16.msra.mxu0 %v430
  %1443 = vmatprep.subr.bf16.mxu0 0
  %1444 = vmatpush1.bf16.msra.mxu0 %v431
  %1445 = vmatprep.subr.bf16.mxu0 0
  %1446 = vmatpush1.bf16.msra.mxu0 %v432
  %1447 = vmatprep.subr.bf16.mxu0 0
  %1448 = vmatpush1.bf16.msra.mxu0 %v433
  %1449 = vmatprep.subr.bf16.mxu0 0
  %1450 = vmatpush1.bf16.msra.mxu0 %v434
  %1451 = vmatprep.subr.bf16.mxu0 0
  %1452 = vmatpush1.bf16.msra.mxu0 %v435
  %1453 = vmatprep.subr.bf16.mxu0 0
  %1454 = vmatpush1.bf16.msra.mxu0 %v436
  %1455 = vmatprep.subr.bf16.mxu0 0
  %1456 = vmatpush1.bf16.msra.mxu0 %v437
  %1457 = vmatprep.subr.bf16.mxu0 0
  %1458 = vmatpush1.bf16.msra.mxu0 %v438
  %1459 = vmatprep.mubr.bf16.mxu0 %v1349
  %1460 = vmatmul.mubr.bf16.gmra.mrb[0].mxu0 %v1348
  %v1461 = vpop.f32.mrb[0].mxu0
  %v1462 = vadd.f32 %v1413, %v1461
  %v1463 = vpop.f32.mrb[0].mxu0
  %v1464 = vpop.f32.mrb[0].mxu0
  %v1465 = vadd.f32 %v1416, %v1464
  %v1466 = vpop.f32.mrb[0].mxu0
  %1467 = vmatprep.mubr.bf16.mxu0 %v1356
  %1468 = vmatmul.mubr.bf16.gmra.mrb[0].mxu0 %v1355
  %v1469 = vpop.f32.mrb[0].mxu0
  %v1470 = vadd.f32 %v1421, %v1469
  %v1471 = vpop.f32.mrb[0].mxu0
  %v1472 = vpop.f32.mrb[0].mxu0
  %v1473 = vadd.f32 %v1424, %v1472
  %v1474 = vpop.f32.mrb[0].mxu0
  %1475 = vdwg.mxu0
  %1476 = vmatprep.subr.bf16.mxu0 0
  %1477 = vmatpush1.bf16.msra.mxu0 %v439
  %1478 = vmatprep.subr.bf16.mxu0 0
  %1479 = vmatpush1.bf16.msra.mxu0 %v440
  %1480 = vmatprep.subr.bf16.mxu0 0
  %1481 = vmatpush1.bf16.msra.mxu0 %v441
  %1482 = vmatprep.subr.bf16.mxu0 0
  %1483 = vmatpush1.bf16.msra.mxu0 %v442
  %1484 = vmatprep.subr.bf16.mxu0 0
  %1485 = vmatpush1.bf16.msra.mxu0 %v443
  %1486 = vmatprep.subr.bf16.mxu0 0
  %1487 = vmatpush1.bf16.msra.mxu0 %v444
  %1488 = vmatprep.subr.bf16.mxu0 0
  %1489 = vmatpush1.bf16.msra.mxu0 %v445
  %1490 = vmatprep.subr.bf16.mxu0 0
  %1491 = vmatpush1.bf16.msra.mxu0 %v446
  %1492 = vmatprep.subr.bf16.mxu0 0
  %1493 = vmatpush1.bf16.msra.mxu0 %v447
  %1494 = vmatprep.subr.bf16.mxu0 0
  %1495 = vmatpush1.bf16.msra.mxu0 %v448
  %1496 = vmatprep.subr.bf16.mxu0 0
  %1497 = vmatpush1.bf16.msra.mxu0 %v449
  %1498 = vmatprep.subr.bf16.mxu0 0
  %1499 = vmatpush1.bf16.msra.mxu0 %v450
  %1500 = vmatprep.subr.bf16.mxu0 0
  %1501 = vmatpush1.bf16.msra.mxu0 %v451
  %1502 = vmatprep.subr.bf16.mxu0 0
  %1503 = vmatpush1.bf16.msra.mxu0 %v452
  %1504 = vmatprep.subr.bf16.mxu0 0
  %1505 = vmatpush1.bf16.msra.mxu0 %v453
  %1506 = vmatprep.subr.bf16.mxu0 0
  %1507 = vmatpush1.bf16.msra.mxu0 %v454
  %1508 = vmatprep.mubr.bf16.mxu0 %v1351
  %1509 = vmatmul.mubr.bf16.gmra.mrb[0].mxu0 %v1350
  %v1510 = vpop.f32.mrb[0].mxu0
  %v1511 = vadd.f32 %v1462, %v1510
  %v1512 = vpop.f32.mrb[0].mxu0
  %v1513 = vpop.f32.mrb[0].mxu0
  %v1514 = vadd.f32 %v1465, %v1513
  %v1515 = vpop.f32.mrb[0].mxu0
  %1516 = vmatprep.mubr.bf16.mxu0 %v1358
  %1517 = vmatmul.mubr.bf16.gmra.mrb[0].mxu0 %v1357
  %v1518 = vpop.f32.mrb[0].mxu0
  %v1519 = vadd.f32 %v1470, %v1518
  %v1520 = vpop.f32.mrb[0].mxu0
  %v1521 = vpop.f32.mrb[0].mxu0
  %v1522 = vadd.f32 %v1473, %v1521
  %v1523 = vpop.f32.mrb[0].mxu0
  %1524 = vdwg.mxu0
  %1525 = vmatprep.subr.bf16.mxu0 0
  %1526 = vmatpush1.bf16.msra.mxu0 %v455
  %1527 = vmatprep.subr.bf16.mxu0 0
  %1528 = vmatpush1.bf16.msra.mxu0 %v456
  %1529 = vmatprep.subr.bf16.mxu0 0
  %1530 = vmatpush1.bf16.msra.mxu0 0
  %1531 = vmatprep.subr.bf16.mxu0 0
  %1532 = vmatpush1.bf16.msra.mxu0 0
  %1533 = vmatprep.subr.bf16.mxu0 0
  %1534 = vmatpush1.bf16.msra.mxu0 0
  %1535 = vmatprep.subr.bf16.mxu0 0
  %1536 = vmatpush1.bf16.msra.mxu0 0
  %1537 = vmatprep.subr.bf16.mxu0 0
  %1538 = vmatpush1.bf16.msra.mxu0 0
  %1539 = vmatprep.subr.bf16.mxu0 0
  %1540 = vmatpush1.bf16.msra.mxu0 0
  %1541 = vmatprep.subr.bf16.mxu0 0
  %1542 = vmatpush1.bf16.msra.mxu0 0
  %1543 = vmatprep.subr.bf16.mxu0 0
  %1544 = vmatpush1.bf16.msra.mxu0 0
  %1545 = vmatprep.subr.bf16.mxu0 0
  %1546 = vmatpush1.bf16.msra.mxu0 0
  %1547 = vmatprep.subr.bf16.mxu0 0
  %1548 = vmatpush1.bf16.msra.mxu0 0
  %1549 = vmatprep.subr.bf16.mxu0 0
  %1550 = vmatpush1.bf16.msra.mxu0 0
  %1551 = vmatprep.subr.bf16.mxu0 0
  %1552 = vmatpush1.bf16.msra.mxu0 0
  %1553 = vmatprep.subr.bf16.mxu0 0
  %1554 = vmatpush1.bf16.msra.mxu0 0
  %1555 = vmatprep.subr.bf16.mxu0 0
  %1556 = vmatpush1.bf16.msra.mxu0 0
  %1557 = vmatprep.mubr.bf16.mxu0 0
  %1558 = vmatmul.mubr.bf16.gmra.mrb[0].mxu0 %v1373
  %v1559 = vpop.f32.mrb[0].mxu0
  %v1560 = vadd.f32 %v1511, %v1559
  %v1561 = vpop.f32.mrb[0].mxu0
  %v1562 = vpop.f32.mrb[0].mxu0
  %v1563 = vadd.f32 %v1514, %v1562
  %v1564 = vpop.f32.mrb[0].mxu0
  %1565 = vmatprep.mubr.bf16.mxu0 0
  %1566 = vmatmul.mubr.bf16.gmra.mrb[0].mxu0 %v1376
  %v1567 = vpop.f32.mrb[0].mxu0
  %v1568 = vadd.f32 %v1519, %v1567
  %v1569 = vpop.f32.mrb[0].mxu0
  %v1570 = vpop.f32.mrb[0].mxu0
  %v1571 = vadd.f32 %v1522, %v1570
  %v1572 = vpop.f32.mrb[0].mxu0
  %1573 = vdwg.mxu0
  %v1574 = vmax.f32 %v696, %v984
  %v1575 = vmax.f32 %v699, %v987
  %v1576 = vmax.f32 %v704, %v992
  %v1577 = vmax.f32 %v707, %v995
  %v1578 = vmax.f32 %v1272, %v1560
  %v1579 = vmax.f32 %v1275, %v1563
  %v1580 = vmax.f32 %v1280, %v1568
  %v1581 = vmax.f32 %v1283, %v1571
  %v1582 = vmax.f32 %v1574, %v1578
  %v1583 = vmax.f32 %v1575, %v1579
  %v1584 = vmax.f32 %v1576, %v1580
  %v1585 = vmax.f32 %v1577, %v1581
  %v1586 = vmax.f32 %v1582, 0.0
  %v1587 = vmax.f32 %v1583, 0.0
  %v1588 = vmax.f32 %v1584, 0.0
  %v1589 = vmax.f32 %v1585, 0.0
  %v1590 = vpack.c.bf16 %v1587, %v1586
  %v1591 = vpack.c.bf16 %v1589, %v1588
  %v1594 = vunpack.c.l.b16 %v1590
  %v1595 = vunpack.c.h.b16 %v1590
  %v1596 = vunpack.c.l.b16 %v1591
  %v1597 = vunpack.c.h.b16 %v1591
  %v1598 = vpack.c.b16 %v1594, %v1594
  %v1599 = vpack.c.b16 %v1595, %v1595
  %v1600 = vpack.c.b16 %v1596, %v1596
  %v1601 = vpack.c.b16 %v1597, %v1597
  %vm1606 = vcmask 257024
  %1607 = vst.msk [vmem:[%s5] sm:$0xf] %vm1606, %v1598
  %1608 = vst.msk [vmem:[%s5 + $0x4] sm:$0xf] %vm1606, %v1599
  %1609 = vst.msk [vmem:[%s5 + $0x8] sm:$0xf] %vm1606, %v1600
  %1610 = vst.msk [vmem:[%s5 + $0xc] sm:$0xf] %vm1606, %v1601
  // Predicated region
  $region22: #{forward.4} parent=0 // pred_check
    _
  $region23: #{forward.4} parent=0 // pred_check_branch
    %1612 = sbr.rel (0) target = $region25
  $region24: #{forward.4} parent=0 // pred_region
    _
  $region25: #{forward.4} parent=0 // pred_fallthru
    _
  // Predicated region
  $region26: #{forward.4} parent=0 // pred_check
    _
  $region27: #{forward.4} parent=0 // pred_check_branch
    %1614 = sbr.rel (0) target = $region29
  $region28: #{forward.4} parent=0 // pred_region
    _
  $region29: #{forward.4} parent=0 // pred_fallthru
    _

// kernel: forward.5
$region0: #{forward.5}
  #allocation0 [shape = 'u32[]', space=smem, size = 0x4, offset = 0x4, fixed_abs, tag = 'smem constant byte address 0x4 - core index']
  #allocation1 [shape = 'u32[144,128]{1,0:T(1,128)}', space=vmem, size = 0x12000, scoped, tag = 'internal scratch']
  %s0 = inlined_call_operand.vmem [shape: bf16[2,512], index: 0, kind: input, shape index: {}]
  %s1 = inlined_call_operand.vmem [shape: bf16[512,128], index: 1, kind: input, shape index: {}]
  %s2 = inlined_call_operand.vmem [shape: bf16[128,32], index: 2, kind: input, shape index: {}]
  %s3 = inlined_call_operand.vmem [shape: bf16[32,10], index: 3, kind: input, shape index: {}]
  %s4 = inlined_call_operand.hbm [shape: f32[2,10], index: 4, kind: output, shape index: {}]
  %s5 = sld [smem:[#allocation0]]
  $region26: #{forward.5} parent=0
    _
  %s7 = ssub.s32 1, %s5
  %s8 = scalar_select 0, %s7, %s5
  $region1: #{forward.5} parent=0
    #allocation2 [shape = 'u8[1024]{0}', space=vmem, size = 0x400, scoped, tag = 'output window, operand 0, single buffered']
    #allocation3 [shape = 's32[1]{0}', space=sflag, size = 0x4, scoped, tag = 'scoped memory for forward.5']
    %9 = vsyncpa [#allocation3], 0
    // Predicated region
    $region2: #{forward.5} parent=1 // pred_check
      _
    $region3: #{forward.5} parent=1 // pred_check_branch
      %11 = sbr.rel (0) target = $region5
    $region4: #{forward.5} parent=1 // pred_region
      _
    $region5: #{forward.5} parent=1 // pred_fallthru
      _
    // Predicated region
    $region6: #{forward.5} parent=1 // pred_check
      _
    $region7: #{forward.5} parent=1 // pred_check_branch
      %13 = sbr.rel (0) target = $region9
    $region8: #{forward.5} parent=1 // pred_region
      _
    $region9: #{forward.5} parent=1 // pred_fallthru
      _
    // Predicated region
    $region10: #{forward.5} parent=1 // pred_check
      _
    $region11: #{forward.5} parent=1 // pred_check_branch
      %15 = sbr.rel (0) target = $region13
    $region12: #{forward.5} parent=1 // pred_region
      _
    $region13: #{forward.5} parent=1 // pred_fallthru
      _
    // Predicated region
    $region14: #{forward.5} parent=1 // pred_check
      _
    $region15: #{forward.5} parent=1 // pred_check_branch
      %17 = sbr.rel (0) target = $region17
    $region16: #{forward.5} parent=1 // pred_region
      _
    $region17: #{forward.5} parent=1 // pred_fallthru
      _
    %v19 = vld [vmem:[%s0] sm:$0xf]
    %v20 = vld [vmem:[%s1] sm:$0xf]
    %v21 = vld [vmem:[%s1 + $0x4] sm:$0xf]
    %v22 = vld [vmem:[%s1 + $0x8] sm:$0xf]
    %v23 = vld [vmem:[%s1 + $0xc] sm:$0xf]
    %v24 = vld [vmem:[%s1 + $0x10] sm:$0xf]
    %v25 = vld [vmem:[%s1 + $0x14] sm:$0xf]
    %v26 = vld [vmem:[%s1 + $0x18] sm:$0xf]
    %v27 = vld [vmem:[%s1 + $0x1c] sm:$0xf]
    %v28 = vld [vmem:[%s1 + $0x20] sm:$0xf]
    %v29 = vld [vmem:[%s1 + $0x24] sm:$0xf]
    %v30 = vld [vmem:[%s1 + $0x28] sm:$0xf]
    %v31 = vld [vmem:[%s1 + $0x2c] sm:$0xf]
    %v32 = vld [vmem:[%s1 + $0x30] sm:$0xf]
    %v33 = vld [vmem:[%s1 + $0x34] sm:$0xf]
    %v34 = vld [vmem:[%s1 + $0x38] sm:$0xf]
    %v35 = vld [vmem:[%s1 + $0x3c] sm:$0xf]
    %v36 = vld [vmem:[%s1 + $0x40] sm:$0xf]
    %v37 = vld [vmem:[%s1 + $0x44] sm:$0xf]
    %v38 = vld [vmem:[%s1 + $0x48] sm:$0xf]
    %v39 = vld [vmem:[%s1 + $0x4c] sm:$0xf]
    %v40 = vld [vmem:[%s1 + $0x50] sm:$0xf]
    %v41 = vld [vmem:[%s1 + $0x54] sm:$0xf]
    %v42 = vld [vmem:[%s1 + $0x58] sm:$0xf]
    %v43 = vld [vmem:[%s1 + $0x5c] sm:$0xf]
    %v44 = vld [vmem:[%s1 + $0x60] sm:$0xf]
    %v45 = vld [vmem:[%s1 + $0x64] sm:$0xf]
    %v46 = vld [vmem:[%s1 + $0x68] sm:$0xf]
    %v47 = vld [vmem:[%s1 + $0x6c] sm:$0xf]
    %v48 = vld [vmem:[%s1 + $0x70] sm:$0xf]
    %v49 = vld [vmem:[%s1 + $0x74] sm:$0xf]
    %v50 = vld [vmem:[%s1 + $0x78] sm:$0xf]
    %v51 = vld [vmem:[%s1 + $0x7c] sm:$0xf]
    %v52 = vld [vmem:[%s1 + $0x80] sm:$0xf]
    %v53 = vld [vmem:[%s1 + $0x84] sm:$0xf]
    %v54 = vld [vmem:[%s1 + $0x88] sm:$0xf]
    %v55 = vld [vmem:[%s1 + $0x8c] sm:$0xf]
    %v56 = vld [vmem:[%s1 + $0x90] sm:$0xf]
    %v57 = vld [vmem:[%s1 + $0x94] sm:$0xf]
    %v58 = vld [vmem:[%s1 + $0x98] sm:$0xf]
    %v59 = vld [vmem:[%s1 + $0x9c] sm:$0xf]
    %v60 = vld [vmem:[%s1 + $0xa0] sm:$0xf]
    %v61 = vld [vmem:[%s1 + $0xa4] sm:$0xf]
    %v62 = vld [vmem:[%s1 + $0xa8] sm:$0xf]
    %v63 = vld [vmem:[%s1 + $0xac] sm:$0xf]
    %v64 = vld [vmem:[%s1 + $0xb0] sm:$0xf]
    %v65 = vld [vmem:[%s1 + $0xb4] sm:$0xf]
    %v66 = vld [vmem:[%s1 + $0xb8] sm:$0xf]
    %v67 = vld [vmem:[%s1 + $0xbc] sm:$0xf]
    %v68 = vld [vmem:[%s1 + $0xc0] sm:$0xf]
    %v69 = vld [vmem:[%s1 + $0xc4] sm:$0xf]
    %v70 = vld [vmem:[%s1 + $0xc8] sm:$0xf]
    %v71 = vld [vmem:[%s1 + $0xcc] sm:$0xf]
    %v72 = vld [vmem:[%s1 + $0xd0] sm:$0xf]
    %v73 = vld [vmem:[%s1 + $0xd4] sm:$0xf]
    %v74 = vld [vmem:[%s1 + $0xd8] sm:$0xf]
    %v75 = vld [vmem:[%s1 + $0xdc] sm:$0xf]
    %v76 = vld [vmem:[%s1 + $0xe0] sm:$0xf]
    %v77 = vld [vmem:[%s1 + $0xe4] sm:$0xf]
    %v78 = vld [vmem:[%s1 + $0xe8] sm:$0xf]
    %v79 = vld [vmem:[%s1 + $0xec] sm:$0xf]
    %v80 = vld [vmem:[%s1 + $0xf0] sm:$0xf]
    %v81 = vld [vmem:[%s1 + $0xf4] sm:$0xf]
    %v82 = vld [vmem:[%s1 + $0xf8] sm:$0xf]
    %v83 = vld [vmem:[%s1 + $0xfc] sm:$0xf]
    %v86 = vunpack.c.l.s4 1966171168
    %v87 = vunpack.c.0.s8 %v86
    %v88 = vlaneseq
    %v89 = vshrl.u32 %v88, 7
    %v90 = vsub.s32 %v87, %v89
    %v91 = vrot.slane %v19, %v90
    %v92 = vcombine.high %v91, %v91
    %v94 = vunpack.c.l.s4 1966171168
    %v95 = vunpack.c.0.s8 %v94
    %v96 = vlaneseq
    %v97 = vshrl.u32 %v96, 7
    %v98 = vsub.s32 %v95, %v97
    %v99 = vrot.slane %v91, %v98
    %v101 = vunpack.c.l.s4 1966171168
    %v102 = vunpack.c.0.s8 %v101
    %v103 = vlaneseq
    %v104 = vshrl.u32 %v103, 7
    %v105 = vsub.s32 %v102, %v104
    %v106 = vrot.slane %v92, %v105
    %v107 = vcombine.high %v99, %v99
    %v108 = vcombine.high %v106, %v106
    %v177 = vunpack.c.l.b16 %v20
    %v178 = vunpack.c.l.b16 %v21
    %v179 = vunpack.c.l.b16 %v22
    %v180 = vunpack.c.l.b16 %v23
    %v181 = vunpack.c.l.b16 %v24
    %v182 = vunpack.c.l.b16 %v25
    %v183 = vunpack.c.l.b16 %v26
    %v184 = vunpack.c.l.b16 %v27
    %v185 = vunpack.c.l.b16 %v28
    %v186 = vunpack.c.l.b16 %v29
    %v187 = vunpack.c.l.b16 %v30
    %v188 = vunpack.c.l.b16 %v31
    %v189 = vunpack.c.l.b16 %v32
    %v190 = vunpack.c.l.b16 %v33
    %v191 = vunpack.c.l.b16 %v34
    %v192 = vunpack.c.l.b16 %v35
    %v193 = vunpack.c.l.b16 %v36
    %v194 = vunpack.c.l.b16 %v37
    %v195 = vunpack.c.l.b16 %v38
    %v196 = vunpack.c.l.b16 %v39
    %v197 = vunpack.c.l.b16 %v40
    %v198 = vunpack.c.l.b16 %v41
    %v199 = vunpack.c.l.b16 %v42
    %v200 = vunpack.c.l.b16 %v43
    %v201 = vunpack.c.l.b16 %v44
    %v202 = vunpack.c.l.b16 %v45
    %v203 = vunpack.c.l.b16 %v46
    %v204 = vunpack.c.l.b16 %v47
    %v205 = vunpack.c.l.b16 %v48
    %v206 = vunpack.c.l.b16 %v49
    %v207 = vunpack.c.l.b16 %v50
    %v208 = vunpack.c.l.b16 %v51
    %v209 = vunpack.c.l.b16 %v52
    %v210 = vunpack.c.l.b16 %v53
    %v211 = vunpack.c.l.b16 %v54
    %v212 = vunpack.c.l.b16 %v55
    %v213 = vunpack.c.l.b16 %v56
    %v214 = vunpack.c.l.b16 %v57
    %v215 = vunpack.c.l.b16 %v58
    %v216 = vunpack.c.l.b16 %v59
    %v217 = vunpack.c.l.b16 %v60
    %v218 = vunpack.c.l.b16 %v61
    %v219 = vunpack.c.l.b16 %v62
    %v220 = vunpack.c.l.b16 %v63
    %v221 = vunpack.c.l.b16 %v64
    %v222 = vunpack.c.l.b16 %v65
    %v223 = vunpack.c.l.b16 %v66
    %v224 = vunpack.c.l.b16 %v67
    %v225 = vunpack.c.l.b16 %v68
    %v226 = vunpack.c.l.b16 %v69
    %v227 = vunpack.c.l.b16 %v70
    %v228 = vunpack.c.l.b16 %v71
    %v229 = vunpack.c.l.b16 %v72
    %v230 = vunpack.c.l.b16 %v73
    %v231 = vunpack.c.l.b16 %v74
    %v232 = vunpack.c.l.b16 %v75
    %v233 = vunpack.c.l.b16 %v76
    %v234 = vunpack.c.l.b16 %v77
    %v235 = vunpack.c.l.b16 %v78
    %v236 = vunpack.c.l.b16 %v79
    %v237 = vunpack.c.l.b16 %v80
    %v238 = vunpack.c.l.b16 %v81
    %v239 = vunpack.c.l.b16 %v82
    %v240 = vunpack.c.l.b16 %v83
    %v241 = vpack.c.b16 %v178, %v177
    %v242 = vpack.c.b16 %v180, %v179
    %v243 = vpack.c.b16 %v182, %v181
    %v244 = vpack.c.b16 %v184, %v183
    %v245 = vpack.c.b16 %v186, %v185
    %v246 = vpack.c.b16 %v188, %v187
    %v247 = vpack.c.b16 %v190, %v189
    %v248 = vpack.c.b16 %v192, %v191
    %v249 = vpack.c.b16 %v194, %v193
    %v250 = vpack.c.b16 %v196, %v195
    %v251 = vpack.c.b16 %v198, %v197
    %v252 = vpack.c.b16 %v200, %v199
    %v253 = vpack.c.b16 %v202, %v201
    %v254 = vpack.c.b16 %v204, %v203
    %v255 = vpack.c.b16 %v206, %v205
    %v256 = vpack.c.b16 %v208, %v207
    %v257 = vpack.c.b16 %v210, %v209
    %v258 = vpack.c.b16 %v212, %v211
    %v259 = vpack.c.b16 %v214, %v213
    %v260 = vpack.c.b16 %v216, %v215
    %v261 = vpack.c.b16 %v218, %v217
    %v262 = vpack.c.b16 %v220, %v219
    %v263 = vpack.c.b16 %v222, %v221
    %v264 = vpack.c.b16 %v224, %v223
    %v265 = vpack.c.b16 %v226, %v225
    %v266 = vpack.c.b16 %v228, %v227
    %v267 = vpack.c.b16 %v230, %v229
    %v268 = vpack.c.b16 %v232, %v231
    %v269 = vpack.c.b16 %v234, %v233
    %v270 = vpack.c.b16 %v236, %v235
    %v271 = vpack.c.b16 %v238, %v237
    %v272 = vpack.c.b16 %v240, %v239
    %305 = vmatprep.subr.bf16.mxu0 0
    %306 = vmatpush1.bf16.msra.mxu0 %v241
    %307 = vmatprep.subr.bf16.mxu0 0
    %308 = vmatpush1.bf16.msra.mxu0 %v242
    %309 = vmatprep.subr.bf16.mxu0 0
    %310 = vmatpush1.bf16.msra.mxu0 %v243
    %311 = vmatprep.subr.bf16.mxu0 0
    %312 = vmatpush1.bf16.msra.mxu0 %v244
    %313 = vmatprep.subr.bf16.mxu0 0
    %314 = vmatpush1.bf16.msra.mxu0 %v245
    %315 = vmatprep.subr.bf16.mxu0 0
    %316 = vmatpush1.bf16.msra.mxu0 %v246
    %317 = vmatprep.subr.bf16.mxu0 0
    %318 = vmatpush1.bf16.msra.mxu0 %v247
    %319 = vmatprep.subr.bf16.mxu0 0
    %320 = vmatpush1.bf16.msra.mxu0 %v248
    %321 = vmatprep.subr.bf16.mxu0 0
    %322 = vmatpush1.bf16.msra.mxu0 %v249
    %323 = vmatprep.subr.bf16.mxu0 0
    %324 = vmatpush1.bf16.msra.mxu0 %v250
    %325 = vmatprep.subr.bf16.mxu0 0
    %326 = vmatpush1.bf16.msra.mxu0 %v251
    %327 = vmatprep.subr.bf16.mxu0 0
    %328 = vmatpush1.bf16.msra.mxu0 %v252
    %329 = vmatprep.subr.bf16.mxu0 0
    %330 = vmatpush1.bf16.msra.mxu0 %v253
    %331 = vmatprep.subr.bf16.mxu0 0
    %332 = vmatpush1.bf16.msra.mxu0 %v254
    %333 = vmatprep.subr.bf16.mxu0 0
    %334 = vmatpush1.bf16.msra.mxu0 %v255
    %335 = vmatprep.subr.bf16.mxu0 0
    %336 = vmatpush1.bf16.msra.mxu0 %v256
    %337 = vmatprep.mubr.bf16.mxu0 %v106
    %338 = vmatmul.mubr.bf16.gmra.mrb[0].mxu0 %v99
    %v339 = vpop.f32.mrb[0].mxu0
    %v340 = vadd.f32 0.0, %v339
    %v341 = vpop.f32.mrb[0].mxu0
    %v342 = vpop.f32.mrb[0].mxu0
    %v343 = vpop.f32.mrb[0].mxu0
    %344 = vdwg.mxu0
    %345 = vmatprep.subr.bf16.mxu0 0
    %346 = vmatpush1.bf16.msra.mxu0 %v257
    %347 = vmatprep.subr.bf16.mxu0 0
    %348 = vmatpush1.bf16.msra.mxu0 %v258
    %349 = vmatprep.subr.bf16.mxu0 0
    %350 = vmatpush1.bf16.msra.mxu0 %v259
    %351 = vmatprep.subr.bf16.mxu0 0
    %352 = vmatpush1.bf16.msra.mxu0 %v260
    %353 = vmatprep.subr.bf16.mxu0 0
    %354 = vmatpush1.bf16.msra.mxu0 %v261
    %355 = vmatprep.subr.bf16.mxu0 0
    %356 = vmatpush1.bf16.msra.mxu0 %v262
    %357 = vmatprep.subr.bf16.mxu0 0
    %358 = vmatpush1.bf16.msra.mxu0 %v263
    %359 = vmatprep.subr.bf16.mxu0 0
    %360 = vmatpush1.bf16.msra.mxu0 %v264
    %361 = vmatprep.subr.bf16.mxu0 0
    %362 = vmatpush1.bf16.msra.mxu0 %v265
    %363 = vmatprep.subr.bf16.mxu0 0
    %364 = vmatpush1.bf16.msra.mxu0 %v266
    %365 = vmatprep.subr.bf16.mxu0 0
    %366 = vmatpush1.bf16.msra.mxu0 %v267
    %367 = vmatprep.subr.bf16.mxu0 0
    %368 = vmatpush1.bf16.msra.mxu0 %v268
    %369 = vmatprep.subr.bf16.mxu0 0
    %370 = vmatpush1.bf16.msra.mxu0 %v269
    %371 = vmatprep.subr.bf16.mxu0 0
    %372 = vmatpush1.bf16.msra.mxu0 %v270
    %373 = vmatprep.subr.bf16.mxu0 0
    %374 = vmatpush1.bf16.msra.mxu0 %v271
    %375 = vmatprep.subr.bf16.mxu0 0
    %376 = vmatpush1.bf16.msra.mxu0 %v272
    %377 = vmatprep.mubr.bf16.mxu0 %v108
    %378 = vmatmul.mubr.bf16.gmra.mrb[0].mxu0 %v107
    %v379 = vpop.f32.mrb[0].mxu0
    %v380 = vadd.f32 %v340, %v379
    %v381 = vpop.f32.mrb[0].mxu0
    %v382 = vpop.f32.mrb[0].mxu0
    %v383 = vpop.f32.mrb[0].mxu0
    %384 = vdwg.mxu0
    %v385 = vmax.f32 %v380, 0.0
    %v386 = vpack.c.bf16 %v385, %v385
    %v387 = vld [vmem:[%s2] sm:$0xf]
    %v388 = vld [vmem:[%s2 + $0x4] sm:$0xf]
    %v389 = vld [vmem:[%s2 + $0x8] sm:$0xf]
    %v390 = vld [vmem:[%s2 + $0xc] sm:$0xf]
    %v391 = vld [vmem:[%s2 + $0x10] sm:$0xf]
    %v392 = vld [vmem:[%s2 + $0x14] sm:$0xf]
    %v393 = vld [vmem:[%s2 + $0x18] sm:$0xf]
    %v394 = vld [vmem:[%s2 + $0x1c] sm:$0xf]
    %v395 = vld [vmem:[%s2 + $0x20] sm:$0xf]
    %v396 = vld [vmem:[%s2 + $0x24] sm:$0xf]
    %v397 = vld [vmem:[%s2 + $0x28] sm:$0xf]
    %v398 = vld [vmem:[%s2 + $0x2c] sm:$0xf]
    %v399 = vld [vmem:[%s2 + $0x30] sm:$0xf]
    %v400 = vld [vmem:[%s2 + $0x34] sm:$0xf]
    %v401 = vld [vmem:[%s2 + $0x38] sm:$0xf]
    %v402 = vld [vmem:[%s2 + $0x3c] sm:$0xf]
    %v419 = vunpack.c.l.b16 %v387
    %v420 = vunpack.c.l.b16 %v388
    %v421 = vunpack.c.l.b16 %v389
    %v422 = vunpack.c.l.b16 %v390
    %v423 = vunpack.c.l.b16 %v391
    %v424 = vunpack.c.l.b16 %v392
    %v425 = vunpack.c.l.b16 %v393
    %v426 = vunpack.c.l.b16 %v394
    %v427 = vunpack.c.l.b16 %v395
    %v428 = vunpack.c.l.b16 %v396
    %v429 = vunpack.c.l.b16 %v397
    %v430 = vunpack.c.l.b16 %v398
    %v431 = vunpack.c.l.b16 %v399
    %v432 = vunpack.c.l.b16 %v400
    %v433 = vunpack.c.l.b16 %v401
    %v434 = vunpack.c.l.b16 %v402
    %v435 = vpack.c.b16 %v420, %v419
    %v436 = vpack.c.b16 %v422, %v421
    %v437 = vpack.c.b16 %v424, %v423
    %v438 = vpack.c.b16 %v426, %v425
    %v439 = vpack.c.b16 %v428, %v427
    %v440 = vpack.c.b16 %v430, %v429
    %v441 = vpack.c.b16 %v432, %v431
    %v442 = vpack.c.b16 %v434, %v433
    %451 = vmatprep.subr.bf16.mxu0 0
    %452 = vmatpush1.bf16.msra.mxu0 %v435
    %453 = vmatprep.subr.bf16.mxu0 0
    %454 = vmatpush1.bf16.msra.mxu0 %v436
    %455 = vmatprep.subr.bf16.mxu0 0
    %456 = vmatpush1.bf16.msra.mxu0 %v437
    %457 = vmatprep.subr.bf16.mxu0 0
    %458 = vmatpush1.bf16.msra.mxu0 %v438
    %459 = vmatprep.subr.bf16.mxu0 0
    %460 = vmatpush1.bf16.msra.mxu0 %v439
    %461 = vmatprep.subr.bf16.mxu0 0
    %462 = vmatpush1.bf16.msra.mxu0 %v440
    %463 = vmatprep.subr.bf16.mxu0 0
    %464 = vmatpush1.bf16.msra.mxu0 %v441
    %465 = vmatprep.subr.bf16.mxu0 0
    %466 = vmatpush1.bf16.msra.mxu0 %v442
    %467 = vmatprep.subr.bf16.mxu0 0
    %468 = vmatpush1.bf16.msra.mxu0 0
    %469 = vmatprep.subr.bf16.mxu0 0
    %470 = vmatpush1.bf16.msra.mxu0 0
    %471 = vmatprep.subr.bf16.mxu0 0
    %472 = vmatpush1.bf16.msra.mxu0 0
    %473 = vmatprep.subr.bf16.mxu0 0
    %474 = vmatpush1.bf16.msra.mxu0 0
    %475 = vmatprep.subr.bf16.mxu0 0
    %476 = vmatpush1.bf16.msra.mxu0 0
    %477 = vmatprep.subr.bf16.mxu0 0
    %478 = vmatpush1.bf16.msra.mxu0 0
    %479 = vmatprep.subr.bf16.mxu0 0
    %480 = vmatpush1.bf16.msra.mxu0 0
    %481 = vmatprep.subr.bf16.mxu0 0
    %482 = vmatpush1.bf16.msra.mxu0 0
    %483 = vmatprep.mubr.bf16.mxu0 0
    %484 = vmatmul.mubr.bf16.gmra.mrb[0].mxu0 %v386
    %v485 = vpop.f32.mrb[0].mxu0
    %v486 = vadd.f32 0.0, %v485
    %v487 = vpop.f32.mrb[0].mxu0
    %v488 = vpop.f32.mrb[0].mxu0
    %v489 = vpop.f32.mrb[0].mxu0
    %490 = vdwg.mxu0
    %v491 = vmax.f32 %v486, 0.0
    %v492 = vpack.c.bf16 %v491, %v491
    %v493 = vld [vmem:[%s3] sm:$0xf]
    %v494 = vld [vmem:[%s3 + $0x4] sm:$0xf]
    %v495 = vld [vmem:[%s3 + $0x8] sm:$0xf]
    %v496 = vld [vmem:[%s3 + $0xc] sm:$0xf]
    %v501 = vunpack.c.l.b16 %v493
    %v502 = vunpack.c.l.b16 %v494
    %v503 = vunpack.c.l.b16 %v495
    %v504 = vunpack.c.l.b16 %v496
    %v505 = vpack.c.b16 %v502, %v501
    %v506 = vpack.c.b16 %v504, %v503
    %vm509 = vcmask 261120
    %v511 = vsel %vm509, %v492, 0
    %513 = vmatprep.subr.bf16.mxu0 0
    %514 = vmatpush1.bf16.msra.mxu0 %v505
    %515 = vmatprep.subr.bf16.mxu0 0
    %516 = vmatpush1.bf16.msra.mxu0 %v506
    %517 = vmatprep.subr.bf16.mxu0 0
    %518 = vmatpush1.bf16.msra.mxu0 0
    %519 = vmatprep.subr.bf16.mxu0 0
    %520 = vmatpush1.bf16.msra.mxu0 0
    %521 = vmatprep.subr.bf16.mxu0 0
    %522 = vmatpush1.bf16.msra.mxu0 0
    %523 = vmatprep.subr.bf16.mxu0 0
    %524 = vmatpush1.bf16.msra.mxu0 0
    %525 = vmatprep.subr.bf16.mxu0 0
    %526 = vmatpush1.bf16.msra.mxu0 0
    %527 = vmatprep.subr.bf16.mxu0 0
    %528 = vmatpush1.bf16.msra.mxu0 0
    %529 = vmatprep.subr.bf16.mxu0 0
    %530 = vmatpush1.bf16.msra.mxu0 0
    %531 = vmatprep.subr.bf16.mxu0 0
    %532 = vmatpush1.bf16.msra.mxu0 0
    %533 = vmatprep.subr.bf16.mxu0 0
    %534 = vmatpush1.bf16.msra.mxu0 0
    %535 = vmatprep.subr.bf16.mxu0 0
    %536 = vmatpush1.bf16.msra.mxu0 0
    %537 = vmatprep.subr.bf16.mxu0 0
    %538 = vmatpush1.bf16.msra.mxu0 0
    %539 = vmatprep.subr.bf16.mxu0 0
    %540 = vmatpush1.bf16.msra.mxu0 0
    %541 = vmatprep.subr.bf16.mxu0 0
    %542 = vmatpush1.bf16.msra.mxu0 0
    %543 = vmatprep.subr.bf16.mxu0 0
    %544 = vmatpush1.bf16.msra.mxu0 0
    %545 = vmatprep.mubr.bf16.mxu0 0
    %546 = vmatmul.mubr.bf16.gmra.mrb[0].mxu0 %v511
    %v547 = vpop.f32.mrb[0].mxu0
    %v548 = vadd.f32 0.0, %v547
    %v549 = vpop.f32.mrb[0].mxu0
    %v550 = vpop.f32.mrb[0].mxu0
    %v551 = vpop.f32.mrb[0].mxu0
    %552 = vdwg.mxu0
    %vm553 = vcmask 74752
    %554 = vst.msk [vmem:[#allocation2] sm:$0x3] %vm553, %v548
    // Predicated region
    $region18: #{forward.5} parent=1 // pred_check
      _
    $region19: #{forward.5} parent=1 // pred_check_branch
      %556 = sbr.rel (0) target = $region21
    $region20: #{forward.5} parent=1 // pred_region
      %s558 = ssub.s32 32, 32
      %559 = vsyncadd [#allocation3], %s558
      %s561 = sshll.u32 [#allocation2], 4
      %s562 = int_to_ptr.vmem [resolvable:$true] %s561
      %564 = dma.vmem_to_hbm [thread:$0]  %s562, 32, %s4, [#allocation3]
    $region21: #{forward.5} parent=1 // pred_fallthru
      _
    // Predicated region
    $region22: #{forward.5} parent=1 // pred_check
      _
    $region23: #{forward.5} parent=1 // pred_check_branch
      %566 = sbr.rel (0) target = $region25
    $region24: #{forward.5} parent=1 // pred_region
      %567 = dma.done [#allocation3], 32
    $region25: #{forward.5} parent=1 // pred_fallthru
      _
    %568 = vsyncpa [#allocation3], 1

</llo_original>
